<compile_context>
chip_gen: v6e
topology: v6e:2x2x1
jax: 0.10.0
libtpu: 0.0.40
codegen_flags: <defaults>
</compile_context>

<pallas_src>
import functools

import jax
import jax.numpy as jnp
from jax import lax
from jax.experimental import pallas as pl
from jax.experimental.pallas import tpu as pltpu


# ---------------------------------------------------------------------------
# Host-side one-time weight repacking (lane-dense layout).
# ---------------------------------------------------------------------------
def _band(in_cols, out_cols, j, stride):
    """0/1 matrix P with P[stride*(b+j), b] = 1 (column-tap selector)."""
    p = jnp.zeros((in_cols, out_cols), jnp.float32)
    b = jnp.arange(out_cols)
    return p.at[stride * (b + j), b].set(1.0)


def _conv_weight_lanes(wconv, in_cols, out_cols, stride):
    """Fold a KxK conv into K row-shift matmul weights.

    Activations are lane-dense: lane index = column*channels + channel.
    Returns (K, in_cols*ic, out_cols*oc) so that
        conv_out[row, col*oc + o] = sum_i dot(act[row + i, :], W[i])[col*oc + o]
    with the column taps j and the input-column stride folded into W[i].
    """
    oc, ic, k, _ = wconv.shape
    mats = []
    for i in range(k):
        m = jnp.zeros((in_cols * ic, out_cols * oc), jnp.float32)
        for j in range(k):
            m = m + jnp.kron(_band(in_cols, out_cols, j, stride),
                             wconv[:, :, i, j].T)
        mats.append(m)
    return jnp.stack(mats)


def lenet_prepack(params, input_size):
    """One-time repack of PyTorch-layout weights into kernel operands."""
    conv1_w = params["conv1_w"].astype(jnp.float32)
    conv2_w = params["conv2_w"].astype(jnp.float32)
    oc1, cin, k, _ = conv1_w.shape
    oc2 = conv2_w.shape[0]
    h = w = input_size
    oh1, ow1 = h - k + 1, w - k + 1
    ph1, pw1 = oh1 // 2, ow1 // 2
    oh2, ow2 = ph1 - k + 1, pw1 - k + 1
    ph2, pw2 = oh2 // 2, ow2 // 2
    fc1_out = params["fc1_w"].shape[0]
    assert min(oh1, ow1, oh2, ow2, ph2, pw2) > 0, "input too small for LeNet"
    assert params["fc1_w"].shape[1] == oc2 * ph2 * pw2

    # conv1: lanes w*cin -> ow1*oc1 ; conv2 reads the stride-2 pooled frame.
    w1 = _conv_weight_lanes(conv1_w, in_cols=w, out_cols=ow1, stride=1)
    w2 = _conv_weight_lanes(conv2_w, in_cols=ow1 - 1, out_cols=ow2, stride=2)
    b1 = jnp.tile(params["conv1_b"].astype(jnp.float32), ow1)[None, :]
    b2 = jnp.tile(params["conv2_b"].astype(jnp.float32), ow2)[None, :]

    # pool-1 row compaction (select rows 2p): tiny host constant that replaces
    # the in-kernel (frame1, frame0) iota/where construction of the old kernel.
    sel1 = jnp.zeros((ph1, oh1 - 1), jnp.float32).at[
        jnp.arange(ph1), 2 * jnp.arange(ph1)].set(1.0)

    # fc1 weight, one (lanes, 120) matrix per pooled row u_h; torch's
    # channel-major flatten order is folded in here.
    lanes2p = (ow2 - 1) * oc2
    fw = params["fc1_w"].astype(jnp.float32).reshape(fc1_out, oc2, ph2, pw2)
    fw = jnp.transpose(fw, (2, 3, 1, 0))                    # (u_h, u_w, c, out)
    rows = (2 * oc2 * jnp.arange(pw2)[:, None]
            + jnp.arange(oc2)[None, :]).reshape(-1)
    g1 = jnp.zeros((ph2, lanes2p, fc1_out), jnp.float32).at[:, rows, :].set(
        fw.reshape(ph2, pw2 * oc2, fc1_out))
    # per-u_h row mask (selects pooled row 2*u_h of the pool-2 block maxima)
    m1 = jnp.zeros((ph2, oh2 - 1, 1), jnp.float32).at[
        jnp.arange(ph2), 2 * jnp.arange(ph2), 0].set(1.0)

    return dict(
        w1=w1, b1=b1, sel1=sel1, w2=w2, b2=b2, g1=g1, m1=m1,
        fb1=params["fc1_b"].astype(jnp.float32)[None, :],
        fw2=params["fc2_w"].astype(jnp.float32).T,
        fb2=params["fc2_b"].astype(jnp.float32)[None, :],
        fw3=params["fc3_w"].astype(jnp.float32).T,
        fb3=params["fc3_b"].astype(jnp.float32)[None, :])


# ---------------------------------------------------------------------------
# The fused Pallas kernel (one grid step == one sample).
# ---------------------------------------------------------------------------
def _lenet_kernel(x_ref, w1_ref, b1_ref, sel1_ref, w2_ref, b2_ref,
                  g_ref, m_ref, fb1_ref, fw2_ref, fb2_ref, fw3_ref, fb3_ref,
                  out_ref, *, dims):
    d = dims
    k, oh1, oh2 = d["k"], d["oh1"], d["oh2"]
    oc1, oc2, ph2 = d["oc1"], d["oc2"], d["ph2"]
    lanes1, lanes2 = d["lanes1"], d["lanes2"]
    f32 = jnp.float32

    x = x_ref[0]                                   # (h, w*cin), lane-dense

    # ---- conv1 + bias + ReLU: k row-shifted matmuls, K = w*cin -------------
    acc1 = jnp.zeros((oh1, lanes1), f32)
    for i in range(k):
        acc1 = acc1 + jnp.dot(x[i:i + oh1, :], w1_ref[i],
                              preferred_element_type=f32)
    y1 = jnp.maximum(acc1 + b1_ref[...], 0.0)

    # ---- max-pool 2x2 / stride 2 (stage 1) ----------------------------------
    # adjacent-row max, adjacent-column max (lane shift by oc1), then a 0/1
    # row-compaction matmul (host constant) on the otherwise-idle MXU.
    v1 = jnp.maximum(y1[:oh1 - 1, :], y1[1:, :])
    h1 = jnp.maximum(v1[:, :lanes1 - oc1], v1[:, oc1:])
    p1 = jnp.dot(sel1_ref[...], h1, preferred_element_type=f32)

    # ---- conv2 + bias + ReLU (stride-2 column selection folded into w2) -----
    acc2 = jnp.zeros((oh2, lanes2), f32)
    for i in range(k):
        acc2 = acc2 + jnp.dot(p1[i:i + oh2, :], w2_ref[i],
                              preferred_element_type=f32)
    y2 = jnp.maximum(acc2 + b2_ref[...], 0.0)

    # ---- max-pool 2x2 / stride 2 (stage 2) ----------------------------------
    v2 = jnp.maximum(y2[:oh2 - 1, :], y2[1:, :])
    h2 = jnp.maximum(v2[:, :lanes2 - oc2], v2[:, oc2:])

    # ---- fc1 + ReLU ----------------------------------------------------------
    # ph2 matmuls with K = (ow2-1)*oc2; the masked row-sum picks the even
    # pooled row for each tap (torch flatten already folded into g on host).
    t = jnp.zeros((oh2 - 1, g_ref.shape[-1]), f32)
    for u in range(ph2):
        t = t + m_ref[u] * jnp.dot(h2, g_ref[u], preferred_element_type=f32)
    z1 = jnp.maximum(jnp.sum(t, axis=0, keepdims=True) + fb1_ref[...], 0.0)
    # dropout1: identity (inference).
    # TODO(synk): training-mode dropout (stochastic op) not implemented.

    # ---- fc2 + ReLU, fc3 -----------------------------------------------------
    z2 = jnp.maximum(jnp.dot(z1, fw2_ref[...], preferred_element_type=f32)
                     + fb2_ref[...], 0.0)
    # dropout2: identity (inference).
    logits = jnp.dot(z2, fw3_ref[...], preferred_element_type=f32) + fb3_ref[...]
    out_ref[0] = logits.astype(out_ref.dtype)


# ---------------------------------------------------------------------------
# Host wrapper (boundary layout glue + pallas_call).
# ---------------------------------------------------------------------------
def lenet_forward(packed, x):
    """x: (N, 3, H, W) float32 -> (N, num_classes) float32."""
    n, cin, h, w = x.shape
    w1, w2, g1 = packed["w1"], packed["w2"], packed["g1"]
    k = w1.shape[0]
    oh1, ow1 = h - k + 1, w - k + 1
    ph1, pw1 = oh1 // 2, ow1 // 2
    oh2, ow2 = ph1 - k + 1, pw1 - k + 1
    oc1 = w1.shape[2] // ow1
    oc2 = w2.shape[2] // ow2
    ph2 = g1.shape[0]
    num_classes = packed["fw3"].shape[1]
    assert w1.shape[1] == w * cin and w2.shape[1] == (ow1 - 1) * oc1
    dims = dict(k=k, oh1=oh1, oh2=oh2, oc1=oc1, oc2=oc2, ph2=ph2,
                lanes1=w1.shape[2], lanes2=w2.shape[2])

    # Boundary glue only: NCHW -> lane-dense (rows = H, lanes = W*C) frames.
    x_lane = jnp.transpose(x, (0, 2, 3, 1)).reshape(n, h, w * cin)
    x_lane = x_lane.astype(jnp.float32)

    consts = (packed["w1"], packed["b1"], packed["sel1"], packed["w2"],
              packed["b2"], packed["g1"], packed["m1"], packed["fb1"],
              packed["fw2"], packed["fb2"], packed["fw3"], packed["fb3"])

    def _const_spec(a):
        zeros = (0,) * a.ndim
        return pl.BlockSpec(a.shape, lambda s: zeros)

    out = pl.pallas_call(
        functools.partial(_lenet_kernel, dims=dims),
        grid=(n,),
        out_shape=jax.ShapeDtypeStruct((n, 1, num_classes), jnp.float32),
        in_specs=[pl.BlockSpec((1, h, w * cin), lambda s: (s, 0, 0))]
                 + [_const_spec(a) for a in consts],
        out_specs=pl.BlockSpec((1, 1, num_classes), lambda s: (s, 0, 0)),
        compiler_params=pltpu.CompilerParams(
            dimension_semantics=("parallel",)),
    )(x_lane, *consts)
    return out.reshape(n, num_classes)


# ---------------------------------------------------------------------------
# Parameters (PyTorch layouts) + plain-JAX reference for validation.
# ---------------------------------------------------------------------------
def init_lenet_params(key, num_classes=10, input_size=32):
    feature_size = ((input_size - 4) // 2 - 4) // 2
    fc1_in = 16 * feature_size ** 2
    keys = jax.random.split(key, 10)

    def uinit(k_, shape, fan_in):
        bound = 1.0 / jnp.sqrt(jnp.float32(fan_in))
        return jax.random.uniform(k_, shape, jnp.float32, -bound, bound)

    return {
        "conv1_w": uinit(keys[0], (6, 3, 5, 5), 3 * 25),
        "conv1_b": uinit(keys[1], (6,), 3 * 25),
        "conv2_w": uinit(keys[2], (16, 6, 5, 5), 6 * 25),
        "conv2_b": uinit(keys[3], (16,), 6 * 25),
        "fc1_w": uinit(keys[4], (120, fc1_in), fc1_in),
        "fc1_b": uinit(keys[5], (120,), fc1_in),
        "fc2_w": uinit(keys[6], (84, 120), 120),
        "fc2_b": uinit(keys[7], (84,), 120),
        "fc3_w": uinit(keys[8], (num_classes, 84), 84),
        "fc3_b": uinit(keys[9], (num_classes,), 84),
    }


def lenet_reference(params, x):
    hp = lax.Precision.HIGHEST

    def conv(x_, w_, b_):
        y = lax.conv_general_dilated(
            x_, w_, window_strides=(1, 1), padding="VALID",
            dimension_numbers=("NCHW", "OIHW", "NCHW"), precision=hp)
        return y + b_[None, :, None, None]

    def pool(y):
        nb, c, hh, ww = y.shape
        y = y[:, :, :(hh // 2) * 2, :(ww // 2) * 2]
        return y.reshape(nb, c, hh // 2, 2, ww // 2, 2).max(axis=(3, 5))

    y = pool(jax.nn.relu(conv(x, params["conv1_w"], params["conv1_b"])))
    y = pool(jax.nn.relu(conv(y, params["conv2_w"], params["conv2_b"])))
    f = y.reshape(y.shape[0], -1)
    z = jax.nn.relu(jnp.dot(f, params["fc1_w"].T, precision=hp) + params["fc1_b"])
    z = jax.nn.relu(jnp.dot(z, params["fc2_w"].T, precision=hp) + params["fc2_b"])
    return jnp.dot(z, params["fc3_w"].T, precision=hp) + params["fc3_b"]


if __name__ == "__main__":
    key = jax.random.PRNGKey(0)
    pkey, xkey = jax.random.split(key)

    num_classes = 10
    input_size = 32            # small spatial size consistent with the module's math
    batch = 2

    params = init_lenet_params(pkey, num_classes=num_classes, input_size=input_size)
    x = jax.random.normal(xkey, (batch, 3, input_size, input_size), jnp.float32)

    packed = lenet_prepack(params, input_size)     # one-time weight repack
    out = jax.block_until_ready(jax.jit(lenet_forward)(packed, x))
    ref = jax.block_until_ready(jax.jit(lenet_reference)(params, x))

    assert out.shape == (batch, num_classes), out.shape
    assert out.dtype == jnp.float32
    err = float(jnp.max(jnp.abs(out - ref)))
    assert err < 5e-3, f"mismatch vs reference: max abs err = {err}"
    print("KERNEL_OK")
</pallas_src>

<mosaic_0001>
module attributes {stable_mosaic.version = 11 : i64} {
  func.func @_lenet_kernel(%arg0: i32, %arg1: memref<1x32x96xf32, #tpu.memory_space<vmem>>, %arg2: memref<5x96x168xf32, #tpu.memory_space<vmem>>, %arg3: memref<1x168xf32, #tpu.memory_space<vmem>>, %arg4: memref<14x27xf32, #tpu.memory_space<vmem>>, %arg5: memref<5x162x160xf32, #tpu.memory_space<vmem>>, %arg6: memref<1x160xf32, #tpu.memory_space<vmem>>, %arg7: memref<5x144x120xf32, #tpu.memory_space<vmem>>, %arg8: memref<5x9x1xf32, #tpu.memory_space<vmem>>, %arg9: memref<1x120xf32, #tpu.memory_space<vmem>>, %arg10: memref<120x84xf32, #tpu.memory_space<vmem>>, %arg11: memref<1x84xf32, #tpu.memory_space<vmem>>, %arg12: memref<84x10xf32, #tpu.memory_space<vmem>>, %arg13: memref<1x10xf32, #tpu.memory_space<vmem>>, %arg14: memref<1x1x10xf32, #tpu.memory_space<vmem>>) attributes {dimension_semantics = [#tpu.dimension_semantics<parallel>], iteration_bounds = array<i64: 2>, scalar_prefetch = 0 : i64, scratch_operands = 0 : i64, tpu.core_type = #tpu.core_type<tc>, window_params = [{transform_indices = @transform_0, window_bounds = array<i64: 1, 32, 96>}, {pipeline_mode = #tpu.pipeline_mode<synchronous>, transform_indices = @transform_1, window_bounds = array<i64: 5, 96, 168>}, {pipeline_mode = #tpu.pipeline_mode<synchronous>, transform_indices = @transform_2, window_bounds = array<i64: 1, 168>}, {pipeline_mode = #tpu.pipeline_mode<synchronous>, transform_indices = @transform_3, window_bounds = array<i64: 14, 27>}, {pipeline_mode = #tpu.pipeline_mode<synchronous>, transform_indices = @transform_4, window_bounds = array<i64: 5, 162, 160>}, {pipeline_mode = #tpu.pipeline_mode<synchronous>, transform_indices = @transform_5, window_bounds = array<i64: 1, 160>}, {pipeline_mode = #tpu.pipeline_mode<synchronous>, transform_indices = @transform_6, window_bounds = array<i64: 5, 144, 120>}, {pipeline_mode = #tpu.pipeline_mode<synchronous>, transform_indices = @transform_7, window_bounds = array<i64: 5, 9, 1>}, {pipeline_mode = #tpu.pipeline_mode<synchronous>, transform_indices = @transform_8, window_bounds = array<i64: 1, 120>}, {pipeline_mode = #tpu.pipeline_mode<synchronous>, transform_indices = @transform_9, window_bounds = array<i64: 120, 84>}, {pipeline_mode = #tpu.pipeline_mode<synchronous>, transform_indices = @transform_10, window_bounds = array<i64: 1, 84>}, {pipeline_mode = #tpu.pipeline_mode<synchronous>, transform_indices = @transform_11, window_bounds = array<i64: 84, 10>}, {pipeline_mode = #tpu.pipeline_mode<synchronous>, transform_indices = @transform_12, window_bounds = array<i64: 1, 10>}, {transform_indices = @transform_13, window_bounds = array<i64: 1, 1, 10>}]} {
    %c0 = arith.constant 0 : index
    %c0_0 = arith.constant 0 : index
    %c0_1 = arith.constant 0 : index
    %0 = vector.load %arg1[%c0, %c0_0, %c0_1] : memref<1x32x96xf32, #tpu.memory_space<vmem>>, vector<1x32x96xf32>
    %1 = vector.shape_cast %0 : vector<1x32x96xf32> to vector<32x96xf32>
    %cst = arith.constant 0.000000e+00 : f32
    %2 = vector.broadcast %cst : f32 to vector<28x168xf32>
    %3 = vector.extract_strided_slice %1 {offsets = [0, 0], sizes = [28, 96], strides = [1, 1]} : vector<32x96xf32> to vector<28x96xf32>
    %c0_2 = arith.constant 0 : index
    %c0_3 = arith.constant 0 : index
    %c0_4 = arith.constant 0 : index
    %4 = vector.load %arg2[%c0_2, %c0_3, %c0_4] : memref<5x96x168xf32, #tpu.memory_space<vmem>>, vector<1x96x168xf32>
    %5 = vector.shape_cast %4 : vector<1x96x168xf32> to vector<96x168xf32>
    %cst_5 = arith.constant dense<0.000000e+00> : vector<28x168xf32>
    %6 = tpu.matmul %3, %5, %cst_5 {dimension_numbers = #tpu.dot_dimension_numbers<[1], [0], [0], [1], [0, 0, 1, 1], [], []>} : vector<28x96xf32>, vector<96x168xf32>, vector<28x168xf32> -> vector<28x168xf32>
    %7 = arith.addf %2, %6 : vector<28x168xf32>
    %8 = vector.extract_strided_slice %1 {offsets = [1, 0], sizes = [28, 96], strides = [1, 1]} : vector<32x96xf32> to vector<28x96xf32>
    %c1 = arith.constant 1 : index
    %c0_6 = arith.constant 0 : index
    %c0_7 = arith.constant 0 : index
    %9 = vector.load %arg2[%c1, %c0_6, %c0_7] : memref<5x96x168xf32, #tpu.memory_space<vmem>>, vector<1x96x168xf32>
    %10 = vector.shape_cast %9 : vector<1x96x168xf32> to vector<96x168xf32>
    %cst_8 = arith.constant dense<0.000000e+00> : vector<28x168xf32>
    %11 = tpu.matmul %8, %10, %cst_8 {dimension_numbers = #tpu.dot_dimension_numbers<[1], [0], [0], [1], [0, 0, 1, 1], [], []>} : vector<28x96xf32>, vector<96x168xf32>, vector<28x168xf32> -> vector<28x168xf32>
    %12 = arith.addf %7, %11 : vector<28x168xf32>
    %13 = vector.extract_strided_slice %1 {offsets = [2, 0], sizes = [28, 96], strides = [1, 1]} : vector<32x96xf32> to vector<28x96xf32>
    %c2 = arith.constant 2 : index
    %c0_9 = arith.constant 0 : index
    %c0_10 = arith.constant 0 : index
    %14 = vector.load %arg2[%c2, %c0_9, %c0_10] : memref<5x96x168xf32, #tpu.memory_space<vmem>>, vector<1x96x168xf32>
    %15 = vector.shape_cast %14 : vector<1x96x168xf32> to vector<96x168xf32>
    %cst_11 = arith.constant dense<0.000000e+00> : vector<28x168xf32>
    %16 = tpu.matmul %13, %15, %cst_11 {dimension_numbers = #tpu.dot_dimension_numbers<[1], [0], [0], [1], [0, 0, 1, 1], [], []>} : vector<28x96xf32>, vector<96x168xf32>, vector<28x168xf32> -> vector<28x168xf32>
    %17 = arith.addf %12, %16 : vector<28x168xf32>
    %18 = vector.extract_strided_slice %1 {offsets = [3, 0], sizes = [28, 96], strides = [1, 1]} : vector<32x96xf32> to vector<28x96xf32>
    %c3 = arith.constant 3 : index
    %c0_12 = arith.constant 0 : index
    %c0_13 = arith.constant 0 : index
    %19 = vector.load %arg2[%c3, %c0_12, %c0_13] : memref<5x96x168xf32, #tpu.memory_space<vmem>>, vector<1x96x168xf32>
    %20 = vector.shape_cast %19 : vector<1x96x168xf32> to vector<96x168xf32>
    %cst_14 = arith.constant dense<0.000000e+00> : vector<28x168xf32>
    %21 = tpu.matmul %18, %20, %cst_14 {dimension_numbers = #tpu.dot_dimension_numbers<[1], [0], [0], [1], [0, 0, 1, 1], [], []>} : vector<28x96xf32>, vector<96x168xf32>, vector<28x168xf32> -> vector<28x168xf32>
    %22 = arith.addf %17, %21 : vector<28x168xf32>
    %23 = vector.extract_strided_slice %1 {offsets = [4, 0], sizes = [28, 96], strides = [1, 1]} : vector<32x96xf32> to vector<28x96xf32>
    %c4 = arith.constant 4 : index
    %c0_15 = arith.constant 0 : index
    %c0_16 = arith.constant 0 : index
    %24 = vector.load %arg2[%c4, %c0_15, %c0_16] : memref<5x96x168xf32, #tpu.memory_space<vmem>>, vector<1x96x168xf32>
    %25 = vector.shape_cast %24 : vector<1x96x168xf32> to vector<96x168xf32>
    %cst_17 = arith.constant dense<0.000000e+00> : vector<28x168xf32>
    %26 = tpu.matmul %23, %25, %cst_17 {dimension_numbers = #tpu.dot_dimension_numbers<[1], [0], [0], [1], [0, 0, 1, 1], [], []>} : vector<28x96xf32>, vector<96x168xf32>, vector<28x168xf32> -> vector<28x168xf32>
    %27 = arith.addf %22, %26 : vector<28x168xf32>
    %c0_18 = arith.constant 0 : index
    %c0_19 = arith.constant 0 : index
    %28 = vector.load %arg3[%c0_18, %c0_19] : memref<1x168xf32, #tpu.memory_space<vmem>>, vector<1x168xf32>
    %29 = vector.broadcast %28 : vector<1x168xf32> to vector<28x168xf32>
    %30 = arith.addf %27, %29 : vector<28x168xf32>
    %cst_20 = arith.constant 0.000000e+00 : f32
    %31 = vector.broadcast %cst_20 : f32 to vector<28x168xf32>
    %32 = arith.maximumf %30, %31 : vector<28x168xf32>
    %33 = vector.extract_strided_slice %32 {offsets = [0, 0], sizes = [27, 168], strides = [1, 1]} : vector<28x168xf32> to vector<27x168xf32>
    %34 = vector.extract_strided_slice %32 {offsets = [1, 0], sizes = [27, 168], strides = [1, 1]} : vector<28x168xf32> to vector<27x168xf32>
    %35 = arith.maximumf %33, %34 : vector<27x168xf32>
    %36 = vector.extract_strided_slice %35 {offsets = [0, 0], sizes = [27, 162], strides = [1, 1]} : vector<27x168xf32> to vector<27x162xf32>
    %37 = vector.extract_strided_slice %35 {offsets = [0, 6], sizes = [27, 162], strides = [1, 1]} : vector<27x168xf32> to vector<27x162xf32>
    %38 = arith.maximumf %36, %37 : vector<27x162xf32>
    %c0_21 = arith.constant 0 : index
    %c0_22 = arith.constant 0 : index
    %39 = vector.load %arg4[%c0_21, %c0_22] : memref<14x27xf32, #tpu.memory_space<vmem>>, vector<14x27xf32>
    %cst_23 = arith.constant dense<0.000000e+00> : vector<14x162xf32>
    %40 = tpu.matmul %39, %38, %cst_23 {dimension_numbers = #tpu.dot_dimension_numbers<[1], [0], [0], [1], [0, 0, 1, 1], [], []>} : vector<14x27xf32>, vector<27x162xf32>, vector<14x162xf32> -> vector<14x162xf32>
    %cst_24 = arith.constant 0.000000e+00 : f32
    %41 = vector.broadcast %cst_24 : f32 to vector<10x160xf32>
    %42 = vector.extract_strided_slice %40 {offsets = [0, 0], sizes = [10, 162], strides = [1, 1]} : vector<14x162xf32> to vector<10x162xf32>
    %c0_25 = arith.constant 0 : index
    %c0_26 = arith.constant 0 : index
    %c0_27 = arith.constant 0 : index
    %43 = vector.load %arg5[%c0_25, %c0_26, %c0_27] : memref<5x162x160xf32, #tpu.memory_space<vmem>>, vector<1x162x160xf32>
    %44 = vector.shape_cast %43 : vector<1x162x160xf32> to vector<162x160xf32>
    %cst_28 = arith.constant dense<0.000000e+00> : vector<10x160xf32>
    %45 = tpu.matmul %42, %44, %cst_28 {dimension_numbers = #tpu.dot_dimension_numbers<[1], [0], [0], [1], [0, 0, 1, 1], [], []>} : vector<10x162xf32>, vector<162x160xf32>, vector<10x160xf32> -> vector<10x160xf32>
    %46 = arith.addf %41, %45 : vector<10x160xf32>
    %47 = vector.extract_strided_slice %40 {offsets = [1, 0], sizes = [10, 162], strides = [1, 1]} : vector<14x162xf32> to vector<10x162xf32>
    %c1_29 = arith.constant 1 : index
    %c0_30 = arith.constant 0 : index
    %c0_31 = arith.constant 0 : index
    %48 = vector.load %arg5[%c1_29, %c0_30, %c0_31] : memref<5x162x160xf32, #tpu.memory_space<vmem>>, vector<1x162x160xf32>
    %49 = vector.shape_cast %48 : vector<1x162x160xf32> to vector<162x160xf32>
    %cst_32 = arith.constant dense<0.000000e+00> : vector<10x160xf32>
    %50 = tpu.matmul %47, %49, %cst_32 {dimension_numbers = #tpu.dot_dimension_numbers<[1], [0], [0], [1], [0, 0, 1, 1], [], []>} : vector<10x162xf32>, vector<162x160xf32>, vector<10x160xf32> -> vector<10x160xf32>
    %51 = arith.addf %46, %50 : vector<10x160xf32>
    %52 = vector.extract_strided_slice %40 {offsets = [2, 0], sizes = [10, 162], strides = [1, 1]} : vector<14x162xf32> to vector<10x162xf32>
    %c2_33 = arith.constant 2 : index
    %c0_34 = arith.constant 0 : index
    %c0_35 = arith.constant 0 : index
    %53 = vector.load %arg5[%c2_33, %c0_34, %c0_35] : memref<5x162x160xf32, #tpu.memory_space<vmem>>, vector<1x162x160xf32>
    %54 = vector.shape_cast %53 : vector<1x162x160xf32> to vector<162x160xf32>
    %cst_36 = arith.constant dense<0.000000e+00> : vector<10x160xf32>
    %55 = tpu.matmul %52, %54, %cst_36 {dimension_numbers = #tpu.dot_dimension_numbers<[1], [0], [0], [1], [0, 0, 1, 1], [], []>} : vector<10x162xf32>, vector<162x160xf32>, vector<10x160xf32> -> vector<10x160xf32>
    %56 = arith.addf %51, %55 : vector<10x160xf32>
    %57 = vector.extract_strided_slice %40 {offsets = [3, 0], sizes = [10, 162], strides = [1, 1]} : vector<14x162xf32> to vector<10x162xf32>
    %c3_37 = arith.constant 3 : index
    %c0_38 = arith.constant 0 : index
    %c0_39 = arith.constant 0 : index
    %58 = vector.load %arg5[%c3_37, %c0_38, %c0_39] : memref<5x162x160xf32, #tpu.memory_space<vmem>>, vector<1x162x160xf32>
    %59 = vector.shape_cast %58 : vector<1x162x160xf32> to vector<162x160xf32>
    %cst_40 = arith.constant dense<0.000000e+00> : vector<10x160xf32>
    %60 = tpu.matmul %57, %59, %cst_40 {dimension_numbers = #tpu.dot_dimension_numbers<[1], [0], [0], [1], [0, 0, 1, 1], [], []>} : vector<10x162xf32>, vector<162x160xf32>, vector<10x160xf32> -> vector<10x160xf32>
    %61 = arith.addf %56, %60 : vector<10x160xf32>
    %62 = vector.extract_strided_slice %40 {offsets = [4, 0], sizes = [10, 162], strides = [1, 1]} : vector<14x162xf32> to vector<10x162xf32>
    %c4_41 = arith.constant 4 : index
    %c0_42 = arith.constant 0 : index
    %c0_43 = arith.constant 0 : index
    %63 = vector.load %arg5[%c4_41, %c0_42, %c0_43] : memref<5x162x160xf32, #tpu.memory_space<vmem>>, vector<1x162x160xf32>
    %64 = vector.shape_cast %63 : vector<1x162x160xf32> to vector<162x160xf32>
    %cst_44 = arith.constant dense<0.000000e+00> : vector<10x160xf32>
    %65 = tpu.matmul %62, %64, %cst_44 {dimension_numbers = #tpu.dot_dimension_numbers<[1], [0], [0], [1], [0, 0, 1, 1], [], []>} : vector<10x162xf32>, vector<162x160xf32>, vector<10x160xf32> -> vector<10x160xf32>
    %66 = arith.addf %61, %65 : vector<10x160xf32>
    %c0_45 = arith.constant 0 : index
    %c0_46 = arith.constant 0 : index
    %67 = vector.load %arg6[%c0_45, %c0_46] : memref<1x160xf32, #tpu.memory_space<vmem>>, vector<1x160xf32>
    %68 = vector.broadcast %67 : vector<1x160xf32> to vector<10x160xf32>
    %69 = arith.addf %66, %68 : vector<10x160xf32>
    %cst_47 = arith.constant 0.000000e+00 : f32
    %70 = vector.broadcast %cst_47 : f32 to vector<10x160xf32>
    %71 = arith.maximumf %69, %70 : vector<10x160xf32>
    %72 = vector.extract_strided_slice %71 {offsets = [0, 0], sizes = [9, 160], strides = [1, 1]} : vector<10x160xf32> to vector<9x160xf32>
    %73 = vector.extract_strided_slice %71 {offsets = [1, 0], sizes = [9, 160], strides = [1, 1]} : vector<10x160xf32> to vector<9x160xf32>
    %74 = arith.maximumf %72, %73 : vector<9x160xf32>
    %75 = vector.extract_strided_slice %74 {offsets = [0, 0], sizes = [9, 144], strides = [1, 1]} : vector<9x160xf32> to vector<9x144xf32>
    %76 = vector.extract_strided_slice %74 {offsets = [0, 16], sizes = [9, 144], strides = [1, 1]} : vector<9x160xf32> to vector<9x144xf32>
    %77 = arith.maximumf %75, %76 : vector<9x144xf32>
    %cst_48 = arith.constant 0.000000e+00 : f32
    %78 = vector.broadcast %cst_48 : f32 to vector<9x120xf32>
    %c0_49 = arith.constant 0 : index
    %c0_50 = arith.constant 0 : index
    %c0_51 = arith.constant 0 : index
    %79 = vector.load %arg8[%c0_49, %c0_50, %c0_51] : memref<5x9x1xf32, #tpu.memory_space<vmem>>, vector<1x9x1xf32>
    %80 = vector.shape_cast %79 : vector<1x9x1xf32> to vector<9x1xf32>
    %c0_52 = arith.constant 0 : index
    %c0_53 = arith.constant 0 : index
    %c0_54 = arith.constant 0 : index
    %81 = vector.load %arg7[%c0_52, %c0_53, %c0_54] : memref<5x144x120xf32, #tpu.memory_space<vmem>>, vector<1x144x120xf32>
    %82 = vector.shape_cast %81 : vector<1x144x120xf32> to vector<144x120xf32>
    %cst_55 = arith.constant dense<0.000000e+00> : vector<9x120xf32>
    %83 = tpu.matmul %77, %82, %cst_55 {dimension_numbers = #tpu.dot_dimension_numbers<[1], [0], [0], [1], [0, 0, 1, 1], [], []>} : vector<9x144xf32>, vector<144x120xf32>, vector<9x120xf32> -> vector<9x120xf32>
    %84 = vector.broadcast %80 : vector<9x1xf32> to vector<9x120xf32>
    %85 = arith.mulf %84, %83 : vector<9x120xf32>
    %86 = arith.addf %78, %85 : vector<9x120xf32>
    %c1_56 = arith.constant 1 : index
    %c0_57 = arith.constant 0 : index
    %c0_58 = arith.constant 0 : index
    %87 = vector.load %arg8[%c1_56, %c0_57, %c0_58] : memref<5x9x1xf32, #tpu.memory_space<vmem>>, vector<1x9x1xf32>
    %88 = vector.shape_cast %87 : vector<1x9x1xf32> to vector<9x1xf32>
    %c1_59 = arith.constant 1 : index
    %c0_60 = arith.constant 0 : index
    %c0_61 = arith.constant 0 : index
    %89 = vector.load %arg7[%c1_59, %c0_60, %c0_61] : memref<5x144x120xf32, #tpu.memory_space<vmem>>, vector<1x144x120xf32>
    %90 = vector.shape_cast %89 : vector<1x144x120xf32> to vector<144x120xf32>
    %cst_62 = arith.constant dense<0.000000e+00> : vector<9x120xf32>
    %91 = tpu.matmul %77, %90, %cst_62 {dimension_numbers = #tpu.dot_dimension_numbers<[1], [0], [0], [1], [0, 0, 1, 1], [], []>} : vector<9x144xf32>, vector<144x120xf32>, vector<9x120xf32> -> vector<9x120xf32>
    %92 = vector.broadcast %88 : vector<9x1xf32> to vector<9x120xf32>
    %93 = arith.mulf %92, %91 : vector<9x120xf32>
    %94 = arith.addf %86, %93 : vector<9x120xf32>
    %c2_63 = arith.constant 2 : index
    %c0_64 = arith.constant 0 : index
    %c0_65 = arith.constant 0 : index
    %95 = vector.load %arg8[%c2_63, %c0_64, %c0_65] : memref<5x9x1xf32, #tpu.memory_space<vmem>>, vector<1x9x1xf32>
    %96 = vector.shape_cast %95 : vector<1x9x1xf32> to vector<9x1xf32>
    %c2_66 = arith.constant 2 : index
    %c0_67 = arith.constant 0 : index
    %c0_68 = arith.constant 0 : index
    %97 = vector.load %arg7[%c2_66, %c0_67, %c0_68] : memref<5x144x120xf32, #tpu.memory_space<vmem>>, vector<1x144x120xf32>
    %98 = vector.shape_cast %97 : vector<1x144x120xf32> to vector<144x120xf32>
    %cst_69 = arith.constant dense<0.000000e+00> : vector<9x120xf32>
    %99 = tpu.matmul %77, %98, %cst_69 {dimension_numbers = #tpu.dot_dimension_numbers<[1], [0], [0], [1], [0, 0, 1, 1], [], []>} : vector<9x144xf32>, vector<144x120xf32>, vector<9x120xf32> -> vector<9x120xf32>
    %100 = vector.broadcast %96 : vector<9x1xf32> to vector<9x120xf32>
    %101 = arith.mulf %100, %99 : vector<9x120xf32>
    %102 = arith.addf %94, %101 : vector<9x120xf32>
    %c3_70 = arith.constant 3 : index
    %c0_71 = arith.constant 0 : index
    %c0_72 = arith.constant 0 : index
    %103 = vector.load %arg8[%c3_70, %c0_71, %c0_72] : memref<5x9x1xf32, #tpu.memory_space<vmem>>, vector<1x9x1xf32>
    %104 = vector.shape_cast %103 : vector<1x9x1xf32> to vector<9x1xf32>
    %c3_73 = arith.constant 3 : index
    %c0_74 = arith.constant 0 : index
    %c0_75 = arith.constant 0 : index
    %105 = vector.load %arg7[%c3_73, %c0_74, %c0_75] : memref<5x144x120xf32, #tpu.memory_space<vmem>>, vector<1x144x120xf32>
    %106 = vector.shape_cast %105 : vector<1x144x120xf32> to vector<144x120xf32>
    %cst_76 = arith.constant dense<0.000000e+00> : vector<9x120xf32>
    %107 = tpu.matmul %77, %106, %cst_76 {dimension_numbers = #tpu.dot_dimension_numbers<[1], [0], [0], [1], [0, 0, 1, 1], [], []>} : vector<9x144xf32>, vector<144x120xf32>, vector<9x120xf32> -> vector<9x120xf32>
    %108 = vector.broadcast %104 : vector<9x1xf32> to vector<9x120xf32>
    %109 = arith.mulf %108, %107 : vector<9x120xf32>
    %110 = arith.addf %102, %109 : vector<9x120xf32>
    %c4_77 = arith.constant 4 : index
    %c0_78 = arith.constant 0 : index
    %c0_79 = arith.constant 0 : index
    %111 = vector.load %arg8[%c4_77, %c0_78, %c0_79] : memref<5x9x1xf32, #tpu.memory_space<vmem>>, vector<1x9x1xf32>
    %112 = vector.shape_cast %111 : vector<1x9x1xf32> to vector<9x1xf32>
    %c4_80 = arith.constant 4 : index
    %c0_81 = arith.constant 0 : index
    %c0_82 = arith.constant 0 : index
    %113 = vector.load %arg7[%c4_80, %c0_81, %c0_82] : memref<5x144x120xf32, #tpu.memory_space<vmem>>, vector<1x144x120xf32>
    %114 = vector.shape_cast %113 : vector<1x144x120xf32> to vector<144x120xf32>
    %cst_83 = arith.constant dense<0.000000e+00> : vector<9x120xf32>
    %115 = tpu.matmul %77, %114, %cst_83 {dimension_numbers = #tpu.dot_dimension_numbers<[1], [0], [0], [1], [0, 0, 1, 1], [], []>} : vector<9x144xf32>, vector<144x120xf32>, vector<9x120xf32> -> vector<9x120xf32>
    %116 = vector.broadcast %112 : vector<9x1xf32> to vector<9x120xf32>
    %117 = arith.mulf %116, %115 : vector<9x120xf32>
    %118 = arith.addf %110, %117 : vector<9x120xf32>
    %cst_84 = arith.constant dense<0.000000e+00> : vector<120xf32>
    %119 = vector.multi_reduction <add>, %118, %cst_84 [0] : vector<9x120xf32> to vector<120xf32>
    %120 = vector.shape_cast %119 : vector<120xf32> to vector<1x120xf32>
    %c0_85 = arith.constant 0 : index
    %c0_86 = arith.constant 0 : index
    %121 = vector.load %arg9[%c0_85, %c0_86] : memref<1x120xf32, #tpu.memory_space<vmem>>, vector<1x120xf32>
    %122 = arith.addf %120, %121 : vector<1x120xf32>
    %cst_87 = arith.constant 0.000000e+00 : f32
    %123 = vector.broadcast %cst_87 : f32 to vector<1x120xf32>
    %124 = arith.maximumf %122, %123 : vector<1x120xf32>
    %c0_88 = arith.constant 0 : index
    %c0_89 = arith.constant 0 : index
    %125 = vector.load %arg10[%c0_88, %c0_89] : memref<120x84xf32, #tpu.memory_space<vmem>>, vector<120x84xf32>
    %cst_90 = arith.constant dense<0.000000e+00> : vector<1x84xf32>
    %126 = tpu.matmul %124, %125, %cst_90 {dimension_numbers = #tpu.dot_dimension_numbers<[1], [0], [0], [1], [0, 0, 1, 1], [], []>} : vector<1x120xf32>, vector<120x84xf32>, vector<1x84xf32> -> vector<1x84xf32>
    %c0_91 = arith.constant 0 : index
    %c0_92 = arith.constant 0 : index
    %127 = vector.load %arg11[%c0_91, %c0_92] : memref<1x84xf32, #tpu.memory_space<vmem>>, vector<1x84xf32>
    %128 = arith.addf %126, %127 : vector<1x84xf32>
    %cst_93 = arith.constant 0.000000e+00 : f32
    %129 = vector.broadcast %cst_93 : f32 to vector<1x84xf32>
    %130 = arith.maximumf %128, %129 : vector<1x84xf32>
    %c0_94 = arith.constant 0 : index
    %c0_95 = arith.constant 0 : index
    %131 = vector.load %arg12[%c0_94, %c0_95] : memref<84x10xf32, #tpu.memory_space<vmem>>, vector<84x10xf32>
    %cst_96 = arith.constant dense<0.000000e+00> : vector<1x10xf32>
    %132 = tpu.matmul %130, %131, %cst_96 {dimension_numbers = #tpu.dot_dimension_numbers<[1], [0], [0], [1], [0, 0, 1, 1], [], []>} : vector<1x84xf32>, vector<84x10xf32>, vector<1x10xf32> -> vector<1x10xf32>
    %c0_97 = arith.constant 0 : index
    %c0_98 = arith.constant 0 : index
    %133 = vector.load %arg13[%c0_97, %c0_98] : memref<1x10xf32, #tpu.memory_space<vmem>>, vector<1x10xf32>
    %134 = arith.addf %132, %133 : vector<1x10xf32>
    %c0_99 = arith.constant 0 : index
    %c0_100 = arith.constant 0 : index
    %c0_101 = arith.constant 0 : index
    %135 = vector.load %arg14[%c0_99, %c0_100, %c0_101] : memref<1x1x10xf32, #tpu.memory_space<vmem>>, vector<1x1x10xf32>
    %136 = vector.shape_cast %135 : vector<1x1x10xf32> to vector<1x10xf32>
    %137 = vector.shape_cast %134 : vector<1x10xf32> to vector<1x1x10xf32>
    tpu.vector_store %arg14[%c0_99, %c0_100, %c0_101], %137 {strides = array<i32>} : memref<1x1x10xf32, #tpu.memory_space<vmem>>, vector<1x1x10xf32>,
    return
  }
  func.func @transform_0(%arg0: i32) -> (i32, i32, i32) {
    %c0_i32 = arith.constant 0 : i32
    %c0_i32_0 = arith.constant 0 : i32
    %c0_i32_1 = arith.constant 0 : i32
    return %arg0, %c0_i32, %c0_i32_0 : i32, i32, i32
  }
  func.func @transform_1(%arg0: i32) -> (i32, i32, i32) {
    %c0_i32 = arith.constant 0 : i32
    %c0_i32_0 = arith.constant 0 : i32
    %c0_i32_1 = arith.constant 0 : i32
    %c0_i32_2 = arith.constant 0 : i32
    return %c0_i32, %c0_i32_0, %c0_i32_1 : i32, i32, i32
  }
  func.func @transform_2(%arg0: i32) -> (i32, i32) {
    %c0_i32 = arith.constant 0 : i32
    %c0_i32_0 = arith.constant 0 : i32
    %c0_i32_1 = arith.constant 0 : i32
    return %c0_i32, %c0_i32_0 : i32, i32
  }
  func.func @transform_3(%arg0: i32) -> (i32, i32) {
    %c0_i32 = arith.constant 0 : i32
    %c0_i32_0 = arith.constant 0 : i32
    %c0_i32_1 = arith.constant 0 : i32
    return %c0_i32, %c0_i32_0 : i32, i32
  }
  func.func @transform_4(%arg0: i32) -> (i32, i32, i32) {
    %c0_i32 = arith.constant 0 : i32
    %c0_i32_0 = arith.constant 0 : i32
    %c0_i32_1 = arith.constant 0 : i32
    %c0_i32_2 = arith.constant 0 : i32
    return %c0_i32, %c0_i32_0, %c0_i32_1 : i32, i32, i32
  }
  func.func @transform_5(%arg0: i32) -> (i32, i32) {
    %c0_i32 = arith.constant 0 : i32
    %c0_i32_0 = arith.constant 0 : i32
    %c0_i32_1 = arith.constant 0 : i32
    return %c0_i32, %c0_i32_0 : i32, i32
  }
  func.func @transform_6(%arg0: i32) -> (i32, i32, i32) {
    %c0_i32 = arith.constant 0 : i32
    %c0_i32_0 = arith.constant 0 : i32
    %c0_i32_1 = arith.constant 0 : i32
    %c0_i32_2 = arith.constant 0 : i32
    return %c0_i32, %c0_i32_0, %c0_i32_1 : i32, i32, i32
  }
  func.func @transform_7(%arg0: i32) -> (i32, i32, i32) {
    %c0_i32 = arith.constant 0 : i32
    %c0_i32_0 = arith.constant 0 : i32
    %c0_i32_1 = arith.constant 0 : i32
    %c0_i32_2 = arith.constant 0 : i32
    return %c0_i32, %c0_i32_0, %c0_i32_1 : i32, i32, i32
  }
  func.func @transform_8(%arg0: i32) -> (i32, i32) {
    %c0_i32 = arith.constant 0 : i32
    %c0_i32_0 = arith.constant 0 : i32
    %c0_i32_1 = arith.constant 0 : i32
    return %c0_i32, %c0_i32_0 : i32, i32
  }
  func.func @transform_9(%arg0: i32) -> (i32, i32) {
    %c0_i32 = arith.constant 0 : i32
    %c0_i32_0 = arith.constant 0 : i32
    %c0_i32_1 = arith.constant 0 : i32
    return %c0_i32, %c0_i32_0 : i32, i32
  }
  func.func @transform_10(%arg0: i32) -> (i32, i32) {
    %c0_i32 = arith.constant 0 : i32
    %c0_i32_0 = arith.constant 0 : i32
    %c0_i32_1 = arith.constant 0 : i32
    return %c0_i32, %c0_i32_0 : i32, i32
  }
  func.func @transform_11(%arg0: i32) -> (i32, i32) {
    %c0_i32 = arith.constant 0 : i32
    %c0_i32_0 = arith.constant 0 : i32
    %c0_i32_1 = arith.constant 0 : i32
    return %c0_i32, %c0_i32_0 : i32, i32
  }
  func.func @transform_12(%arg0: i32) -> (i32, i32) {
    %c0_i32 = arith.constant 0 : i32
    %c0_i32_0 = arith.constant 0 : i32
    %c0_i32_1 = arith.constant 0 : i32
    return %c0_i32, %c0_i32_0 : i32, i32
  }
  func.func @transform_13(%arg0: i32) -> (i32, i32, i32) {
    %c0_i32 = arith.constant 0 : i32
    %c0_i32_0 = arith.constant 0 : i32
    %c0_i32_1 = arith.constant 0 : i32
    return %arg0, %c0_i32, %c0_i32_0 : i32, i32, i32
  }
}

</mosaic_0001>

<llo_original>
// kernel: lenet_forward.1
$region0: #{lenet_forward.1}
  #allocation0 [shape = 'u32[]', space=smem, size = 0x4, offset = 0x4, fixed_abs, tag = 'smem constant byte address 0x4 - core index']
  #allocation1 [shape = 'u32[144,128]{1,0:T(1,128)}', space=vmem, size = 0x12000, scoped, tag = 'internal scratch']
  %s0 = inlined_call_operand.vmem [shape: f32[2,32,96], index: 0, kind: input, shape index: {}]
  %s1 = inlined_call_operand.vmem [shape: f32[5,96,168], index: 1, kind: input, shape index: {}]
  %s2 = inlined_call_operand.vmem [shape: f32[1,168], index: 2, kind: input, shape index: {}]
  %s3 = inlined_call_operand.vmem [shape: f32[14,27], index: 3, kind: input, shape index: {}]
  %s4 = inlined_call_operand.vmem [shape: f32[5,162,160], index: 4, kind: input, shape index: {}]
  %s5 = inlined_call_operand.vmem [shape: f32[1,160], index: 5, kind: input, shape index: {}]
  %s6 = inlined_call_operand.vmem [shape: f32[5,144,120], index: 6, kind: input, shape index: {}]
  %s7 = inlined_call_operand.vmem [shape: f32[5,9,1], index: 7, kind: input, shape index: {}]
  %s8 = inlined_call_operand.vmem [shape: f32[1,120], index: 8, kind: input, shape index: {}]
  %s9 = inlined_call_operand.vmem [shape: f32[120,84], index: 9, kind: input, shape index: {}]
  %s10 = inlined_call_operand.vmem [shape: f32[1,84], index: 10, kind: input, shape index: {}]
  %s11 = inlined_call_operand.vmem [shape: f32[84,10], index: 11, kind: input, shape index: {}]
  %s12 = inlined_call_operand.vmem [shape: f32[1,10], index: 12, kind: input, shape index: {}]
  %s13 = inlined_call_operand.hbm [shape: f32[2,1,10], index: 13, kind: output, shape index: {}]
  %s14 = sld [smem:[#allocation0]]
  $region85: #{lenet_forward.1} parent=0
    _
  %s16 = ssub.s32 1, %s14
  %s17 = scalar_select 0, %s16, %s14
  $region1: #{lenet_forward.1} parent=0
    #allocation2 [shape = 'u8[1024]{0}', space=vmem, size = 0x400, scoped, tag = 'output window, operand 0']
    #allocation3 [shape = 's32[2]{0}', space=sflag, size = 0x8, scoped, tag = 'scoped memory for lenet_forward.1']
    %18 = vsyncpa [#allocation3], 0
    %s19 = scalar_lea.sflag [#allocation3], 1
    %20 = vsyncpa %s19, 0
    loop: start=0, step=1, limit=4
    $region2: #{lenet_forward.1} parent=1 // loop_pre_header
      _
    $region3: #{lenet_forward.1} parent=1 // loop_header
      %s22 = sphi 0, %s26
      %p23 = scmp.ge.s32.totalorder %s22, 4
      %s32 = sphi 0, %s34
      %s35 = sphi 0, %s32
      %s36 = sphi 0, %s35
      %s52 = sphi 0, %s36
      %s56 = sphi 0, %s56
      %s58 = sphi 0, %s56
      %s59 = sphi 0, %s58
      %s73 = sphi 0, %s59
      %s77 = sphi 0, %s77
      %s79 = sphi 0, %s77
      %s80 = sphi 0, %s79
      %s94 = sphi 0, %s80
      %s98 = sphi 0, %s98
      %s100 = sphi 0, %s98
      %s101 = sphi 0, %s100
      %s115 = sphi 0, %s101
      %s119 = sphi 0, %s119
      %s121 = sphi 0, %s119
      %s122 = sphi 0, %s121
      %s136 = sphi 0, %s122
      %s140 = sphi 0, %s140
      %s142 = sphi 0, %s140
      %s143 = sphi 0, %s142
      %s157 = sphi 0, %s143
      %s161 = sphi 0, %s161
      %s163 = sphi 0, %s161
      %s164 = sphi 0, %s163
      %s178 = sphi 0, %s164
      %s182 = sphi 0, %s182
      %s184 = sphi 0, %s182
      %s185 = sphi 0, %s184
      %s199 = sphi 0, %s185
      %s203 = sphi 0, %s203
      %s205 = sphi 0, %s203
      %s206 = sphi 0, %s205
      %s220 = sphi 0, %s206
      %s224 = sphi 0, %s224
      %s226 = sphi 0, %s224
      %s227 = sphi 0, %s226
      %s241 = sphi 0, %s227
      %s245 = sphi 0, %s245
      %s247 = sphi 0, %s245
      %s248 = sphi 0, %s247
      %s262 = sphi 0, %s248
      %s266 = sphi 0, %s266
      %s268 = sphi 0, %s266
      %s269 = sphi 0, %s268
      %s283 = sphi 0, %s269
      %s287 = sphi 0, %s287
      %s289 = sphi 0, %s287
      %s290 = sphi 0, %s289
      %s304 = sphi 0, %s290
      %s310 = sphi 0, %s312
      %s313 = sphi 0, %s310
      %s314 = sphi 0, %s313
      %s330 = sphi 0, %s314
    $region4: #{lenet_forward.1} parent=1 // loop_header_branch
      %25 = sbr.rel (%p23) target = $region8
    $region5: #{lenet_forward.1} parent=1 // loop_body
      %s27 = ssub.s32 %s22, 1
      %s28 = ssub.s32 %s22, 2
      %s29 = sadd.s32 %s22, 1
      %s30 = ssub.s32 %s22, %s29
      %p31 = scmp.eq.s32.totalorder %s30, 0
      %s33 = sadd.s32 %s32, 1
      %s34 = scalar_select %p31, %s32, %s33
      %p37 = pneg %p31
      %p38 = scmp.eq.s32.totalorder %s22, 1
      %p39 = por %p37, %p38
      %p40 = scmp.ne.s32.totalorder %s32, %s35
      %p41 = scmp.eq.s32.totalorder %s22, 0
      %p42 = por %p40, %p41
      %p43 = scmp.ne.s32.totalorder %s32, %s35
      %p44 = scmp.eq.s32.totalorder %s27, 1
      %p45 = por %p43, %p44
      %p46 = scmp.ne.s32.totalorder %s35, %s36
      %p47 = scmp.eq.s32.totalorder %s27, 0
      %p48 = por %p46, %p47
      %p49 = scmp.ne.s32.totalorder %s35, %s36
      %p50 = scmp.eq.s32.totalorder %s28, 1
      %p51 = por %p49, %p50
      %p53 = scmp.ne.s32.totalorder %s36, %s52
      %p54 = scmp.eq.s32.totalorder %s28, 0
      %p55 = por %p53, %p54
      %s57 = sadd.s32 %s56, 1
      %p60 = scmp.eq.s32.totalorder %s22, 1
      %p61 = scmp.ne.s32.totalorder %s56, %s58
      %p62 = scmp.eq.s32.totalorder %s22, 0
      %p63 = por %p61, %p62
      %p64 = scmp.ne.s32.totalorder %s56, %s58
      %p65 = scmp.eq.s32.totalorder %s27, 1
      %p66 = por %p64, %p65
      %p67 = scmp.ne.s32.totalorder %s58, %s59
      %p68 = scmp.eq.s32.totalorder %s27, 0
      %p69 = por %p67, %p68
      %p70 = scmp.ne.s32.totalorder %s58, %s59
      %p71 = scmp.eq.s32.totalorder %s28, 1
      %p72 = por %p70, %p71
      %p74 = scmp.ne.s32.totalorder %s59, %s73
      %p75 = scmp.eq.s32.totalorder %s28, 0
      %p76 = por %p74, %p75
      %s78 = sadd.s32 %s77, 1
      %p81 = scmp.eq.s32.totalorder %s22, 1
      %p82 = scmp.ne.s32.totalorder %s77, %s79
      %p83 = scmp.eq.s32.totalorder %s22, 0
      %p84 = por %p82, %p83
      %p85 = scmp.ne.s32.totalorder %s77, %s79
      %p86 = scmp.eq.s32.totalorder %s27, 1
      %p87 = por %p85, %p86
      %p88 = scmp.ne.s32.totalorder %s79, %s80
      %p89 = scmp.eq.s32.totalorder %s27, 0
      %p90 = por %p88, %p89
      %p91 = scmp.ne.s32.totalorder %s79, %s80
      %p92 = scmp.eq.s32.totalorder %s28, 1
      %p93 = por %p91, %p92
      %p95 = scmp.ne.s32.totalorder %s80, %s94
      %p96 = scmp.eq.s32.totalorder %s28, 0
      %p97 = por %p95, %p96
      %s99 = sadd.s32 %s98, 1
      %p102 = scmp.eq.s32.totalorder %s22, 1
      %p103 = scmp.ne.s32.totalorder %s98, %s100
      %p104 = scmp.eq.s32.totalorder %s22, 0
      %p105 = por %p103, %p104
      %p106 = scmp.ne.s32.totalorder %s98, %s100
      %p107 = scmp.eq.s32.totalorder %s27, 1
      %p108 = por %p106, %p107
      %p109 = scmp.ne.s32.totalorder %s100, %s101
      %p110 = scmp.eq.s32.totalorder %s27, 0
      %p111 = por %p109, %p110
      %p112 = scmp.ne.s32.totalorder %s100, %s101
      %p113 = scmp.eq.s32.totalorder %s28, 1
      %p114 = por %p112, %p113
      %p116 = scmp.ne.s32.totalorder %s101, %s115
      %p117 = scmp.eq.s32.totalorder %s28, 0
      %p118 = por %p116, %p117
      %s120 = sadd.s32 %s119, 1
      %p123 = scmp.eq.s32.totalorder %s22, 1
      %p124 = scmp.ne.s32.totalorder %s119, %s121
      %p125 = scmp.eq.s32.totalorder %s22, 0
      %p126 = por %p124, %p125
      %p127 = scmp.ne.s32.totalorder %s119, %s121
      %p128 = scmp.eq.s32.totalorder %s27, 1
      %p129 = por %p127, %p128
      %p130 = scmp.ne.s32.totalorder %s121, %s122
      %p131 = scmp.eq.s32.totalorder %s27, 0
      %p132 = por %p130, %p131
      %p133 = scmp.ne.s32.totalorder %s121, %s122
      %p134 = scmp.eq.s32.totalorder %s28, 1
      %p135 = por %p133, %p134
      %p137 = scmp.ne.s32.totalorder %s122, %s136
      %p138 = scmp.eq.s32.totalorder %s28, 0
      %p139 = por %p137, %p138
      %s141 = sadd.s32 %s140, 1
      %p144 = scmp.eq.s32.totalorder %s22, 1
      %p145 = scmp.ne.s32.totalorder %s140, %s142
      %p146 = scmp.eq.s32.totalorder %s22, 0
      %p147 = por %p145, %p146
      %p148 = scmp.ne.s32.totalorder %s140, %s142
      %p149 = scmp.eq.s32.totalorder %s27, 1
      %p150 = por %p148, %p149
      %p151 = scmp.ne.s32.totalorder %s142, %s143
      %p152 = scmp.eq.s32.totalorder %s27, 0
      %p153 = por %p151, %p152
      %p154 = scmp.ne.s32.totalorder %s142, %s143
      %p155 = scmp.eq.s32.totalorder %s28, 1
      %p156 = por %p154, %p155
      %p158 = scmp.ne.s32.totalorder %s143, %s157
      %p159 = scmp.eq.s32.totalorder %s28, 0
      %p160 = por %p158, %p159
      %s162 = sadd.s32 %s161, 1
      %p165 = scmp.eq.s32.totalorder %s22, 1
      %p166 = scmp.ne.s32.totalorder %s161, %s163
      %p167 = scmp.eq.s32.totalorder %s22, 0
      %p168 = por %p166, %p167
      %p169 = scmp.ne.s32.totalorder %s161, %s163
      %p170 = scmp.eq.s32.totalorder %s27, 1
      %p171 = por %p169, %p170
      %p172 = scmp.ne.s32.totalorder %s163, %s164
      %p173 = scmp.eq.s32.totalorder %s27, 0
      %p174 = por %p172, %p173
      %p175 = scmp.ne.s32.totalorder %s163, %s164
      %p176 = scmp.eq.s32.totalorder %s28, 1
      %p177 = por %p175, %p176
      %p179 = scmp.ne.s32.totalorder %s164, %s178
      %p180 = scmp.eq.s32.totalorder %s28, 0
      %p181 = por %p179, %p180
      %s183 = sadd.s32 %s182, 1
      %p186 = scmp.eq.s32.totalorder %s22, 1
      %p187 = scmp.ne.s32.totalorder %s182, %s184
      %p188 = scmp.eq.s32.totalorder %s22, 0
      %p189 = por %p187, %p188
      %p190 = scmp.ne.s32.totalorder %s182, %s184
      %p191 = scmp.eq.s32.totalorder %s27, 1
      %p192 = por %p190, %p191
      %p193 = scmp.ne.s32.totalorder %s184, %s185
      %p194 = scmp.eq.s32.totalorder %s27, 0
      %p195 = por %p193, %p194
      %p196 = scmp.ne.s32.totalorder %s184, %s185
      %p197 = scmp.eq.s32.totalorder %s28, 1
      %p198 = por %p196, %p197
      %p200 = scmp.ne.s32.totalorder %s185, %s199
      %p201 = scmp.eq.s32.totalorder %s28, 0
      %p202 = por %p200, %p201
      %s204 = sadd.s32 %s203, 1
      %p207 = scmp.eq.s32.totalorder %s22, 1
      %p208 = scmp.ne.s32.totalorder %s203, %s205
      %p209 = scmp.eq.s32.totalorder %s22, 0
      %p210 = por %p208, %p209
      %p211 = scmp.ne.s32.totalorder %s203, %s205
      %p212 = scmp.eq.s32.totalorder %s27, 1
      %p213 = por %p211, %p212
      %p214 = scmp.ne.s32.totalorder %s205, %s206
      %p215 = scmp.eq.s32.totalorder %s27, 0
      %p216 = por %p214, %p215
      %p217 = scmp.ne.s32.totalorder %s205, %s206
      %p218 = scmp.eq.s32.totalorder %s28, 1
      %p219 = por %p217, %p218
      %p221 = scmp.ne.s32.totalorder %s206, %s220
      %p222 = scmp.eq.s32.totalorder %s28, 0
      %p223 = por %p221, %p222
      %s225 = sadd.s32 %s224, 1
      %p228 = scmp.eq.s32.totalorder %s22, 1
      %p229 = scmp.ne.s32.totalorder %s224, %s226
      %p230 = scmp.eq.s32.totalorder %s22, 0
      %p231 = por %p229, %p230
      %p232 = scmp.ne.s32.totalorder %s224, %s226
      %p233 = scmp.eq.s32.totalorder %s27, 1
      %p234 = por %p232, %p233
      %p235 = scmp.ne.s32.totalorder %s226, %s227
      %p236 = scmp.eq.s32.totalorder %s27, 0
      %p237 = por %p235, %p236
      %p238 = scmp.ne.s32.totalorder %s226, %s227
      %p239 = scmp.eq.s32.totalorder %s28, 1
      %p240 = por %p238, %p239
      %p242 = scmp.ne.s32.totalorder %s227, %s241
      %p243 = scmp.eq.s32.totalorder %s28, 0
      %p244 = por %p242, %p243
      %s246 = sadd.s32 %s245, 1
      %p249 = scmp.eq.s32.totalorder %s22, 1
      %p250 = scmp.ne.s32.totalorder %s245, %s247
      %p251 = scmp.eq.s32.totalorder %s22, 0
      %p252 = por %p250, %p251
      %p253 = scmp.ne.s32.totalorder %s245, %s247
      %p254 = scmp.eq.s32.totalorder %s27, 1
      %p255 = por %p253, %p254
      %p256 = scmp.ne.s32.totalorder %s247, %s248
      %p257 = scmp.eq.s32.totalorder %s27, 0
      %p258 = por %p256, %p257
      %p259 = scmp.ne.s32.totalorder %s247, %s248
      %p260 = scmp.eq.s32.totalorder %s28, 1
      %p261 = por %p259, %p260
      %p263 = scmp.ne.s32.totalorder %s248, %s262
      %p264 = scmp.eq.s32.totalorder %s28, 0
      %p265 = por %p263, %p264
      %s267 = sadd.s32 %s266, 1
      %p270 = scmp.eq.s32.totalorder %s22, 1
      %p271 = scmp.ne.s32.totalorder %s266, %s268
      %p272 = scmp.eq.s32.totalorder %s22, 0
      %p273 = por %p271, %p272
      %p274 = scmp.ne.s32.totalorder %s266, %s268
      %p275 = scmp.eq.s32.totalorder %s27, 1
      %p276 = por %p274, %p275
      %p277 = scmp.ne.s32.totalorder %s268, %s269
      %p278 = scmp.eq.s32.totalorder %s27, 0
      %p279 = por %p277, %p278
      %p280 = scmp.ne.s32.totalorder %s268, %s269
      %p281 = scmp.eq.s32.totalorder %s28, 1
      %p282 = por %p280, %p281
      %p284 = scmp.ne.s32.totalorder %s269, %s283
      %p285 = scmp.eq.s32.totalorder %s28, 0
      %p286 = por %p284, %p285
      %s288 = sadd.s32 %s287, 1
      %p291 = scmp.eq.s32.totalorder %s22, 1
      %p292 = scmp.ne.s32.totalorder %s287, %s289
      %p293 = scmp.eq.s32.totalorder %s22, 0
      %p294 = por %p292, %p293
      %p295 = scmp.ne.s32.totalorder %s287, %s289
      %p296 = scmp.eq.s32.totalorder %s27, 1
      %p297 = por %p295, %p296
      %p298 = scmp.ne.s32.totalorder %s289, %s290
      %p299 = scmp.eq.s32.totalorder %s27, 0
      %p300 = por %p298, %p299
      %p301 = scmp.ne.s32.totalorder %s289, %s290
      %p302 = scmp.eq.s32.totalorder %s28, 1
      %p303 = por %p301, %p302
      %p305 = scmp.ne.s32.totalorder %s290, %s304
      %p306 = scmp.eq.s32.totalorder %s28, 0
      %p307 = por %p305, %p306
      %s308 = ssub.s32 %s22, %s29
      %p309 = scmp.eq.s32.totalorder %s308, 0
      %s311 = sadd.s32 %s310, 1
      %s312 = scalar_select %p309, %s310, %s311
      %p315 = pneg %p309
      %p316 = scmp.eq.s32.totalorder %s22, 1
      %p317 = por %p315, %p316
      %p318 = scmp.ne.s32.totalorder %s310, %s313
      %p319 = scmp.eq.s32.totalorder %s22, 0
      %p320 = por %p318, %p319
      %p321 = scmp.ne.s32.totalorder %s310, %s313
      %p322 = scmp.eq.s32.totalorder %s27, 1
      %p323 = por %p321, %p322
      %p324 = scmp.ne.s32.totalorder %s313, %s314
      %p325 = scmp.eq.s32.totalorder %s27, 0
      %p326 = por %p324, %p325
      %p327 = scmp.ne.s32.totalorder %s313, %s314
      %p328 = scmp.eq.s32.totalorder %s28, 1
      %p329 = por %p327, %p328
      %p331 = scmp.ne.s32.totalorder %s314, %s330
      %p332 = scmp.eq.s32.totalorder %s28, 0
      %p333 = por %p331, %p332
      %p334 = scmp.le.s32.totalorder 1, %s22
      %p335 = scmp.lt.s32.totalorder %s22, 3
      %p336 = pnand %p334, %p335
      %p337 = pneg %p336
      // Predicated region
      $region9: #{lenet_forward.1} parent=5 // pred_check
        _
      $region10: #{lenet_forward.1} parent=5 // pred_check_branch
        %339 = sbr.rel (%p336) target = $region12
      $region11: #{lenet_forward.1} parent=5 // pred_region
        %s340 = ssub.s32 %s22, 1
        // Predicated region
        $region13: #{lenet_forward.1} parent=11 // pred_check
          %p341 = pneg %p69
        $region14: #{lenet_forward.1} parent=11 // pred_check_branch
          %343 = sbr.rel (%p341) target = $region16
        $region15: #{lenet_forward.1} parent=11 // pred_region
          _
        $region16: #{lenet_forward.1} parent=11 // pred_fallthru
          _
        // Predicated region
        $region17: #{lenet_forward.1} parent=11 // pred_check
          %p344 = pneg %p90
        $region18: #{lenet_forward.1} parent=11 // pred_check_branch
          %346 = sbr.rel (%p344) target = $region20
        $region19: #{lenet_forward.1} parent=11 // pred_region
          _
        $region20: #{lenet_forward.1} parent=11 // pred_fallthru
          _
        // Predicated region
        $region21: #{lenet_forward.1} parent=11 // pred_check
          %p347 = pneg %p111
        $region22: #{lenet_forward.1} parent=11 // pred_check_branch
          %349 = sbr.rel (%p347) target = $region24
        $region23: #{lenet_forward.1} parent=11 // pred_region
          _
        $region24: #{lenet_forward.1} parent=11 // pred_fallthru
          _
        // Predicated region
        $region25: #{lenet_forward.1} parent=11 // pred_check
          %p350 = pneg %p132
        $region26: #{lenet_forward.1} parent=11 // pred_check_branch
          %352 = sbr.rel (%p350) target = $region28
        $region27: #{lenet_forward.1} parent=11 // pred_region
          _
        $region28: #{lenet_forward.1} parent=11 // pred_fallthru
          _
        // Predicated region
        $region29: #{lenet_forward.1} parent=11 // pred_check
          %p353 = pneg %p153
        $region30: #{lenet_forward.1} parent=11 // pred_check_branch
          %355 = sbr.rel (%p353) target = $region32
        $region31: #{lenet_forward.1} parent=11 // pred_region
          _
        $region32: #{lenet_forward.1} parent=11 // pred_fallthru
          _
        // Predicated region
        $region33: #{lenet_forward.1} parent=11 // pred_check
          %p356 = pneg %p174
        $region34: #{lenet_forward.1} parent=11 // pred_check_branch
          %358 = sbr.rel (%p356) target = $region36
        $region35: #{lenet_forward.1} parent=11 // pred_region
          _
        $region36: #{lenet_forward.1} parent=11 // pred_fallthru
          _
        // Predicated region
        $region37: #{lenet_forward.1} parent=11 // pred_check
          %p359 = pneg %p195
        $region38: #{lenet_forward.1} parent=11 // pred_check_branch
          %361 = sbr.rel (%p359) target = $region40
        $region39: #{lenet_forward.1} parent=11 // pred_region
          _
        $region40: #{lenet_forward.1} parent=11 // pred_fallthru
          _
        // Predicated region
        $region41: #{lenet_forward.1} parent=11 // pred_check
          %p362 = pneg %p216
        $region42: #{lenet_forward.1} parent=11 // pred_check_branch
          %364 = sbr.rel (%p362) target = $region44
        $region43: #{lenet_forward.1} parent=11 // pred_region
          _
        $region44: #{lenet_forward.1} parent=11 // pred_fallthru
          _
        // Predicated region
        $region45: #{lenet_forward.1} parent=11 // pred_check
          %p365 = pneg %p237
        $region46: #{lenet_forward.1} parent=11 // pred_check_branch
          %367 = sbr.rel (%p365) target = $region48
        $region47: #{lenet_forward.1} parent=11 // pred_region
          _
        $region48: #{lenet_forward.1} parent=11 // pred_fallthru
          _
        // Predicated region
        $region49: #{lenet_forward.1} parent=11 // pred_check
          %p368 = pneg %p258
        $region50: #{lenet_forward.1} parent=11 // pred_check_branch
          %370 = sbr.rel (%p368) target = $region52
        $region51: #{lenet_forward.1} parent=11 // pred_region
          _
        $region52: #{lenet_forward.1} parent=11 // pred_fallthru
          _
        // Predicated region
        $region53: #{lenet_forward.1} parent=11 // pred_check
          %p371 = pneg %p279
        $region54: #{lenet_forward.1} parent=11 // pred_check_branch
          %373 = sbr.rel (%p371) target = $region56
        $region55: #{lenet_forward.1} parent=11 // pred_region
          _
        $region56: #{lenet_forward.1} parent=11 // pred_fallthru
          _
        // Predicated region
        $region57: #{lenet_forward.1} parent=11 // pred_check
          %p374 = pneg %p300
        $region58: #{lenet_forward.1} parent=11 // pred_check_branch
          %376 = sbr.rel (%p374) target = $region60
        $region59: #{lenet_forward.1} parent=11 // pred_region
          _
        $region60: #{lenet_forward.1} parent=11 // pred_fallthru
          _
      $region12: #{lenet_forward.1} parent=5 // pred_fallthru
        _
      %p377 = scmp.lt.s32.totalorder %s22, 2
      // Predicated region
      $region61: #{lenet_forward.1} parent=5 // pred_check
        %p378 = pneg %p377
      $region62: #{lenet_forward.1} parent=5 // pred_check_branch
        %380 = sbr.rel (%p378) target = $region64
      $region63: #{lenet_forward.1} parent=5 // pred_region
        // Predicated region
        $region65: #{lenet_forward.1} parent=63 // pred_check
          %p381 = pneg %p42
        $region66: #{lenet_forward.1} parent=63 // pred_check_branch
          %383 = sbr.rel (%p381) target = $region68
        $region67: #{lenet_forward.1} parent=63 // pred_region
          %p384 = scmp.lt.s32.totalorder %s22, 1
          %s385 = scalar_select %p384, %s22, 1
          %s386 = smul.addr %s385, 4
          %s387 = smul.addr %s386, 8
          %s388 = scalar_lea.vmem %s0, %s387
        $region68: #{lenet_forward.1} parent=63 // pred_fallthru
          _
      $region64: #{lenet_forward.1} parent=5 // pred_fallthru
        _
      %p389 = scmp.le.s32.totalorder 1, %s22
      %p390 = scmp.lt.s32.totalorder %s22, 3
      %p391 = pnand %p389, %p390
      %p392 = pneg %p391
      // Predicated region
      $region69: #{lenet_forward.1} parent=5 // pred_check
        _
      $region70: #{lenet_forward.1} parent=5 // pred_check_branch
        %394 = sbr.rel (%p391) target = $region72
      $region71: #{lenet_forward.1} parent=5 // pred_region
        %s395 = ssub.s32 %s22, 1
        %p396 = scmp.lt.s32.totalorder %s27, 1
        %s397 = scalar_select %p396, %s27, 1
        %s398 = smul.addr %s397, 4
        %s399 = smul.addr %s398, 8
        %s400 = scalar_lea.vmem %s0, %s399
        %p401 = pneg %p48
        %p402 = pneg %p45
        %p403 = pneg %p69
        %p404 = pneg %p66
        %p405 = pneg %p90
        %p406 = pneg %p87
        %p407 = pneg %p111
        %p408 = pneg %p108
        %p409 = pneg %p132
        %p410 = pneg %p129
        %p411 = pneg %p153
        %p412 = pneg %p150
        %p413 = pneg %p174
        %p414 = pneg %p171
        %p415 = pneg %p195
        %p416 = pneg %p192
        %p417 = pneg %p216
        %p418 = pneg %p213
        %p419 = pneg %p237
        %p420 = pneg %p234
        %p421 = pneg %p258
        %p422 = pneg %p255
        %p423 = pneg %p279
        %p424 = pneg %p276
        %p425 = pneg %p300
        %p426 = pneg %p297
        %p427 = pneg %p326
        %p428 = pneg %p323
        %s429 = sand.u32 %s313, 1
        %s430 = scalar_lea.sflag [#allocation3], %s429
        %s431 = sand.u32 %s313, 1
        %s432 = scalar_lea.vmem [#allocation2], %s431
        %p433 = scmp.lt.s32.totalorder %s27, 1
        %s434 = scalar_select %p433, %s27, 1
        %s435 = smul.addr %s434, 4
        %s436 = smul.addr %s435, 8
        %s437 = scalar_lea.vmem %s0, %s436
        %v438 = vld [vmem:[%s437] sm:$0xff]
        %v439 = vld [vmem:[%s437 + $0x8] sm:$0xff]
        %v440 = vld [vmem:[%s437 + $0x10] sm:$0xff]
        %v441 = vld [vmem:[%s437 + $0x18] sm:$0xff]
        %v442 = vld [vmem:[%s1] sm:$0xff]
        %v443 = vld [vmem:[%s1 + $0x8] sm:$0xff]
        %v444 = vld [vmem:[%s1 + $0x10] sm:$0xff]
        %v445 = vld [vmem:[%s1 + $0x18] sm:$0xff]
        %v446 = vld [vmem:[%s1 + $0x20] sm:$0xff]
        %v447 = vld [vmem:[%s1 + $0x28] sm:$0xff]
        %v448 = vld [vmem:[%s1 + $0x30] sm:$0xff]
        %v449 = vld [vmem:[%s1 + $0x38] sm:$0xff]
        %v450 = vld [vmem:[%s1 + $0x40] sm:$0xff]
        %v451 = vld [vmem:[%s1 + $0x48] sm:$0xff]
        %v452 = vld [vmem:[%s1 + $0x50] sm:$0xff]
        %v453 = vld [vmem:[%s1 + $0x58] sm:$0xff]
        %v454 = vld [vmem:[%s1 + $0x60] sm:$0xff]
        %v455 = vld [vmem:[%s1 + $0x68] sm:$0xff]
        %v456 = vld [vmem:[%s1 + $0x70] sm:$0xff]
        %v457 = vld [vmem:[%s1 + $0x78] sm:$0xff]
        %v458 = vld [vmem:[%s1 + $0x80] sm:$0xff]
        %v459 = vld [vmem:[%s1 + $0x88] sm:$0xff]
        %v460 = vld [vmem:[%s1 + $0x90] sm:$0xff]
        %v461 = vld [vmem:[%s1 + $0x98] sm:$0xff]
        %v462 = vld [vmem:[%s1 + $0xa0] sm:$0xff]
        %v463 = vld [vmem:[%s1 + $0xa8] sm:$0xff]
        %v464 = vld [vmem:[%s1 + $0xb0] sm:$0xff]
        %v465 = vld [vmem:[%s1 + $0xb8] sm:$0xff]
        %s466 = scalar_lea.vmem %s1, 192
        %v467 = vld [vmem:[%s466] sm:$0xff]
        %v468 = vld [vmem:[%s466 + $0x8] sm:$0xff]
        %v469 = vld [vmem:[%s466 + $0x10] sm:$0xff]
        %v470 = vld [vmem:[%s466 + $0x18] sm:$0xff]
        %v471 = vld [vmem:[%s466 + $0x20] sm:$0xff]
        %v472 = vld [vmem:[%s466 + $0x28] sm:$0xff]
        %v473 = vld [vmem:[%s466 + $0x30] sm:$0xff]
        %v474 = vld [vmem:[%s466 + $0x38] sm:$0xff]
        %v475 = vld [vmem:[%s466 + $0x40] sm:$0xff]
        %v476 = vld [vmem:[%s466 + $0x48] sm:$0xff]
        %v477 = vld [vmem:[%s466 + $0x50] sm:$0xff]
        %v478 = vld [vmem:[%s466 + $0x58] sm:$0xff]
        %v479 = vld [vmem:[%s466 + $0x60] sm:$0xff]
        %v480 = vld [vmem:[%s466 + $0x68] sm:$0xff]
        %v481 = vld [vmem:[%s466 + $0x70] sm:$0xff]
        %v482 = vld [vmem:[%s466 + $0x78] sm:$0xff]
        %v483 = vld [vmem:[%s466 + $0x80] sm:$0xff]
        %v484 = vld [vmem:[%s466 + $0x88] sm:$0xff]
        %v485 = vld [vmem:[%s466 + $0x90] sm:$0xff]
        %v486 = vld [vmem:[%s466 + $0x98] sm:$0xff]
        %v487 = vld [vmem:[%s466 + $0xa0] sm:$0xff]
        %v488 = vld [vmem:[%s466 + $0xa8] sm:$0xff]
        %v489 = vld [vmem:[%s466 + $0xb0] sm:$0xff]
        %v490 = vld [vmem:[%s466 + $0xb8] sm:$0xff]
        %vm495 = vcmask 1046528
        %v496 = vrot.slane %v438, 1
        %v497 = vrot.slane %v439, 1
        %v498 = vsel %vm495, %v496, %v497
        %v499 = vrot.slane %v440, 1
        %v500 = vsel %vm495, %v497, %v499
        %v501 = vrot.slane %v441, 1
        %v502 = vsel %vm495, %v499, %v501
        %vm503 = vcmask 785408
        %v504 = vsel %vm503, %v498, 0
        %v506 = vsel %vm503, %v500, 0
        %v508 = vsel %vm503, %v502, 0
        %v510 = vsel %vm503, %v501, 0
        %512 = vmatprep.subr.mxu0 0.0
        %513 = vmatpush1.msra.mxu0 0.0
        %514 = vmatprep.subr.mxu0 0.0
        %515 = vmatpush1.msra.mxu0 0.0
        %516 = vmatprep.subr.mxu0 0.0
        %517 = vmatpush1.msra.mxu0 0.0
        %518 = vmatprep.subr.mxu0 0.0
        %519 = vmatpush1.msra.mxu0 0.0
        %520 = vmatprep.subr.mxu0 %v490
        %521 = vmatpush1.msra.mxu0 %v489
        %522 = vmatprep.subr.mxu0 %v488
        %523 = vmatpush1.msra.mxu0 %v487
        %524 = vmatprep.subr.mxu0 %v486
        %525 = vmatpush1.msra.mxu0 %v485
        %526 = vmatprep.subr.mxu0 %v484
        %527 = vmatpush1.msra.mxu0 %v483
        %528 = vmatprep.subr.mxu0 %v482
        %529 = vmatpush1.msra.mxu0 %v481
        %530 = vmatprep.subr.mxu0 %v480
        %531 = vmatpush1.msra.mxu0 %v479
        %532 = vmatprep.subr.mxu0 %v478
        %533 = vmatpush1.msra.mxu0 %v477
        %534 = vmatprep.subr.mxu0 %v476
        %535 = vmatpush1.msra.mxu0 %v475
        %536 = vmatprep.subr.mxu0 %v474
        %537 = vmatpush1.msra.mxu0 %v473
        %538 = vmatprep.subr.mxu0 %v472
        %539 = vmatpush1.msra.mxu0 %v471
        %540 = vmatprep.subr.mxu0 %v470
        %541 = vmatpush1.msra.mxu0 %v469
        %542 = vmatprep.subr.mxu0 %v468
        %543 = vmatpush1.msra.mxu0 %v467
        %544 = vmatprep.subr.mxu0 0.0
        %545 = vmatpush2.msra.mxu0 0.0
        %546 = vmatprep.subr.mxu0 0.0
        %547 = vmatpush2.msra.mxu0 0.0
        %548 = vmatprep.subr.mxu0 0.0
        %549 = vmatpush2.msra.mxu0 0.0
        %550 = vmatprep.subr.mxu0 0.0
        %551 = vmatpush2.msra.mxu0 0.0
        %552 = vmatprep.subr.mxu0 0.0
        %553 = vmatpush2.msra.mxu0 0.0
        %554 = vmatprep.subr.mxu0 0.0
        %555 = vmatpush2.msra.mxu0 0.0
        %556 = vmatprep.subr.mxu0 0.0
        %557 = vmatpush2.msra.mxu0 0.0
        %558 = vmatprep.subr.mxu0 0.0
        %559 = vmatpush2.msra.mxu0 0.0
        %560 = vmatprep.subr.mxu0 0.0
        %561 = vmatpush2.msra.mxu0 0.0
        %562 = vmatprep.subr.mxu0 0.0
        %563 = vmatpush2.msra.mxu0 0.0
        %564 = vmatprep.subr.mxu0 0.0
        %565 = vmatpush2.msra.mxu0 0.0
        %566 = vmatprep.subr.mxu0 0.0
        %567 = vmatpush2.msra.mxu0 0.0
        %568 = vmatprep.subr.mxu0 0.0
        %569 = vmatpush2.msra.mxu0 0.0
        %570 = vmatprep.subr.mxu0 0.0
        %571 = vmatpush2.msra.mxu0 0.0
        %572 = vmatprep.subr.mxu0 0.0
        %573 = vmatpush2.msra.mxu0 0.0
        %574 = vmatprep.subr.mxu0 0.0
        %575 = vmatpush2.msra.mxu0 0.0
        %576 = vmatprep.mubr.f32.mxu0 0.0
        %577 = vmatmul.mubr.f32.gmra.mxu0 %v504
        %v578 = vpop.f32.mrf.mxu0
        %v579 = vadd.f32 0.0, %v578
        %v580 = vpop.f32.mrf.mxu0
        %v581 = vadd.f32 0.0, %v580
        %582 = vmatprep.mubr.f32.mxu0 0.0
        %583 = vmatmul.mubr.f32.gmra.mxu0 %v506
        %v584 = vpop.f32.mrf.mxu0
        %v585 = vadd.f32 0.0, %v584
        %v586 = vpop.f32.mrf.mxu0
        %v587 = vadd.f32 0.0, %v586
        %588 = vmatprep.mubr.f32.mxu0 0.0
        %589 = vmatmul.mubr.f32.gmra.mxu0 %v508
        %v590 = vpop.f32.mrf.mxu0
        %v591 = vadd.f32 0.0, %v590
        %v592 = vpop.f32.mrf.mxu0
        %v593 = vadd.f32 0.0, %v592
        %594 = vmatprep.mubr.f32.mxu0 0.0
        %595 = vmatmul.mubr.f32.gmra.mxu0 %v510
        %v596 = vpop.f32.mrf.mxu0
        %v597 = vadd.f32 0.0, %v596
        %v598 = vpop.f32.mrf.mxu0
        %v599 = vadd.f32 0.0, %v598
        %600 = vdwg.mxu0
        %v601 = vsel %vm503, %v438, 0
        %v603 = vsel %vm503, %v439, 0
        %v605 = vsel %vm503, %v440, 0
        %v607 = vsel %vm503, %v441, 0
        %609 = vmatprep.subr.mxu0 0.0
        %610 = vmatpush1.msra.mxu0 0.0
        %611 = vmatprep.subr.mxu0 0.0
        %612 = vmatpush1.msra.mxu0 0.0
        %613 = vmatprep.subr.mxu0 0.0
        %614 = vmatpush1.msra.mxu0 0.0
        %615 = vmatprep.subr.mxu0 0.0
        %616 = vmatpush1.msra.mxu0 0.0
        %617 = vmatprep.subr.mxu0 %v465
        %618 = vmatpush1.msra.mxu0 %v464
        %619 = vmatprep.subr.mxu0 %v463
        %620 = vmatpush1.msra.mxu0 %v462
        %621 = vmatprep.subr.mxu0 %v461
        %622 = vmatpush1.msra.mxu0 %v460
        %623 = vmatprep.subr.mxu0 %v459
        %624 = vmatpush1.msra.mxu0 %v458
        %625 = vmatprep.subr.mxu0 %v457
        %626 = vmatpush1.msra.mxu0 %v456
        %627 = vmatprep.subr.mxu0 %v455
        %628 = vmatpush1.msra.mxu0 %v454
        %629 = vmatprep.subr.mxu0 %v453
        %630 = vmatpush1.msra.mxu0 %v452
        %631 = vmatprep.subr.mxu0 %v451
        %632 = vmatpush1.msra.mxu0 %v450
        %633 = vmatprep.subr.mxu0 %v449
        %634 = vmatpush1.msra.mxu0 %v448
        %635 = vmatprep.subr.mxu0 %v447
        %636 = vmatpush1.msra.mxu0 %v446
        %637 = vmatprep.subr.mxu0 %v445
        %638 = vmatpush1.msra.mxu0 %v444
        %639 = vmatprep.subr.mxu0 %v443
        %640 = vmatpush1.msra.mxu0 %v442
        %641 = vmatprep.subr.mxu0 0.0
        %642 = vmatpush2.msra.mxu0 0.0
        %643 = vmatprep.subr.mxu0 0.0
        %644 = vmatpush2.msra.mxu0 0.0
        %645 = vmatprep.subr.mxu0 0.0
        %646 = vmatpush2.msra.mxu0 0.0
        %647 = vmatprep.subr.mxu0 0.0
        %648 = vmatpush2.msra.mxu0 0.0
        %649 = vmatprep.subr.mxu0 0.0
        %650 = vmatpush2.msra.mxu0 0.0
        %651 = vmatprep.subr.mxu0 0.0
        %652 = vmatpush2.msra.mxu0 0.0
        %653 = vmatprep.subr.mxu0 0.0
        %654 = vmatpush2.msra.mxu0 0.0
        %655 = vmatprep.subr.mxu0 0.0
        %656 = vmatpush2.msra.mxu0 0.0
        %657 = vmatprep.subr.mxu0 0.0
        %658 = vmatpush2.msra.mxu0 0.0
        %659 = vmatprep.subr.mxu0 0.0
        %660 = vmatpush2.msra.mxu0 0.0
        %661 = vmatprep.subr.mxu0 0.0
        %662 = vmatpush2.msra.mxu0 0.0
        %663 = vmatprep.subr.mxu0 0.0
        %664 = vmatpush2.msra.mxu0 0.0
        %665 = vmatprep.subr.mxu0 0.0
        %666 = vmatpush2.msra.mxu0 0.0
        %667 = vmatprep.subr.mxu0 0.0
        %668 = vmatpush2.msra.mxu0 0.0
        %669 = vmatprep.subr.mxu0 0.0
        %670 = vmatpush2.msra.mxu0 0.0
        %671 = vmatprep.subr.mxu0 0.0
        %672 = vmatpush2.msra.mxu0 0.0
        %673 = vmatprep.mubr.f32.mxu0 0.0
        %674 = vmatmul.mubr.f32.gmra.mxu0 %v601
        %v675 = vpop.f32.mrf.mxu0
        %v676 = vadd.f32 %v579, %v675
        %v677 = vpop.f32.mrf.mxu0
        %v678 = vadd.f32 %v581, %v677
        %679 = vmatprep.mubr.f32.mxu0 0.0
        %680 = vmatmul.mubr.f32.gmra.mxu0 %v603
        %v681 = vpop.f32.mrf.mxu0
        %v682 = vadd.f32 %v585, %v681
        %v683 = vpop.f32.mrf.mxu0
        %v684 = vadd.f32 %v587, %v683
        %685 = vmatprep.mubr.f32.mxu0 0.0
        %686 = vmatmul.mubr.f32.gmra.mxu0 %v605
        %v687 = vpop.f32.mrf.mxu0
        %v688 = vadd.f32 %v591, %v687
        %v689 = vpop.f32.mrf.mxu0
        %v690 = vadd.f32 %v593, %v689
        %691 = vmatprep.mubr.f32.mxu0 0.0
        %692 = vmatmul.mubr.f32.gmra.mxu0 %v607
        %v693 = vpop.f32.mrf.mxu0
        %v694 = vadd.f32 %v597, %v693
        %v695 = vpop.f32.mrf.mxu0
        %v696 = vadd.f32 %v599, %v695
        %697 = vdwg.mxu0
        %s698 = scalar_lea.vmem %s1, 384
        %v699 = vld [vmem:[%s698] sm:$0xff]
        %v700 = vld [vmem:[%s698 + $0x8] sm:$0xff]
        %v701 = vld [vmem:[%s698 + $0x10] sm:$0xff]
        %v702 = vld [vmem:[%s698 + $0x18] sm:$0xff]
        %v703 = vld [vmem:[%s698 + $0x20] sm:$0xff]
        %v704 = vld [vmem:[%s698 + $0x28] sm:$0xff]
        %v705 = vld [vmem:[%s698 + $0x30] sm:$0xff]
        %v706 = vld [vmem:[%s698 + $0x38] sm:$0xff]
        %v707 = vld [vmem:[%s698 + $0x40] sm:$0xff]
        %v708 = vld [vmem:[%s698 + $0x48] sm:$0xff]
        %v709 = vld [vmem:[%s698 + $0x50] sm:$0xff]
        %v710 = vld [vmem:[%s698 + $0x58] sm:$0xff]
        %v711 = vld [vmem:[%s698 + $0x60] sm:$0xff]
        %v712 = vld [vmem:[%s698 + $0x68] sm:$0xff]
        %v713 = vld [vmem:[%s698 + $0x70] sm:$0xff]
        %v714 = vld [vmem:[%s698 + $0x78] sm:$0xff]
        %v715 = vld [vmem:[%s698 + $0x80] sm:$0xff]
        %v716 = vld [vmem:[%s698 + $0x88] sm:$0xff]
        %v717 = vld [vmem:[%s698 + $0x90] sm:$0xff]
        %v718 = vld [vmem:[%s698 + $0x98] sm:$0xff]
        %v719 = vld [vmem:[%s698 + $0xa0] sm:$0xff]
        %v720 = vld [vmem:[%s698 + $0xa8] sm:$0xff]
        %v721 = vld [vmem:[%s698 + $0xb0] sm:$0xff]
        %v722 = vld [vmem:[%s698 + $0xb8] sm:$0xff]
        %vm723 = vcmask 1045504
        %v724 = vrot.slane %v438, 2
        %v725 = vrot.slane %v439, 2
        %v726 = vsel %vm723, %v724, %v725
        %v727 = vrot.slane %v440, 2
        %v728 = vsel %vm723, %v725, %v727
        %v729 = vrot.slane %v441, 2
        %v730 = vsel %vm723, %v727, %v729
        %v731 = vsel %vm503, %v726, 0
        %v733 = vsel %vm503, %v728, 0
        %v735 = vsel %vm503, %v730, 0
        %v737 = vsel %vm503, %v729, 0
        %739 = vmatprep.subr.mxu0 0.0
        %740 = vmatpush1.msra.mxu0 0.0
        %741 = vmatprep.subr.mxu0 0.0
        %742 = vmatpush1.msra.mxu0 0.0
        %743 = vmatprep.subr.mxu0 0.0
        %744 = vmatpush1.msra.mxu0 0.0
        %745 = vmatprep.subr.mxu0 0.0
        %746 = vmatpush1.msra.mxu0 0.0
        %747 = vmatprep.subr.mxu0 %v722
        %748 = vmatpush1.msra.mxu0 %v721
        %749 = vmatprep.subr.mxu0 %v720
        %750 = vmatpush1.msra.mxu0 %v719
        %751 = vmatprep.subr.mxu0 %v718
        %752 = vmatpush1.msra.mxu0 %v717
        %753 = vmatprep.subr.mxu0 %v716
        %754 = vmatpush1.msra.mxu0 %v715
        %755 = vmatprep.subr.mxu0 %v714
        %756 = vmatpush1.msra.mxu0 %v713
        %757 = vmatprep.subr.mxu0 %v712
        %758 = vmatpush1.msra.mxu0 %v711
        %759 = vmatprep.subr.mxu0 %v710
        %760 = vmatpush1.msra.mxu0 %v709
        %761 = vmatprep.subr.mxu0 %v708
        %762 = vmatpush1.msra.mxu0 %v707
        %763 = vmatprep.subr.mxu0 %v706
        %764 = vmatpush1.msra.mxu0 %v705
        %765 = vmatprep.subr.mxu0 %v704
        %766 = vmatpush1.msra.mxu0 %v703
        %767 = vmatprep.subr.mxu0 %v702
        %768 = vmatpush1.msra.mxu0 %v701
        %769 = vmatprep.subr.mxu0 %v700
        %770 = vmatpush1.msra.mxu0 %v699
        %771 = vmatprep.subr.mxu0 0.0
        %772 = vmatpush2.msra.mxu0 0.0
        %773 = vmatprep.subr.mxu0 0.0
        %774 = vmatpush2.msra.mxu0 0.0
        %775 = vmatprep.subr.mxu0 0.0
        %776 = vmatpush2.msra.mxu0 0.0
        %777 = vmatprep.subr.mxu0 0.0
        %778 = vmatpush2.msra.mxu0 0.0
        %779 = vmatprep.subr.mxu0 0.0
        %780 = vmatpush2.msra.mxu0 0.0
        %781 = vmatprep.subr.mxu0 0.0
        %782 = vmatpush2.msra.mxu0 0.0
        %783 = vmatprep.subr.mxu0 0.0
        %784 = vmatpush2.msra.mxu0 0.0
        %785 = vmatprep.subr.mxu0 0.0
        %786 = vmatpush2.msra.mxu0 0.0
        %787 = vmatprep.subr.mxu0 0.0
        %788 = vmatpush2.msra.mxu0 0.0
        %789 = vmatprep.subr.mxu0 0.0
        %790 = vmatpush2.msra.mxu0 0.0
        %791 = vmatprep.subr.mxu0 0.0
        %792 = vmatpush2.msra.mxu0 0.0
        %793 = vmatprep.subr.mxu0 0.0
        %794 = vmatpush2.msra.mxu0 0.0
        %795 = vmatprep.subr.mxu0 0.0
        %796 = vmatpush2.msra.mxu0 0.0
        %797 = vmatprep.subr.mxu0 0.0
        %798 = vmatpush2.msra.mxu0 0.0
        %799 = vmatprep.subr.mxu0 0.0
        %800 = vmatpush2.msra.mxu0 0.0
        %801 = vmatprep.subr.mxu0 0.0
        %802 = vmatpush2.msra.mxu0 0.0
        %803 = vmatprep.mubr.f32.mxu0 0.0
        %804 = vmatmul.mubr.f32.gmra.mxu0 %v731
        %v805 = vpop.f32.mrf.mxu0
        %v806 = vadd.f32 0.0, %v805
        %v807 = vpop.f32.mrf.mxu0
        %v808 = vadd.f32 0.0, %v807
        %809 = vmatprep.mubr.f32.mxu0 0.0
        %810 = vmatmul.mubr.f32.gmra.mxu0 %v733
        %v811 = vpop.f32.mrf.mxu0
        %v812 = vadd.f32 0.0, %v811
        %v813 = vpop.f32.mrf.mxu0
        %v814 = vadd.f32 0.0, %v813
        %815 = vmatprep.mubr.f32.mxu0 0.0
        %816 = vmatmul.mubr.f32.gmra.mxu0 %v735
        %v817 = vpop.f32.mrf.mxu0
        %v818 = vadd.f32 0.0, %v817
        %v819 = vpop.f32.mrf.mxu0
        %v820 = vadd.f32 0.0, %v819
        %821 = vmatprep.mubr.f32.mxu0 0.0
        %822 = vmatmul.mubr.f32.gmra.mxu0 %v737
        %v823 = vpop.f32.mrf.mxu0
        %v824 = vadd.f32 0.0, %v823
        %v825 = vpop.f32.mrf.mxu0
        %v826 = vadd.f32 0.0, %v825
        %827 = vdwg.mxu0
        %v828 = vadd.f32 %v676, %v806
        %v829 = vadd.f32 %v678, %v808
        %v830 = vadd.f32 %v682, %v812
        %v831 = vadd.f32 %v684, %v814
        %v832 = vadd.f32 %v688, %v818
        %v833 = vadd.f32 %v690, %v820
        %v834 = vadd.f32 %v694, %v824
        %v835 = vadd.f32 %v696, %v826
        %s836 = scalar_lea.vmem %s1, 576
        %v837 = vld [vmem:[%s836] sm:$0xff]
        %v838 = vld [vmem:[%s836 + $0x8] sm:$0xff]
        %v839 = vld [vmem:[%s836 + $0x10] sm:$0xff]
        %v840 = vld [vmem:[%s836 + $0x18] sm:$0xff]
        %v841 = vld [vmem:[%s836 + $0x20] sm:$0xff]
        %v842 = vld [vmem:[%s836 + $0x28] sm:$0xff]
        %v843 = vld [vmem:[%s836 + $0x30] sm:$0xff]
        %v844 = vld [vmem:[%s836 + $0x38] sm:$0xff]
        %v845 = vld [vmem:[%s836 + $0x40] sm:$0xff]
        %v846 = vld [vmem:[%s836 + $0x48] sm:$0xff]
        %v847 = vld [vmem:[%s836 + $0x50] sm:$0xff]
        %v848 = vld [vmem:[%s836 + $0x58] sm:$0xff]
        %v849 = vld [vmem:[%s836 + $0x60] sm:$0xff]
        %v850 = vld [vmem:[%s836 + $0x68] sm:$0xff]
        %v851 = vld [vmem:[%s836 + $0x70] sm:$0xff]
        %v852 = vld [vmem:[%s836 + $0x78] sm:$0xff]
        %v853 = vld [vmem:[%s836 + $0x80] sm:$0xff]
        %v854 = vld [vmem:[%s836 + $0x88] sm:$0xff]
        %v855 = vld [vmem:[%s836 + $0x90] sm:$0xff]
        %v856 = vld [vmem:[%s836 + $0x98] sm:$0xff]
        %v857 = vld [vmem:[%s836 + $0xa0] sm:$0xff]
        %v858 = vld [vmem:[%s836 + $0xa8] sm:$0xff]
        %v859 = vld [vmem:[%s836 + $0xb0] sm:$0xff]
        %v860 = vld [vmem:[%s836 + $0xb8] sm:$0xff]
        %vm861 = vcmask 1044480
        %v862 = vrot.slane %v438, 3
        %v863 = vrot.slane %v439, 3
        %v864 = vsel %vm861, %v862, %v863
        %v865 = vrot.slane %v440, 3
        %v866 = vsel %vm861, %v863, %v865
        %v867 = vrot.slane %v441, 3
        %v868 = vsel %vm861, %v865, %v867
        %v869 = vsel %vm503, %v864, 0
        %v871 = vsel %vm503, %v866, 0
        %v873 = vsel %vm503, %v868, 0
        %v875 = vsel %vm503, %v867, 0
        %877 = vmatprep.subr.mxu0 0.0
        %878 = vmatpush1.msra.mxu0 0.0
        %879 = vmatprep.subr.mxu0 0.0
        %880 = vmatpush1.msra.mxu0 0.0
        %881 = vmatprep.subr.mxu0 0.0
        %882 = vmatpush1.msra.mxu0 0.0
        %883 = vmatprep.subr.mxu0 0.0
        %884 = vmatpush1.msra.mxu0 0.0
        %885 = vmatprep.subr.mxu0 %v860
        %886 = vmatpush1.msra.mxu0 %v859
        %887 = vmatprep.subr.mxu0 %v858
        %888 = vmatpush1.msra.mxu0 %v857
        %889 = vmatprep.subr.mxu0 %v856
        %890 = vmatpush1.msra.mxu0 %v855
        %891 = vmatprep.subr.mxu0 %v854
        %892 = vmatpush1.msra.mxu0 %v853
        %893 = vmatprep.subr.mxu0 %v852
        %894 = vmatpush1.msra.mxu0 %v851
        %895 = vmatprep.subr.mxu0 %v850
        %896 = vmatpush1.msra.mxu0 %v849
        %897 = vmatprep.subr.mxu0 %v848
        %898 = vmatpush1.msra.mxu0 %v847
        %899 = vmatprep.subr.mxu0 %v846
        %900 = vmatpush1.msra.mxu0 %v845
        %901 = vmatprep.subr.mxu0 %v844
        %902 = vmatpush1.msra.mxu0 %v843
        %903 = vmatprep.subr.mxu0 %v842
        %904 = vmatpush1.msra.mxu0 %v841
        %905 = vmatprep.subr.mxu0 %v840
        %906 = vmatpush1.msra.mxu0 %v839
        %907 = vmatprep.subr.mxu0 %v838
        %908 = vmatpush1.msra.mxu0 %v837
        %909 = vmatprep.subr.mxu0 0.0
        %910 = vmatpush2.msra.mxu0 0.0
        %911 = vmatprep.subr.mxu0 0.0
        %912 = vmatpush2.msra.mxu0 0.0
        %913 = vmatprep.subr.mxu0 0.0
        %914 = vmatpush2.msra.mxu0 0.0
        %915 = vmatprep.subr.mxu0 0.0
        %916 = vmatpush2.msra.mxu0 0.0
        %917 = vmatprep.subr.mxu0 0.0
        %918 = vmatpush2.msra.mxu0 0.0
        %919 = vmatprep.subr.mxu0 0.0
        %920 = vmatpush2.msra.mxu0 0.0
        %921 = vmatprep.subr.mxu0 0.0
        %922 = vmatpush2.msra.mxu0 0.0
        %923 = vmatprep.subr.mxu0 0.0
        %924 = vmatpush2.msra.mxu0 0.0
        %925 = vmatprep.subr.mxu0 0.0
        %926 = vmatpush2.msra.mxu0 0.0
        %927 = vmatprep.subr.mxu0 0.0
        %928 = vmatpush2.msra.mxu0 0.0
        %929 = vmatprep.subr.mxu0 0.0
        %930 = vmatpush2.msra.mxu0 0.0
        %931 = vmatprep.subr.mxu0 0.0
        %932 = vmatpush2.msra.mxu0 0.0
        %933 = vmatprep.subr.mxu0 0.0
        %934 = vmatpush2.msra.mxu0 0.0
        %935 = vmatprep.subr.mxu0 0.0
        %936 = vmatpush2.msra.mxu0 0.0
        %937 = vmatprep.subr.mxu0 0.0
        %938 = vmatpush2.msra.mxu0 0.0
        %939 = vmatprep.subr.mxu0 0.0
        %940 = vmatpush2.msra.mxu0 0.0
        %941 = vmatprep.mubr.f32.mxu0 0.0
        %942 = vmatmul.mubr.f32.gmra.mxu0 %v869
        %v943 = vpop.f32.mrf.mxu0
        %v944 = vadd.f32 0.0, %v943
        %v945 = vpop.f32.mrf.mxu0
        %v946 = vadd.f32 0.0, %v945
        %947 = vmatprep.mubr.f32.mxu0 0.0
        %948 = vmatmul.mubr.f32.gmra.mxu0 %v871
        %v949 = vpop.f32.mrf.mxu0
        %v950 = vadd.f32 0.0, %v949
        %v951 = vpop.f32.mrf.mxu0
        %v952 = vadd.f32 0.0, %v951
        %953 = vmatprep.mubr.f32.mxu0 0.0
        %954 = vmatmul.mubr.f32.gmra.mxu0 %v873
        %v955 = vpop.f32.mrf.mxu0
        %v956 = vadd.f32 0.0, %v955
        %v957 = vpop.f32.mrf.mxu0
        %v958 = vadd.f32 0.0, %v957
        %959 = vmatprep.mubr.f32.mxu0 0.0
        %960 = vmatmul.mubr.f32.gmra.mxu0 %v875
        %v961 = vpop.f32.mrf.mxu0
        %v962 = vadd.f32 0.0, %v961
        %v963 = vpop.f32.mrf.mxu0
        %v964 = vadd.f32 0.0, %v963
        %965 = vdwg.mxu0
        %v966 = vadd.f32 %v828, %v944
        %v967 = vadd.f32 %v829, %v946
        %v968 = vadd.f32 %v830, %v950
        %v969 = vadd.f32 %v831, %v952
        %v970 = vadd.f32 %v832, %v956
        %v971 = vadd.f32 %v833, %v958
        %v972 = vadd.f32 %v834, %v962
        %v973 = vadd.f32 %v835, %v964
        %s974 = scalar_lea.vmem %s1, 768
        %v975 = vld [vmem:[%s974] sm:$0xff]
        %v976 = vld [vmem:[%s974 + $0x8] sm:$0xff]
        %v977 = vld [vmem:[%s974 + $0x10] sm:$0xff]
        %v978 = vld [vmem:[%s974 + $0x18] sm:$0xff]
        %v979 = vld [vmem:[%s974 + $0x20] sm:$0xff]
        %v980 = vld [vmem:[%s974 + $0x28] sm:$0xff]
        %v981 = vld [vmem:[%s974 + $0x30] sm:$0xff]
        %v982 = vld [vmem:[%s974 + $0x38] sm:$0xff]
        %v983 = vld [vmem:[%s974 + $0x40] sm:$0xff]
        %v984 = vld [vmem:[%s974 + $0x48] sm:$0xff]
        %v985 = vld [vmem:[%s974 + $0x50] sm:$0xff]
        %v986 = vld [vmem:[%s974 + $0x58] sm:$0xff]
        %v987 = vld [vmem:[%s974 + $0x60] sm:$0xff]
        %v988 = vld [vmem:[%s974 + $0x68] sm:$0xff]
        %v989 = vld [vmem:[%s974 + $0x70] sm:$0xff]
        %v990 = vld [vmem:[%s974 + $0x78] sm:$0xff]
        %v991 = vld [vmem:[%s974 + $0x80] sm:$0xff]
        %v992 = vld [vmem:[%s974 + $0x88] sm:$0xff]
        %v993 = vld [vmem:[%s974 + $0x90] sm:$0xff]
        %v994 = vld [vmem:[%s974 + $0x98] sm:$0xff]
        %v995 = vld [vmem:[%s974 + $0xa0] sm:$0xff]
        %v996 = vld [vmem:[%s974 + $0xa8] sm:$0xff]
        %v997 = vld [vmem:[%s974 + $0xb0] sm:$0xff]
        %v998 = vld [vmem:[%s974 + $0xb8] sm:$0xff]
        %vm999 = vcmask 1043456
        %v1000 = vrot.slane %v438, 4
        %v1001 = vrot.slane %v439, 4
        %v1002 = vsel %vm999, %v1000, %v1001
        %v1003 = vrot.slane %v440, 4
        %v1004 = vsel %vm999, %v1001, %v1003
        %v1005 = vrot.slane %v441, 4
        %v1006 = vsel %vm999, %v1003, %v1005
        %v1007 = vsel %vm503, %v1002, 0
        %v1009 = vsel %vm503, %v1004, 0
        %v1011 = vsel %vm503, %v1006, 0
        %v1013 = vsel %vm503, %v1005, 0
        %1015 = vmatprep.subr.mxu0 0.0
        %1016 = vmatpush1.msra.mxu0 0.0
        %1017 = vmatprep.subr.mxu0 0.0
        %1018 = vmatpush1.msra.mxu0 0.0
        %1019 = vmatprep.subr.mxu0 0.0
        %1020 = vmatpush1.msra.mxu0 0.0
        %1021 = vmatprep.subr.mxu0 0.0
        %1022 = vmatpush1.msra.mxu0 0.0
        %1023 = vmatprep.subr.mxu0 %v998
        %1024 = vmatpush1.msra.mxu0 %v997
        %1025 = vmatprep.subr.mxu0 %v996
        %1026 = vmatpush1.msra.mxu0 %v995
        %1027 = vmatprep.subr.mxu0 %v994
        %1028 = vmatpush1.msra.mxu0 %v993
        %1029 = vmatprep.subr.mxu0 %v992
        %1030 = vmatpush1.msra.mxu0 %v991
        %1031 = vmatprep.subr.mxu0 %v990
        %1032 = vmatpush1.msra.mxu0 %v989
        %1033 = vmatprep.subr.mxu0 %v988
        %1034 = vmatpush1.msra.mxu0 %v987
        %1035 = vmatprep.subr.mxu0 %v986
        %1036 = vmatpush1.msra.mxu0 %v985
        %1037 = vmatprep.subr.mxu0 %v984
        %1038 = vmatpush1.msra.mxu0 %v983
        %1039 = vmatprep.subr.mxu0 %v982
        %1040 = vmatpush1.msra.mxu0 %v981
        %1041 = vmatprep.subr.mxu0 %v980
        %1042 = vmatpush1.msra.mxu0 %v979
        %1043 = vmatprep.subr.mxu0 %v978
        %1044 = vmatpush1.msra.mxu0 %v977
        %1045 = vmatprep.subr.mxu0 %v976
        %1046 = vmatpush1.msra.mxu0 %v975
        %1047 = vmatprep.subr.mxu0 0.0
        %1048 = vmatpush2.msra.mxu0 0.0
        %1049 = vmatprep.subr.mxu0 0.0
        %1050 = vmatpush2.msra.mxu0 0.0
        %1051 = vmatprep.subr.mxu0 0.0
        %1052 = vmatpush2.msra.mxu0 0.0
        %1053 = vmatprep.subr.mxu0 0.0
        %1054 = vmatpush2.msra.mxu0 0.0
        %1055 = vmatprep.subr.mxu0 0.0
        %1056 = vmatpush2.msra.mxu0 0.0
        %1057 = vmatprep.subr.mxu0 0.0
        %1058 = vmatpush2.msra.mxu0 0.0
        %1059 = vmatprep.subr.mxu0 0.0
        %1060 = vmatpush2.msra.mxu0 0.0
        %1061 = vmatprep.subr.mxu0 0.0
        %1062 = vmatpush2.msra.mxu0 0.0
        %1063 = vmatprep.subr.mxu0 0.0
        %1064 = vmatpush2.msra.mxu0 0.0
        %1065 = vmatprep.subr.mxu0 0.0
        %1066 = vmatpush2.msra.mxu0 0.0
        %1067 = vmatprep.subr.mxu0 0.0
        %1068 = vmatpush2.msra.mxu0 0.0
        %1069 = vmatprep.subr.mxu0 0.0
        %1070 = vmatpush2.msra.mxu0 0.0
        %1071 = vmatprep.subr.mxu0 0.0
        %1072 = vmatpush2.msra.mxu0 0.0
        %1073 = vmatprep.subr.mxu0 0.0
        %1074 = vmatpush2.msra.mxu0 0.0
        %1075 = vmatprep.subr.mxu0 0.0
        %1076 = vmatpush2.msra.mxu0 0.0
        %1077 = vmatprep.subr.mxu0 0.0
        %1078 = vmatpush2.msra.mxu0 0.0
        %1079 = vmatprep.mubr.f32.mxu0 0.0
        %1080 = vmatmul.mubr.f32.gmra.mxu0 %v1007
        %v1081 = vpop.f32.mrf.mxu0
        %v1082 = vadd.f32 0.0, %v1081
        %v1083 = vpop.f32.mrf.mxu0
        %v1084 = vadd.f32 0.0, %v1083
        %1085 = vmatprep.mubr.f32.mxu0 0.0
        %1086 = vmatmul.mubr.f32.gmra.mxu0 %v1009
        %v1087 = vpop.f32.mrf.mxu0
        %v1088 = vadd.f32 0.0, %v1087
        %v1089 = vpop.f32.mrf.mxu0
        %v1090 = vadd.f32 0.0, %v1089
        %1091 = vmatprep.mubr.f32.mxu0 0.0
        %1092 = vmatmul.mubr.f32.gmra.mxu0 %v1011
        %v1093 = vpop.f32.mrf.mxu0
        %v1094 = vadd.f32 0.0, %v1093
        %v1095 = vpop.f32.mrf.mxu0
        %v1096 = vadd.f32 0.0, %v1095
        %1097 = vmatprep.mubr.f32.mxu0 0.0
        %1098 = vmatmul.mubr.f32.gmra.mxu0 %v1013
        %v1099 = vpop.f32.mrf.mxu0
        %v1100 = vadd.f32 0.0, %v1099
        %v1101 = vpop.f32.mrf.mxu0
        %v1102 = vadd.f32 0.0, %v1101
        %1103 = vdwg.mxu0
        %v1104 = vadd.f32 %v966, %v1082
        %v1105 = vadd.f32 %v967, %v1084
        %v1106 = vadd.f32 %v968, %v1088
        %v1107 = vadd.f32 %v969, %v1090
        %v1108 = vadd.f32 %v970, %v1094
        %v1109 = vadd.f32 %v971, %v1096
        %v1110 = vadd.f32 %v972, %v1100
        %v1111 = vadd.f32 %v973, %v1102
        %v1112 = vld [vmem:[%s2] sm:$0x3]
        %v1114 = vlaneseq
        %v1115 = vshrl.u32 %v1114, 7
        %v1116 = vsub.s32 0, %v1115
        %v1117 = vrot.slane %v1112, %v1116
        %v1118 = vlaneseq
        %v1119 = vshrl.u32 %v1118, 7
        %v1120 = vsub.s32 1, %v1119
        %v1121 = vrot.slane %v1112, %v1120
        %v1124 = vadd.f32 %v1104, %v1117
        %v1125 = vadd.f32 %v1105, %v1121
        %v1126 = vadd.f32 %v1106, %v1117
        %v1127 = vadd.f32 %v1107, %v1121
        %v1128 = vadd.f32 %v1108, %v1117
        %v1129 = vadd.f32 %v1109, %v1121
        %v1130 = vadd.f32 %v1110, %v1117
        %v1131 = vadd.f32 %v1111, %v1121
        %v1132 = vmax.f32 %v1124, 0.0
        %v1133 = vmax.f32 %v1125, 0.0
        %v1134 = vmax.f32 %v1126, 0.0
        %v1135 = vmax.f32 %v1127, 0.0
        %v1136 = vmax.f32 %v1128, 0.0
        %v1137 = vmax.f32 %v1129, 0.0
        %v1138 = vmax.f32 %v1130, 0.0
        %v1139 = vmax.f32 %v1131, 0.0
        %v1148 = vrot.slane %v1132, 1
        %v1149 = vrot.slane %v1134, 1
        %v1150 = vsel %vm495, %v1148, %v1149
        %v1151 = vrot.slane %v1133, 1
        %v1152 = vrot.slane %v1135, 1
        %v1153 = vsel %vm495, %v1151, %v1152
        %v1154 = vrot.slane %v1136, 1
        %v1155 = vsel %vm495, %v1149, %v1154
        %v1156 = vrot.slane %v1137, 1
        %v1157 = vsel %vm495, %v1152, %v1156
        %v1158 = vrot.slane %v1138, 1
        %v1159 = vsel %vm495, %v1154, %v1158
        %v1160 = vrot.slane %v1139, 1
        %v1161 = vsel %vm495, %v1156, %v1160
        %v1170 = vmax.f32 %v1132, %v1150
        %v1171 = vmax.f32 %v1133, %v1153
        %v1172 = vmax.f32 %v1134, %v1155
        %v1173 = vmax.f32 %v1135, %v1157
        %v1174 = vmax.f32 %v1136, %v1159
        %v1175 = vmax.f32 %v1137, %v1161
        %v1176 = vmax.f32 %v1138, %v1158
        %v1177 = vmax.f32 %v1139, %v1160
        %1186 = vrot.lane.b32.xlu0 %v1170, 122
        %v1187 = vpop.permute.xlu0 %1186
        %1188 = vrot.lane.b32.xlu0 %v1171, 122
        %v1189 = vpop.permute.xlu0 %1188
        %1190 = vrot.lane.b32.xlu0 %v1172, 122
        %v1191 = vpop.permute.xlu0 %1190
        %1192 = vrot.lane.b32.xlu0 %v1173, 122
        %v1193 = vpop.permute.xlu0 %1192
        %1194 = vrot.lane.b32.xlu0 %v1174, 122
        %v1195 = vpop.permute.xlu0 %1194
        %1196 = vrot.lane.b32.xlu0 %v1175, 122
        %v1197 = vpop.permute.xlu0 %1196
        %1198 = vrot.lane.b32.xlu0 %v1176, 122
        %v1199 = vpop.permute.xlu0 %1198
        %1200 = vrot.lane.b32.xlu0 %v1177, 122
        %v1201 = vpop.permute.xlu0 %1200
        %vm1202 = vcmask 998400
        %v1203 = vsel %vm1202, %v1187, %v1189
        %v1204 = vsel %vm1202, %v1191, %v1193
        %v1205 = vsel %vm1202, %v1195, %v1197
        %v1206 = vsel %vm1202, %v1199, %v1201
        %v1215 = vmax.f32 %v1170, %v1203
        %v1216 = vmax.f32 %v1171, %v1189
        %v1217 = vmax.f32 %v1172, %v1204
        %v1218 = vmax.f32 %v1173, %v1193
        %v1219 = vmax.f32 %v1174, %v1205
        %v1220 = vmax.f32 %v1175, %v1197
        %v1221 = vmax.f32 %v1176, %v1206
        %v1222 = vmax.f32 %v1177, %v1201
        %v1223 = vld [vmem:[%s3] sm:$0xff]
        %v1224 = vld [vmem:[%s3 + $0x8] sm:$0x3f]
        %vm1225 = vcmask 220160
        %v1227 = vsel %vm1225, %v1223, 0
        %v1230 = vsel %vm1225, %v1224, 0
        %vm1232 = vcmask 1042432
        %v1234 = vsel %vm1232, %v1221, 0
        %v1237 = vsel %vm1232, %v1222, 0
        %1239 = vmatprep.subr.mxu0 0.0
        %1240 = vmatpush1.msra.mxu0 0.0
        %1241 = vmatprep.subr.mxu0 0.0
        %1242 = vmatpush1.msra.mxu0 0.0
        %1243 = vmatprep.subr.mxu0 0.0
        %1244 = vmatpush1.msra.mxu0 0.0
        %1245 = vmatprep.subr.mxu0 0.0
        %1246 = vmatpush1.msra.mxu0 0.0
        %1247 = vmatprep.subr.mxu0 0.0
        %1248 = vmatpush1.msra.mxu0 0.0
        %1249 = vmatprep.subr.mxu0 0.0
        %1250 = vmatpush1.msra.mxu0 0.0
        %1251 = vmatprep.subr.mxu0 0.0
        %1252 = vmatpush1.msra.mxu0 0.0
        %1253 = vmatprep.subr.mxu0 0.0
        %1254 = vmatpush1.msra.mxu0 0.0
        %1255 = vmatprep.subr.mxu0 0.0
        %1256 = vmatpush1.msra.mxu0 0.0
        %1257 = vmatprep.subr.mxu0 0.0
        %1258 = vmatpush1.msra.mxu0 0.0
        %1259 = vmatprep.subr.mxu0 0.0
        %1260 = vmatpush1.msra.mxu0 0.0
        %1261 = vmatprep.subr.mxu0 0.0
        %1262 = vmatpush1.msra.mxu0 0.0
        %1263 = vmatprep.subr.mxu0 %v1237
        %1264 = vmatpush1.msra.mxu0 %v1234
        %1265 = vmatprep.subr.mxu0 %v1220
        %1266 = vmatpush1.msra.mxu0 %v1219
        %1267 = vmatprep.subr.mxu0 %v1218
        %1268 = vmatpush1.msra.mxu0 %v1217
        %1269 = vmatprep.subr.mxu0 %v1216
        %1270 = vmatpush1.msra.mxu0 %v1215
        %1271 = vmatprep.subr.mxu0 0.0
        %1272 = vmatpush2.msra.mxu0 0.0
        %1273 = vmatprep.subr.mxu0 0.0
        %1274 = vmatpush2.msra.mxu0 0.0
        %1275 = vmatprep.subr.mxu0 0.0
        %1276 = vmatpush2.msra.mxu0 0.0
        %1277 = vmatprep.subr.mxu0 0.0
        %1278 = vmatpush2.msra.mxu0 0.0
        %1279 = vmatprep.subr.mxu0 0.0
        %1280 = vmatpush2.msra.mxu0 0.0
        %1281 = vmatprep.subr.mxu0 0.0
        %1282 = vmatpush2.msra.mxu0 0.0
        %1283 = vmatprep.subr.mxu0 0.0
        %1284 = vmatpush2.msra.mxu0 0.0
        %1285 = vmatprep.subr.mxu0 0.0
        %1286 = vmatpush2.msra.mxu0 0.0
        %1287 = vmatprep.subr.mxu0 0.0
        %1288 = vmatpush2.msra.mxu0 0.0
        %1289 = vmatprep.subr.mxu0 0.0
        %1290 = vmatpush2.msra.mxu0 0.0
        %1291 = vmatprep.subr.mxu0 0.0
        %1292 = vmatpush2.msra.mxu0 0.0
        %1293 = vmatprep.subr.mxu0 0.0
        %1294 = vmatpush2.msra.mxu0 0.0
        %1295 = vmatprep.subr.mxu0 0.0
        %1296 = vmatpush2.msra.mxu0 0.0
        %1297 = vmatprep.subr.mxu0 0.0
        %1298 = vmatpush2.msra.mxu0 0.0
        %1299 = vmatprep.subr.mxu0 0.0
        %1300 = vmatpush2.msra.mxu0 0.0
        %1301 = vmatprep.subr.mxu0 0.0
        %1302 = vmatpush2.msra.mxu0 0.0
        %1303 = vmatprep.mubr.f32.mxu0 0.0
        %1304 = vmatmul.mubr.f32.gmra.mxu0 %v1227
        %v1305 = vpop.f32.mrf.mxu0
        %v1306 = vadd.f32 0.0, %v1305
        %v1307 = vpop.f32.mrf.mxu0
        %v1308 = vadd.f32 0.0, %v1307
        %1309 = vmatprep.mubr.f32.mxu0 0.0
        %1310 = vmatmul.mubr.f32.gmra.mxu0 %v1230
        %v1311 = vpop.f32.mrf.mxu0
        %v1312 = vadd.f32 0.0, %v1311
        %v1313 = vpop.f32.mrf.mxu0
        %v1314 = vadd.f32 0.0, %v1313
        %1315 = vdwg.mxu0
        %v1316 = vld [vmem:[%s4] sm:$0xff]
        %v1317 = vld [vmem:[%s4 + $0x8] sm:$0xff]
        %v1318 = vld [vmem:[%s4 + $0x10] sm:$0xff]
        %v1319 = vld [vmem:[%s4 + $0x18] sm:$0xff]
        %v1320 = vld [vmem:[%s4 + $0x20] sm:$0xff]
        %v1321 = vld [vmem:[%s4 + $0x28] sm:$0xff]
        %v1322 = vld [vmem:[%s4 + $0x30] sm:$0xff]
        %v1323 = vld [vmem:[%s4 + $0x38] sm:$0xff]
        %v1324 = vld [vmem:[%s4 + $0x40] sm:$0xff]
        %v1325 = vld [vmem:[%s4 + $0x48] sm:$0xff]
        %v1326 = vld [vmem:[%s4 + $0x50] sm:$0xff]
        %v1327 = vld [vmem:[%s4 + $0x58] sm:$0xff]
        %v1328 = vld [vmem:[%s4 + $0x60] sm:$0xff]
        %v1329 = vld [vmem:[%s4 + $0x68] sm:$0xff]
        %v1330 = vld [vmem:[%s4 + $0x70] sm:$0xff]
        %v1331 = vld [vmem:[%s4 + $0x78] sm:$0xff]
        %v1332 = vld [vmem:[%s4 + $0x80] sm:$0xff]
        %v1333 = vld [vmem:[%s4 + $0x88] sm:$0xff]
        %v1334 = vld [vmem:[%s4 + $0x90] sm:$0xff]
        %v1335 = vld [vmem:[%s4 + $0x98] sm:$0xff]
        %v1336 = vld [vmem:[%s4 + $0xa0] sm:$0xff]
        %v1337 = vld [vmem:[%s4 + $0xa8] sm:$0xff]
        %v1338 = vld [vmem:[%s4 + $0xb0] sm:$0xff]
        %v1339 = vld [vmem:[%s4 + $0xb8] sm:$0xff]
        %v1340 = vld [vmem:[%s4 + $0xc0] sm:$0xff]
        %v1341 = vld [vmem:[%s4 + $0xc8] sm:$0xff]
        %v1342 = vld [vmem:[%s4 + $0xd0] sm:$0xff]
        %v1343 = vld [vmem:[%s4 + $0xd8] sm:$0xff]
        %v1344 = vld [vmem:[%s4 + $0xe0] sm:$0xff]
        %v1345 = vld [vmem:[%s4 + $0xe8] sm:$0xff]
        %v1346 = vld [vmem:[%s4 + $0xf0] sm:$0xff]
        %v1347 = vld [vmem:[%s4 + $0xf8] sm:$0xff]
        %v1348 = vld [vmem:[%s4 + $0x100] sm:$0xff]
        %v1349 = vld [vmem:[%s4 + $0x108] sm:$0xff]
        %v1350 = vld [vmem:[%s4 + $0x110] sm:$0xff]
        %v1351 = vld [vmem:[%s4 + $0x118] sm:$0xff]
        %v1352 = vld [vmem:[%s4 + $0x120] sm:$0xff]
        %v1353 = vld [vmem:[%s4 + $0x128] sm:$0xff]
        %v1354 = vld [vmem:[%s4 + $0x130] sm:$0xff]
        %v1355 = vld [vmem:[%s4 + $0x138] sm:$0xff]
        %v1356 = vld [vmem:[%s4 + $0x140] sm:$0x3]
        %v1357 = vld [vmem:[%s4 + $0x148] sm:$0x3]
        %s1358 = scalar_lea.vmem %s4, 336
        %v1359 = vld [vmem:[%s1358] sm:$0xff]
        %v1360 = vld [vmem:[%s1358 + $0x8] sm:$0xff]
        %v1361 = vld [vmem:[%s1358 + $0x10] sm:$0xff]
        %v1362 = vld [vmem:[%s1358 + $0x18] sm:$0xff]
        %v1363 = vld [vmem:[%s1358 + $0x20] sm:$0xff]
        %v1364 = vld [vmem:[%s1358 + $0x28] sm:$0xff]
        %v1365 = vld [vmem:[%s1358 + $0x30] sm:$0xff]
        %v1366 = vld [vmem:[%s1358 + $0x38] sm:$0xff]
        %v1367 = vld [vmem:[%s1358 + $0x40] sm:$0xff]
        %v1368 = vld [vmem:[%s1358 + $0x48] sm:$0xff]
        %v1369 = vld [vmem:[%s1358 + $0x50] sm:$0xff]
        %v1370 = vld [vmem:[%s1358 + $0x58] sm:$0xff]
        %v1371 = vld [vmem:[%s1358 + $0x60] sm:$0xff]
        %v1372 = vld [vmem:[%s1358 + $0x68] sm:$0xff]
        %v1373 = vld [vmem:[%s1358 + $0x70] sm:$0xff]
        %v1374 = vld [vmem:[%s1358 + $0x78] sm:$0xff]
        %v1375 = vld [vmem:[%s1358 + $0x80] sm:$0xff]
        %v1376 = vld [vmem:[%s1358 + $0x88] sm:$0xff]
        %v1377 = vld [vmem:[%s1358 + $0x90] sm:$0xff]
        %v1378 = vld [vmem:[%s1358 + $0x98] sm:$0xff]
        %v1379 = vld [vmem:[%s1358 + $0xa0] sm:$0xff]
        %v1380 = vld [vmem:[%s1358 + $0xa8] sm:$0xff]
        %v1381 = vld [vmem:[%s1358 + $0xb0] sm:$0xff]
        %v1382 = vld [vmem:[%s1358 + $0xb8] sm:$0xff]
        %v1383 = vld [vmem:[%s1358 + $0xc0] sm:$0xff]
        %v1384 = vld [vmem:[%s1358 + $0xc8] sm:$0xff]
        %v1385 = vld [vmem:[%s1358 + $0xd0] sm:$0xff]
        %v1386 = vld [vmem:[%s1358 + $0xd8] sm:$0xff]
        %v1387 = vld [vmem:[%s1358 + $0xe0] sm:$0xff]
        %v1388 = vld [vmem:[%s1358 + $0xe8] sm:$0xff]
        %v1389 = vld [vmem:[%s1358 + $0xf0] sm:$0xff]
        %v1390 = vld [vmem:[%s1358 + $0xf8] sm:$0xff]
        %v1391 = vld [vmem:[%s1358 + $0x100] sm:$0xff]
        %v1392 = vld [vmem:[%s1358 + $0x108] sm:$0xff]
        %v1393 = vld [vmem:[%s1358 + $0x110] sm:$0xff]
        %v1394 = vld [vmem:[%s1358 + $0x118] sm:$0xff]
        %v1395 = vld [vmem:[%s1358 + $0x120] sm:$0xff]
        %v1396 = vld [vmem:[%s1358 + $0x128] sm:$0xff]
        %v1397 = vld [vmem:[%s1358 + $0x130] sm:$0xff]
        %v1398 = vld [vmem:[%s1358 + $0x138] sm:$0xff]
        %v1399 = vld [vmem:[%s1358 + $0x140] sm:$0x3]
        %v1400 = vld [vmem:[%s1358 + $0x148] sm:$0x3]
        %v1405 = vrot.slane %v1306, 1
        %v1406 = vrot.slane %v1312, 1
        %v1407 = vsel %vm495, %v1405, %v1406
        %v1408 = vrot.slane %v1308, 1
        %v1409 = vrot.slane %v1314, 1
        %v1410 = vsel %vm495, %v1408, %v1409
        %vm1413 = vcmask 277504
        %v1414 = vsel %vm1413, %v1410, 0
        %v1416 = vsel %vm1413, %v1409, 0
        %vm1418 = vcmask 1041408
        %v1420 = vsel %vm1418, %v1399, 0
        %v1423 = vsel %vm1418, %v1400, 0
        %1425 = vmatprep.subr.mxu0 %v1390
        %1426 = vmatpush1.msra.mxu0 %v1389
        %1427 = vmatprep.subr.mxu0 %v1388
        %1428 = vmatpush1.msra.mxu0 %v1387
        %1429 = vmatprep.subr.mxu0 %v1386
        %1430 = vmatpush1.msra.mxu0 %v1385
        %1431 = vmatprep.subr.mxu0 %v1384
        %1432 = vmatpush1.msra.mxu0 %v1383
        %1433 = vmatprep.subr.mxu0 %v1382
        %1434 = vmatpush1.msra.mxu0 %v1381
        %1435 = vmatprep.subr.mxu0 %v1380
        %1436 = vmatpush1.msra.mxu0 %v1379
        %1437 = vmatprep.subr.mxu0 %v1378
        %1438 = vmatpush1.msra.mxu0 %v1377
        %1439 = vmatprep.subr.mxu0 %v1376
        %1440 = vmatpush1.msra.mxu0 %v1375
        %1441 = vmatprep.subr.mxu0 %v1374
        %1442 = vmatpush1.msra.mxu0 %v1373
        %1443 = vmatprep.subr.mxu0 %v1372
        %1444 = vmatpush1.msra.mxu0 %v1371
        %1445 = vmatprep.subr.mxu0 %v1370
        %1446 = vmatpush1.msra.mxu0 %v1369
        %1447 = vmatprep.subr.mxu0 %v1368
        %1448 = vmatpush1.msra.mxu0 %v1367
        %1449 = vmatprep.subr.mxu0 %v1366
        %1450 = vmatpush1.msra.mxu0 %v1365
        %1451 = vmatprep.subr.mxu0 %v1364
        %1452 = vmatpush1.msra.mxu0 %v1363
        %1453 = vmatprep.subr.mxu0 %v1362
        %1454 = vmatpush1.msra.mxu0 %v1361
        %1455 = vmatprep.subr.mxu0 %v1360
        %1456 = vmatpush1.msra.mxu0 %v1359
        %1457 = vmatprep.subr.mxu0 0.0
        %1458 = vmatpush2.msra.mxu0 0.0
        %1459 = vmatprep.subr.mxu0 0.0
        %1460 = vmatpush2.msra.mxu0 0.0
        %1461 = vmatprep.subr.mxu0 0.0
        %1462 = vmatpush2.msra.mxu0 0.0
        %1463 = vmatprep.subr.mxu0 0.0
        %1464 = vmatpush2.msra.mxu0 0.0
        %1465 = vmatprep.subr.mxu0 0.0
        %1466 = vmatpush2.msra.mxu0 0.0
        %1467 = vmatprep.subr.mxu0 0.0
        %1468 = vmatpush2.msra.mxu0 0.0
        %1469 = vmatprep.subr.mxu0 0.0
        %1470 = vmatpush2.msra.mxu0 0.0
        %1471 = vmatprep.subr.mxu0 0.0
        %1472 = vmatpush2.msra.mxu0 0.0
        %1473 = vmatprep.subr.mxu0 0.0
        %1474 = vmatpush2.msra.mxu0 0.0
        %1475 = vmatprep.subr.mxu0 0.0
        %1476 = vmatpush2.msra.mxu0 0.0
        %1477 = vmatprep.subr.mxu0 0.0
        %1478 = vmatpush2.msra.mxu0 0.0
        %1479 = vmatprep.subr.mxu0 %v1423
        %1480 = vmatpush2.msra.mxu0 %v1420
        %1481 = vmatprep.subr.mxu0 %v1398
        %1482 = vmatpush2.msra.mxu0 %v1397
        %1483 = vmatprep.subr.mxu0 %v1396
        %1484 = vmatpush2.msra.mxu0 %v1395
        %1485 = vmatprep.subr.mxu0 %v1394
        %1486 = vmatpush2.msra.mxu0 %v1393
        %1487 = vmatprep.subr.mxu0 %v1392
        %1488 = vmatpush2.msra.mxu0 %v1391
        %1489 = vmatprep.mubr.f32.mxu0 %v1414
        %1490 = vmatmul.mubr.f32.gmra.mxu0 %v1407
        %v1491 = vpop.f32.mrf.mxu0
        %v1492 = vadd.f32 0.0, %v1491
        %v1493 = vpop.f32.mrf.mxu0
        %v1494 = vadd.f32 0.0, %v1493
        %1495 = vmatprep.mubr.f32.mxu0 %v1416
        %1496 = vmatmul.mubr.f32.gmra.mxu0 %v1406
        %v1497 = vpop.f32.mrf.mxu0
        %v1498 = vadd.f32 0.0, %v1497
        %v1499 = vpop.f32.mrf.mxu0
        %v1500 = vadd.f32 0.0, %v1499
        %1501 = vdwg.mxu0
        %v1502 = vsel %vm1413, %v1308, 0
        %v1504 = vsel %vm1413, %v1314, 0
        %v1507 = vsel %vm1418, %v1356, 0
        %v1510 = vsel %vm1418, %v1357, 0
        %1512 = vmatprep.subr.mxu0 %v1347
        %1513 = vmatpush1.msra.mxu0 %v1346
        %1514 = vmatprep.subr.mxu0 %v1345
        %1515 = vmatpush1.msra.mxu0 %v1344
        %1516 = vmatprep.subr.mxu0 %v1343
        %1517 = vmatpush1.msra.mxu0 %v1342
        %1518 = vmatprep.subr.mxu0 %v1341
        %1519 = vmatpush1.msra.mxu0 %v1340
        %1520 = vmatprep.subr.mxu0 %v1339
        %1521 = vmatpush1.msra.mxu0 %v1338
        %1522 = vmatprep.subr.mxu0 %v1337
        %1523 = vmatpush1.msra.mxu0 %v1336
        %1524 = vmatprep.subr.mxu0 %v1335
        %1525 = vmatpush1.msra.mxu0 %v1334
        %1526 = vmatprep.subr.mxu0 %v1333
        %1527 = vmatpush1.msra.mxu0 %v1332
        %1528 = vmatprep.subr.mxu0 %v1331
        %1529 = vmatpush1.msra.mxu0 %v1330
        %1530 = vmatprep.subr.mxu0 %v1329
        %1531 = vmatpush1.msra.mxu0 %v1328
        %1532 = vmatprep.subr.mxu0 %v1327
        %1533 = vmatpush1.msra.mxu0 %v1326
        %1534 = vmatprep.subr.mxu0 %v1325
        %1535 = vmatpush1.msra.mxu0 %v1324
        %1536 = vmatprep.subr.mxu0 %v1323
        %1537 = vmatpush1.msra.mxu0 %v1322
        %1538 = vmatprep.subr.mxu0 %v1321
        %1539 = vmatpush1.msra.mxu0 %v1320
        %1540 = vmatprep.subr.mxu0 %v1319
        %1541 = vmatpush1.msra.mxu0 %v1318
        %1542 = vmatprep.subr.mxu0 %v1317
        %1543 = vmatpush1.msra.mxu0 %v1316
        %1544 = vmatprep.subr.mxu0 0.0
        %1545 = vmatpush2.msra.mxu0 0.0
        %1546 = vmatprep.subr.mxu0 0.0
        %1547 = vmatpush2.msra.mxu0 0.0
        %1548 = vmatprep.subr.mxu0 0.0
        %1549 = vmatpush2.msra.mxu0 0.0
        %1550 = vmatprep.subr.mxu0 0.0
        %1551 = vmatpush2.msra.mxu0 0.0
        %1552 = vmatprep.subr.mxu0 0.0
        %1553 = vmatpush2.msra.mxu0 0.0
        %1554 = vmatprep.subr.mxu0 0.0
        %1555 = vmatpush2.msra.mxu0 0.0
        %1556 = vmatprep.subr.mxu0 0.0
        %1557 = vmatpush2.msra.mxu0 0.0
        %1558 = vmatprep.subr.mxu0 0.0
        %1559 = vmatpush2.msra.mxu0 0.0
        %1560 = vmatprep.subr.mxu0 0.0
        %1561 = vmatpush2.msra.mxu0 0.0
        %1562 = vmatprep.subr.mxu0 0.0
        %1563 = vmatpush2.msra.mxu0 0.0
        %1564 = vmatprep.subr.mxu0 0.0
        %1565 = vmatpush2.msra.mxu0 0.0
        %1566 = vmatprep.subr.mxu0 %v1510
        %1567 = vmatpush2.msra.mxu0 %v1507
        %1568 = vmatprep.subr.mxu0 %v1355
        %1569 = vmatpush2.msra.mxu0 %v1354
        %1570 = vmatprep.subr.mxu0 %v1353
        %1571 = vmatpush2.msra.mxu0 %v1352
        %1572 = vmatprep.subr.mxu0 %v1351
        %1573 = vmatpush2.msra.mxu0 %v1350
        %1574 = vmatprep.subr.mxu0 %v1349
        %1575 = vmatpush2.msra.mxu0 %v1348
        %1576 = vmatprep.mubr.f32.mxu0 %v1502
        %1577 = vmatmul.mubr.f32.gmra.mxu0 %v1306
        %v1578 = vpop.f32.mrf.mxu0
        %v1579 = vadd.f32 %v1492, %v1578
        %v1580 = vpop.f32.mrf.mxu0
        %v1581 = vadd.f32 %v1494, %v1580
        %1582 = vmatprep.mubr.f32.mxu0 %v1504
        %1583 = vmatmul.mubr.f32.gmra.mxu0 %v1312
        %v1584 = vpop.f32.mrf.mxu0
        %v1585 = vadd.f32 %v1498, %v1584
        %v1586 = vpop.f32.mrf.mxu0
        %v1587 = vadd.f32 %v1500, %v1586
        %1588 = vdwg.mxu0
        %s1589 = scalar_lea.vmem %s4, 672
        %v1590 = vld [vmem:[%s1589] sm:$0xff]
        %v1591 = vld [vmem:[%s1589 + $0x8] sm:$0xff]
        %v1592 = vld [vmem:[%s1589 + $0x10] sm:$0xff]
        %v1593 = vld [vmem:[%s1589 + $0x18] sm:$0xff]
        %v1594 = vld [vmem:[%s1589 + $0x20] sm:$0xff]
        %v1595 = vld [vmem:[%s1589 + $0x28] sm:$0xff]
        %v1596 = vld [vmem:[%s1589 + $0x30] sm:$0xff]
        %v1597 = vld [vmem:[%s1589 + $0x38] sm:$0xff]
        %v1598 = vld [vmem:[%s1589 + $0x40] sm:$0xff]
        %v1599 = vld [vmem:[%s1589 + $0x48] sm:$0xff]
        %v1600 = vld [vmem:[%s1589 + $0x50] sm:$0xff]
        %v1601 = vld [vmem:[%s1589 + $0x58] sm:$0xff]
        %v1602 = vld [vmem:[%s1589 + $0x60] sm:$0xff]
        %v1603 = vld [vmem:[%s1589 + $0x68] sm:$0xff]
        %v1604 = vld [vmem:[%s1589 + $0x70] sm:$0xff]
        %v1605 = vld [vmem:[%s1589 + $0x78] sm:$0xff]
        %v1606 = vld [vmem:[%s1589 + $0x80] sm:$0xff]
        %v1607 = vld [vmem:[%s1589 + $0x88] sm:$0xff]
        %v1608 = vld [vmem:[%s1589 + $0x90] sm:$0xff]
        %v1609 = vld [vmem:[%s1589 + $0x98] sm:$0xff]
        %v1610 = vld [vmem:[%s1589 + $0xa0] sm:$0xff]
        %v1611 = vld [vmem:[%s1589 + $0xa8] sm:$0xff]
        %v1612 = vld [vmem:[%s1589 + $0xb0] sm:$0xff]
        %v1613 = vld [vmem:[%s1589 + $0xb8] sm:$0xff]
        %v1614 = vld [vmem:[%s1589 + $0xc0] sm:$0xff]
        %v1615 = vld [vmem:[%s1589 + $0xc8] sm:$0xff]
        %v1616 = vld [vmem:[%s1589 + $0xd0] sm:$0xff]
        %v1617 = vld [vmem:[%s1589 + $0xd8] sm:$0xff]
        %v1618 = vld [vmem:[%s1589 + $0xe0] sm:$0xff]
        %v1619 = vld [vmem:[%s1589 + $0xe8] sm:$0xff]
        %v1620 = vld [vmem:[%s1589 + $0xf0] sm:$0xff]
        %v1621 = vld [vmem:[%s1589 + $0xf8] sm:$0xff]
        %v1622 = vld [vmem:[%s1589 + $0x100] sm:$0xff]
        %v1623 = vld [vmem:[%s1589 + $0x108] sm:$0xff]
        %v1624 = vld [vmem:[%s1589 + $0x110] sm:$0xff]
        %v1625 = vld [vmem:[%s1589 + $0x118] sm:$0xff]
        %v1626 = vld [vmem:[%s1589 + $0x120] sm:$0xff]
        %v1627 = vld [vmem:[%s1589 + $0x128] sm:$0xff]
        %v1628 = vld [vmem:[%s1589 + $0x130] sm:$0xff]
        %v1629 = vld [vmem:[%s1589 + $0x138] sm:$0xff]
        %v1630 = vld [vmem:[%s1589 + $0x140] sm:$0x3]
        %v1631 = vld [vmem:[%s1589 + $0x148] sm:$0x3]
        %v1632 = vrot.slane %v1306, 2
        %v1633 = vrot.slane %v1312, 2
        %v1634 = vsel %vm723, %v1632, %v1633
        %v1635 = vrot.slane %v1308, 2
        %v1636 = vrot.slane %v1314, 2
        %v1637 = vsel %vm723, %v1635, %v1636
        %v1640 = vsel %vm1413, %v1637, 0
        %v1642 = vsel %vm1413, %v1636, 0
        %v1645 = vsel %vm1418, %v1630, 0
        %v1648 = vsel %vm1418, %v1631, 0
        %1650 = vmatprep.subr.mxu0 %v1621
        %1651 = vmatpush1.msra.mxu0 %v1620
        %1652 = vmatprep.subr.mxu0 %v1619
        %1653 = vmatpush1.msra.mxu0 %v1618
        %1654 = vmatprep.subr.mxu0 %v1617
        %1655 = vmatpush1.msra.mxu0 %v1616
        %1656 = vmatprep.subr.mxu0 %v1615
        %1657 = vmatpush1.msra.mxu0 %v1614
        %1658 = vmatprep.subr.mxu0 %v1613
        %1659 = vmatpush1.msra.mxu0 %v1612
        %1660 = vmatprep.subr.mxu0 %v1611
        %1661 = vmatpush1.msra.mxu0 %v1610
        %1662 = vmatprep.subr.mxu0 %v1609
        %1663 = vmatpush1.msra.mxu0 %v1608
        %1664 = vmatprep.subr.mxu0 %v1607
        %1665 = vmatpush1.msra.mxu0 %v1606
        %1666 = vmatprep.subr.mxu0 %v1605
        %1667 = vmatpush1.msra.mxu0 %v1604
        %1668 = vmatprep.subr.mxu0 %v1603
        %1669 = vmatpush1.msra.mxu0 %v1602
        %1670 = vmatprep.subr.mxu0 %v1601
        %1671 = vmatpush1.msra.mxu0 %v1600
        %1672 = vmatprep.subr.mxu0 %v1599
        %1673 = vmatpush1.msra.mxu0 %v1598
        %1674 = vmatprep.subr.mxu0 %v1597
        %1675 = vmatpush1.msra.mxu0 %v1596
        %1676 = vmatprep.subr.mxu0 %v1595
        %1677 = vmatpush1.msra.mxu0 %v1594
        %1678 = vmatprep.subr.mxu0 %v1593
        %1679 = vmatpush1.msra.mxu0 %v1592
        %1680 = vmatprep.subr.mxu0 %v1591
        %1681 = vmatpush1.msra.mxu0 %v1590
        %1682 = vmatprep.subr.mxu0 0.0
        %1683 = vmatpush2.msra.mxu0 0.0
        %1684 = vmatprep.subr.mxu0 0.0
        %1685 = vmatpush2.msra.mxu0 0.0
        %1686 = vmatprep.subr.mxu0 0.0
        %1687 = vmatpush2.msra.mxu0 0.0
        %1688 = vmatprep.subr.mxu0 0.0
        %1689 = vmatpush2.msra.mxu0 0.0
        %1690 = vmatprep.subr.mxu0 0.0
        %1691 = vmatpush2.msra.mxu0 0.0
        %1692 = vmatprep.subr.mxu0 0.0
        %1693 = vmatpush2.msra.mxu0 0.0
        %1694 = vmatprep.subr.mxu0 0.0
        %1695 = vmatpush2.msra.mxu0 0.0
        %1696 = vmatprep.subr.mxu0 0.0
        %1697 = vmatpush2.msra.mxu0 0.0
        %1698 = vmatprep.subr.mxu0 0.0
        %1699 = vmatpush2.msra.mxu0 0.0
        %1700 = vmatprep.subr.mxu0 0.0
        %1701 = vmatpush2.msra.mxu0 0.0
        %1702 = vmatprep.subr.mxu0 0.0
        %1703 = vmatpush2.msra.mxu0 0.0
        %1704 = vmatprep.subr.mxu0 %v1648
        %1705 = vmatpush2.msra.mxu0 %v1645
        %1706 = vmatprep.subr.mxu0 %v1629
        %1707 = vmatpush2.msra.mxu0 %v1628
        %1708 = vmatprep.subr.mxu0 %v1627
        %1709 = vmatpush2.msra.mxu0 %v1626
        %1710 = vmatprep.subr.mxu0 %v1625
        %1711 = vmatpush2.msra.mxu0 %v1624
        %1712 = vmatprep.subr.mxu0 %v1623
        %1713 = vmatpush2.msra.mxu0 %v1622
        %1714 = vmatprep.mubr.f32.mxu0 %v1640
        %1715 = vmatmul.mubr.f32.gmra.mxu0 %v1634
        %v1716 = vpop.f32.mrf.mxu0
        %v1717 = vadd.f32 0.0, %v1716
        %v1718 = vpop.f32.mrf.mxu0
        %v1719 = vadd.f32 0.0, %v1718
        %1720 = vmatprep.mubr.f32.mxu0 %v1642
        %1721 = vmatmul.mubr.f32.gmra.mxu0 %v1633
        %v1722 = vpop.f32.mrf.mxu0
        %v1723 = vadd.f32 0.0, %v1722
        %v1724 = vpop.f32.mrf.mxu0
        %v1725 = vadd.f32 0.0, %v1724
        %1726 = vdwg.mxu0
        %v1727 = vadd.f32 %v1579, %v1717
        %v1728 = vadd.f32 %v1581, %v1719
        %v1729 = vadd.f32 %v1585, %v1723
        %v1730 = vadd.f32 %v1587, %v1725
        %s1731 = scalar_lea.vmem %s4, 1008
        %v1732 = vld [vmem:[%s1731] sm:$0xff]
        %v1733 = vld [vmem:[%s1731 + $0x8] sm:$0xff]
        %v1734 = vld [vmem:[%s1731 + $0x10] sm:$0xff]
        %v1735 = vld [vmem:[%s1731 + $0x18] sm:$0xff]
        %v1736 = vld [vmem:[%s1731 + $0x20] sm:$0xff]
        %v1737 = vld [vmem:[%s1731 + $0x28] sm:$0xff]
        %v1738 = vld [vmem:[%s1731 + $0x30] sm:$0xff]
        %v1739 = vld [vmem:[%s1731 + $0x38] sm:$0xff]
        %v1740 = vld [vmem:[%s1731 + $0x40] sm:$0xff]
        %v1741 = vld [vmem:[%s1731 + $0x48] sm:$0xff]
        %v1742 = vld [vmem:[%s1731 + $0x50] sm:$0xff]
        %v1743 = vld [vmem:[%s1731 + $0x58] sm:$0xff]
        %v1744 = vld [vmem:[%s1731 + $0x60] sm:$0xff]
        %v1745 = vld [vmem:[%s1731 + $0x68] sm:$0xff]
        %v1746 = vld [vmem:[%s1731 + $0x70] sm:$0xff]
        %v1747 = vld [vmem:[%s1731 + $0x78] sm:$0xff]
        %v1748 = vld [vmem:[%s1731 + $0x80] sm:$0xff]
        %v1749 = vld [vmem:[%s1731 + $0x88] sm:$0xff]
        %v1750 = vld [vmem:[%s1731 + $0x90] sm:$0xff]
        %v1751 = vld [vmem:[%s1731 + $0x98] sm:$0xff]
        %v1752 = vld [vmem:[%s1731 + $0xa0] sm:$0xff]
        %v1753 = vld [vmem:[%s1731 + $0xa8] sm:$0xff]
        %v1754 = vld [vmem:[%s1731 + $0xb0] sm:$0xff]
        %v1755 = vld [vmem:[%s1731 + $0xb8] sm:$0xff]
        %v1756 = vld [vmem:[%s1731 + $0xc0] sm:$0xff]
        %v1757 = vld [vmem:[%s1731 + $0xc8] sm:$0xff]
        %v1758 = vld [vmem:[%s1731 + $0xd0] sm:$0xff]
        %v1759 = vld [vmem:[%s1731 + $0xd8] sm:$0xff]
        %v1760 = vld [vmem:[%s1731 + $0xe0] sm:$0xff]
        %v1761 = vld [vmem:[%s1731 + $0xe8] sm:$0xff]
        %v1762 = vld [vmem:[%s1731 + $0xf0] sm:$0xff]
        %v1763 = vld [vmem:[%s1731 + $0xf8] sm:$0xff]
        %v1764 = vld [vmem:[%s1731 + $0x100] sm:$0xff]
        %v1765 = vld [vmem:[%s1731 + $0x108] sm:$0xff]
        %v1766 = vld [vmem:[%s1731 + $0x110] sm:$0xff]
        %v1767 = vld [vmem:[%s1731 + $0x118] sm:$0xff]
        %v1768 = vld [vmem:[%s1731 + $0x120] sm:$0xff]
        %v1769 = vld [vmem:[%s1731 + $0x128] sm:$0xff]
        %v1770 = vld [vmem:[%s1731 + $0x130] sm:$0xff]
        %v1771 = vld [vmem:[%s1731 + $0x138] sm:$0xff]
        %v1772 = vld [vmem:[%s1731 + $0x140] sm:$0x3]
        %v1773 = vld [vmem:[%s1731 + $0x148] sm:$0x3]
        %v1774 = vrot.slane %v1306, 3
        %v1775 = vrot.slane %v1312, 3
        %v1776 = vsel %vm861, %v1774, %v1775
        %v1777 = vrot.slane %v1308, 3
        %v1778 = vrot.slane %v1314, 3
        %v1779 = vsel %vm861, %v1777, %v1778
        %v1782 = vsel %vm1413, %v1779, 0
        %v1784 = vsel %vm1413, %v1778, 0
        %v1787 = vsel %vm1418, %v1772, 0
        %v1790 = vsel %vm1418, %v1773, 0
        %1792 = vmatprep.subr.mxu0 %v1763
        %1793 = vmatpush1.msra.mxu0 %v1762
        %1794 = vmatprep.subr.mxu0 %v1761
        %1795 = vmatpush1.msra.mxu0 %v1760
        %1796 = vmatprep.subr.mxu0 %v1759
        %1797 = vmatpush1.msra.mxu0 %v1758
        %1798 = vmatprep.subr.mxu0 %v1757
        %1799 = vmatpush1.msra.mxu0 %v1756
        %1800 = vmatprep.subr.mxu0 %v1755
        %1801 = vmatpush1.msra.mxu0 %v1754
        %1802 = vmatprep.subr.mxu0 %v1753
        %1803 = vmatpush1.msra.mxu0 %v1752
        %1804 = vmatprep.subr.mxu0 %v1751
        %1805 = vmatpush1.msra.mxu0 %v1750
        %1806 = vmatprep.subr.mxu0 %v1749
        %1807 = vmatpush1.msra.mxu0 %v1748
        %1808 = vmatprep.subr.mxu0 %v1747
        %1809 = vmatpush1.msra.mxu0 %v1746
        %1810 = vmatprep.subr.mxu0 %v1745
        %1811 = vmatpush1.msra.mxu0 %v1744
        %1812 = vmatprep.subr.mxu0 %v1743
        %1813 = vmatpush1.msra.mxu0 %v1742
        %1814 = vmatprep.subr.mxu0 %v1741
        %1815 = vmatpush1.msra.mxu0 %v1740
        %1816 = vmatprep.subr.mxu0 %v1739
        %1817 = vmatpush1.msra.mxu0 %v1738
        %1818 = vmatprep.subr.mxu0 %v1737
        %1819 = vmatpush1.msra.mxu0 %v1736
        %1820 = vmatprep.subr.mxu0 %v1735
        %1821 = vmatpush1.msra.mxu0 %v1734
        %1822 = vmatprep.subr.mxu0 %v1733
        %1823 = vmatpush1.msra.mxu0 %v1732
        %1824 = vmatprep.subr.mxu0 0.0
        %1825 = vmatpush2.msra.mxu0 0.0
        %1826 = vmatprep.subr.mxu0 0.0
        %1827 = vmatpush2.msra.mxu0 0.0
        %1828 = vmatprep.subr.mxu0 0.0
        %1829 = vmatpush2.msra.mxu0 0.0
        %1830 = vmatprep.subr.mxu0 0.0
        %1831 = vmatpush2.msra.mxu0 0.0
        %1832 = vmatprep.subr.mxu0 0.0
        %1833 = vmatpush2.msra.mxu0 0.0
        %1834 = vmatprep.subr.mxu0 0.0
        %1835 = vmatpush2.msra.mxu0 0.0
        %1836 = vmatprep.subr.mxu0 0.0
        %1837 = vmatpush2.msra.mxu0 0.0
        %1838 = vmatprep.subr.mxu0 0.0
        %1839 = vmatpush2.msra.mxu0 0.0
        %1840 = vmatprep.subr.mxu0 0.0
        %1841 = vmatpush2.msra.mxu0 0.0
        %1842 = vmatprep.subr.mxu0 0.0
        %1843 = vmatpush2.msra.mxu0 0.0
        %1844 = vmatprep.subr.mxu0 0.0
        %1845 = vmatpush2.msra.mxu0 0.0
        %1846 = vmatprep.subr.mxu0 %v1790
        %1847 = vmatpush2.msra.mxu0 %v1787
        %1848 = vmatprep.subr.mxu0 %v1771
        %1849 = vmatpush2.msra.mxu0 %v1770
        %1850 = vmatprep.subr.mxu0 %v1769
        %1851 = vmatpush2.msra.mxu0 %v1768
        %1852 = vmatprep.subr.mxu0 %v1767
        %1853 = vmatpush2.msra.mxu0 %v1766
        %1854 = vmatprep.subr.mxu0 %v1765
        %1855 = vmatpush2.msra.mxu0 %v1764
        %1856 = vmatprep.mubr.f32.mxu0 %v1782
        %1857 = vmatmul.mubr.f32.gmra.mxu0 %v1776
        %v1858 = vpop.f32.mrf.mxu0
        %v1859 = vadd.f32 0.0, %v1858
        %v1860 = vpop.f32.mrf.mxu0
        %v1861 = vadd.f32 0.0, %v1860
        %1862 = vmatprep.mubr.f32.mxu0 %v1784
        %1863 = vmatmul.mubr.f32.gmra.mxu0 %v1775
        %v1864 = vpop.f32.mrf.mxu0
        %v1865 = vadd.f32 0.0, %v1864
        %v1866 = vpop.f32.mrf.mxu0
        %v1867 = vadd.f32 0.0, %v1866
        %1868 = vdwg.mxu0
        %v1869 = vadd.f32 %v1727, %v1859
        %v1870 = vadd.f32 %v1728, %v1861
        %v1871 = vadd.f32 %v1729, %v1865
        %v1872 = vadd.f32 %v1730, %v1867
        %s1873 = scalar_lea.vmem %s4, 1344
        %v1874 = vld [vmem:[%s1873] sm:$0xff]
        %v1875 = vld [vmem:[%s1873 + $0x8] sm:$0xff]
        %v1876 = vld [vmem:[%s1873 + $0x10] sm:$0xff]
        %v1877 = vld [vmem:[%s1873 + $0x18] sm:$0xff]
        %v1878 = vld [vmem:[%s1873 + $0x20] sm:$0xff]
        %v1879 = vld [vmem:[%s1873 + $0x28] sm:$0xff]
        %v1880 = vld [vmem:[%s1873 + $0x30] sm:$0xff]
        %v1881 = vld [vmem:[%s1873 + $0x38] sm:$0xff]
        %v1882 = vld [vmem:[%s1873 + $0x40] sm:$0xff]
        %v1883 = vld [vmem:[%s1873 + $0x48] sm:$0xff]
        %v1884 = vld [vmem:[%s1873 + $0x50] sm:$0xff]
        %v1885 = vld [vmem:[%s1873 + $0x58] sm:$0xff]
        %v1886 = vld [vmem:[%s1873 + $0x60] sm:$0xff]
        %v1887 = vld [vmem:[%s1873 + $0x68] sm:$0xff]
        %v1888 = vld [vmem:[%s1873 + $0x70] sm:$0xff]
        %v1889 = vld [vmem:[%s1873 + $0x78] sm:$0xff]
        %v1890 = vld [vmem:[%s1873 + $0x80] sm:$0xff]
        %v1891 = vld [vmem:[%s1873 + $0x88] sm:$0xff]
        %v1892 = vld [vmem:[%s1873 + $0x90] sm:$0xff]
        %v1893 = vld [vmem:[%s1873 + $0x98] sm:$0xff]
        %v1894 = vld [vmem:[%s1873 + $0xa0] sm:$0xff]
        %v1895 = vld [vmem:[%s1873 + $0xa8] sm:$0xff]
        %v1896 = vld [vmem:[%s1873 + $0xb0] sm:$0xff]
        %v1897 = vld [vmem:[%s1873 + $0xb8] sm:$0xff]
        %v1898 = vld [vmem:[%s1873 + $0xc0] sm:$0xff]
        %v1899 = vld [vmem:[%s1873 + $0xc8] sm:$0xff]
        %v1900 = vld [vmem:[%s1873 + $0xd0] sm:$0xff]
        %v1901 = vld [vmem:[%s1873 + $0xd8] sm:$0xff]
        %v1902 = vld [vmem:[%s1873 + $0xe0] sm:$0xff]
        %v1903 = vld [vmem:[%s1873 + $0xe8] sm:$0xff]
        %v1904 = vld [vmem:[%s1873 + $0xf0] sm:$0xff]
        %v1905 = vld [vmem:[%s1873 + $0xf8] sm:$0xff]
        %v1906 = vld [vmem:[%s1873 + $0x100] sm:$0xff]
        %v1907 = vld [vmem:[%s1873 + $0x108] sm:$0xff]
        %v1908 = vld [vmem:[%s1873 + $0x110] sm:$0xff]
        %v1909 = vld [vmem:[%s1873 + $0x118] sm:$0xff]
        %v1910 = vld [vmem:[%s1873 + $0x120] sm:$0xff]
        %v1911 = vld [vmem:[%s1873 + $0x128] sm:$0xff]
        %v1912 = vld [vmem:[%s1873 + $0x130] sm:$0xff]
        %v1913 = vld [vmem:[%s1873 + $0x138] sm:$0xff]
        %v1914 = vld [vmem:[%s1873 + $0x140] sm:$0x3]
        %v1915 = vld [vmem:[%s1873 + $0x148] sm:$0x3]
        %v1916 = vrot.slane %v1306, 4
        %v1917 = vrot.slane %v1312, 4
        %v1918 = vsel %vm999, %v1916, %v1917
        %v1919 = vrot.slane %v1308, 4
        %v1920 = vrot.slane %v1314, 4
        %v1921 = vsel %vm999, %v1919, %v1920
        %v1924 = vsel %vm1413, %v1921, 0
        %v1926 = vsel %vm1413, %v1920, 0
        %v1929 = vsel %vm1418, %v1914, 0
        %v1932 = vsel %vm1418, %v1915, 0
        %1934 = vmatprep.subr.mxu0 %v1905
        %1935 = vmatpush1.msra.mxu0 %v1904
        %1936 = vmatprep.subr.mxu0 %v1903
        %1937 = vmatpush1.msra.mxu0 %v1902
        %1938 = vmatprep.subr.mxu0 %v1901
        %1939 = vmatpush1.msra.mxu0 %v1900
        %1940 = vmatprep.subr.mxu0 %v1899
        %1941 = vmatpush1.msra.mxu0 %v1898
        %1942 = vmatprep.subr.mxu0 %v1897
        %1943 = vmatpush1.msra.mxu0 %v1896
        %1944 = vmatprep.subr.mxu0 %v1895
        %1945 = vmatpush1.msra.mxu0 %v1894
        %1946 = vmatprep.subr.mxu0 %v1893
        %1947 = vmatpush1.msra.mxu0 %v1892
        %1948 = vmatprep.subr.mxu0 %v1891
        %1949 = vmatpush1.msra.mxu0 %v1890
        %1950 = vmatprep.subr.mxu0 %v1889
        %1951 = vmatpush1.msra.mxu0 %v1888
        %1952 = vmatprep.subr.mxu0 %v1887
        %1953 = vmatpush1.msra.mxu0 %v1886
        %1954 = vmatprep.subr.mxu0 %v1885
        %1955 = vmatpush1.msra.mxu0 %v1884
        %1956 = vmatprep.subr.mxu0 %v1883
        %1957 = vmatpush1.msra.mxu0 %v1882
        %1958 = vmatprep.subr.mxu0 %v1881
        %1959 = vmatpush1.msra.mxu0 %v1880
        %1960 = vmatprep.subr.mxu0 %v1879
        %1961 = vmatpush1.msra.mxu0 %v1878
        %1962 = vmatprep.subr.mxu0 %v1877
        %1963 = vmatpush1.msra.mxu0 %v1876
        %1964 = vmatprep.subr.mxu0 %v1875
        %1965 = vmatpush1.msra.mxu0 %v1874
        %1966 = vmatprep.subr.mxu0 0.0
        %1967 = vmatpush2.msra.mxu0 0.0
        %1968 = vmatprep.subr.mxu0 0.0
        %1969 = vmatpush2.msra.mxu0 0.0
        %1970 = vmatprep.subr.mxu0 0.0
        %1971 = vmatpush2.msra.mxu0 0.0
        %1972 = vmatprep.subr.mxu0 0.0
        %1973 = vmatpush2.msra.mxu0 0.0
        %1974 = vmatprep.subr.mxu0 0.0
        %1975 = vmatpush2.msra.mxu0 0.0
        %1976 = vmatprep.subr.mxu0 0.0
        %1977 = vmatpush2.msra.mxu0 0.0
        %1978 = vmatprep.subr.mxu0 0.0
        %1979 = vmatpush2.msra.mxu0 0.0
        %1980 = vmatprep.subr.mxu0 0.0
        %1981 = vmatpush2.msra.mxu0 0.0
        %1982 = vmatprep.subr.mxu0 0.0
        %1983 = vmatpush2.msra.mxu0 0.0
        %1984 = vmatprep.subr.mxu0 0.0
        %1985 = vmatpush2.msra.mxu0 0.0
        %1986 = vmatprep.subr.mxu0 0.0
        %1987 = vmatpush2.msra.mxu0 0.0
        %1988 = vmatprep.subr.mxu0 %v1932
        %1989 = vmatpush2.msra.mxu0 %v1929
        %1990 = vmatprep.subr.mxu0 %v1913
        %1991 = vmatpush2.msra.mxu0 %v1912
        %1992 = vmatprep.subr.mxu0 %v1911
        %1993 = vmatpush2.msra.mxu0 %v1910
        %1994 = vmatprep.subr.mxu0 %v1909
        %1995 = vmatpush2.msra.mxu0 %v1908
        %1996 = vmatprep.subr.mxu0 %v1907
        %1997 = vmatpush2.msra.mxu0 %v1906
        %1998 = vmatprep.mubr.f32.mxu0 %v1924
        %1999 = vmatmul.mubr.f32.gmra.mxu0 %v1918
        %v2000 = vpop.f32.mrf.mxu0
        %v2001 = vadd.f32 0.0, %v2000
        %v2002 = vpop.f32.mrf.mxu0
        %v2003 = vadd.f32 0.0, %v2002
        %2004 = vmatprep.mubr.f32.mxu0 %v1926
        %2005 = vmatmul.mubr.f32.gmra.mxu0 %v1917
        %v2006 = vpop.f32.mrf.mxu0
        %v2007 = vadd.f32 0.0, %v2006
        %v2008 = vpop.f32.mrf.mxu0
        %v2009 = vadd.f32 0.0, %v2008
        %2010 = vdwg.mxu0
        %v2011 = vadd.f32 %v1869, %v2001
        %v2012 = vadd.f32 %v1870, %v2003
        %v2013 = vadd.f32 %v1871, %v2007
        %v2014 = vadd.f32 %v1872, %v2009
        %v2015 = vld [vmem:[%s5] sm:$0x3]
        %v2017 = vlaneseq
        %v2018 = vshrl.u32 %v2017, 7
        %v2019 = vsub.s32 0, %v2018
        %v2020 = vrot.slane %v2015, %v2019
        %v2021 = vlaneseq
        %v2022 = vshrl.u32 %v2021, 7
        %v2023 = vsub.s32 1, %v2022
        %v2024 = vrot.slane %v2015, %v2023
        %v2027 = vadd.f32 %v2011, %v2020
        %v2028 = vadd.f32 %v2012, %v2024
        %v2029 = vadd.f32 %v2013, %v2020
        %v2030 = vadd.f32 %v2014, %v2024
        %v2031 = vmax.f32 %v2027, 0.0
        %v2032 = vmax.f32 %v2028, 0.0
        %v2033 = vmax.f32 %v2029, 0.0
        %v2034 = vmax.f32 %v2030, 0.0
        %v2039 = vrot.slane %v2031, 1
        %v2040 = vrot.slane %v2033, 1
        %v2041 = vsel %vm495, %v2039, %v2040
        %v2042 = vrot.slane %v2032, 1
        %v2043 = vrot.slane %v2034, 1
        %v2044 = vsel %vm495, %v2042, %v2043
        %v2049 = vmax.f32 %v2031, %v2041
        %v2050 = vmax.f32 %v2032, %v2044
        %v2051 = vmax.f32 %v2033, %v2040
        %v2052 = vmax.f32 %v2034, %v2043
        %2057 = vrot.lane.b32.xlu0 %v2049, 112
        %v2058 = vpop.permute.xlu0 %2057
        %2059 = vrot.lane.b32.xlu0 %v2050, 112
        %v2060 = vpop.permute.xlu0 %2059
        %2061 = vrot.lane.b32.xlu0 %v2051, 112
        %v2062 = vpop.permute.xlu0 %2061
        %2063 = vrot.lane.b32.xlu0 %v2052, 112
        %v2064 = vpop.permute.xlu0 %2063
        %vm2065 = vcmask 916480
        %v2066 = vsel %vm2065, %v2058, %v2060
        %v2067 = vsel %vm2065, %v2062, %v2064
        %v2072 = vmax.f32 %v2049, %v2066
        %v2073 = vmax.f32 %v2050, %v2060
        %v2074 = vmax.f32 %v2051, %v2067
        %v2075 = vmax.f32 %v2052, %v2064
        %v2076 = vld [vmem:[%s7] sm:$0xff]
        %v2077 = vld [vmem:[%s7 + $0x8] sm:$0x1]
        %v2078 = vld [vmem:[%s6] sm:$0xff]
        %v2079 = vld [vmem:[%s6 + $0x8] sm:$0xff]
        %v2080 = vld [vmem:[%s6 + $0x10] sm:$0xff]
        %v2081 = vld [vmem:[%s6 + $0x18] sm:$0xff]
        %v2082 = vld [vmem:[%s6 + $0x20] sm:$0xff]
        %v2083 = vld [vmem:[%s6 + $0x28] sm:$0xff]
        %v2084 = vld [vmem:[%s6 + $0x30] sm:$0xff]
        %v2085 = vld [vmem:[%s6 + $0x38] sm:$0xff]
        %v2086 = vld [vmem:[%s6 + $0x40] sm:$0xff]
        %v2087 = vld [vmem:[%s6 + $0x48] sm:$0xff]
        %v2088 = vld [vmem:[%s6 + $0x50] sm:$0xff]
        %v2089 = vld [vmem:[%s6 + $0x58] sm:$0xff]
        %v2090 = vld [vmem:[%s6 + $0x60] sm:$0xff]
        %v2091 = vld [vmem:[%s6 + $0x68] sm:$0xff]
        %v2092 = vld [vmem:[%s6 + $0x70] sm:$0xff]
        %v2093 = vld [vmem:[%s6 + $0x78] sm:$0xff]
        %v2094 = vld [vmem:[%s6 + $0x80] sm:$0xff]
        %v2095 = vld [vmem:[%s6 + $0x88] sm:$0xff]
        %vm2096 = vcmask 130048
        %v2098 = vsel %vm2096, %v2073, 0
        %v2101 = vsel %vm2096, %v2075, 0
        %2103 = vmatprep.subr.mxu0 0.0
        %2104 = vmatpush1.msra.mxu0 %v2093
        %2105 = vmatprep.subr.mxu0 0.0
        %2106 = vmatpush1.msra.mxu0 %v2092
        %2107 = vmatprep.subr.mxu0 0.0
        %2108 = vmatpush1.msra.mxu0 %v2091
        %2109 = vmatprep.subr.mxu0 0.0
        %2110 = vmatpush1.msra.mxu0 %v2090
        %2111 = vmatprep.subr.mxu0 0.0
        %2112 = vmatpush1.msra.mxu0 %v2089
        %2113 = vmatprep.subr.mxu0 0.0
        %2114 = vmatpush1.msra.mxu0 %v2088
        %2115 = vmatprep.subr.mxu0 0.0
        %2116 = vmatpush1.msra.mxu0 %v2087
        %2117 = vmatprep.subr.mxu0 0.0
        %2118 = vmatpush1.msra.mxu0 %v2086
        %2119 = vmatprep.subr.mxu0 0.0
        %2120 = vmatpush1.msra.mxu0 %v2085
        %2121 = vmatprep.subr.mxu0 0.0
        %2122 = vmatpush1.msra.mxu0 %v2084
        %2123 = vmatprep.subr.mxu0 0.0
        %2124 = vmatpush1.msra.mxu0 %v2083
        %2125 = vmatprep.subr.mxu0 0.0
        %2126 = vmatpush1.msra.mxu0 %v2082
        %2127 = vmatprep.subr.mxu0 0.0
        %2128 = vmatpush1.msra.mxu0 %v2081
        %2129 = vmatprep.subr.mxu0 0.0
        %2130 = vmatpush1.msra.mxu0 %v2080
        %2131 = vmatprep.subr.mxu0 0.0
        %2132 = vmatpush1.msra.mxu0 %v2079
        %2133 = vmatprep.subr.mxu0 0.0
        %2134 = vmatpush1.msra.mxu0 %v2078
        %2135 = vmatprep.subr.mxu0 0.0
        %2136 = vmatpush2.msra.mxu0 0.0
        %2137 = vmatprep.subr.mxu0 0.0
        %2138 = vmatpush2.msra.mxu0 0.0
        %2139 = vmatprep.subr.mxu0 0.0
        %2140 = vmatpush2.msra.mxu0 0.0
        %2141 = vmatprep.subr.mxu0 0.0
        %2142 = vmatpush2.msra.mxu0 0.0
        %2143 = vmatprep.subr.mxu0 0.0
        %2144 = vmatpush2.msra.mxu0 0.0
        %2145 = vmatprep.subr.mxu0 0.0
        %2146 = vmatpush2.msra.mxu0 0.0
        %2147 = vmatprep.subr.mxu0 0.0
        %2148 = vmatpush2.msra.mxu0 0.0
        %2149 = vmatprep.subr.mxu0 0.0
        %2150 = vmatpush2.msra.mxu0 0.0
        %2151 = vmatprep.subr.mxu0 0.0
        %2152 = vmatpush2.msra.mxu0 0.0
        %2153 = vmatprep.subr.mxu0 0.0
        %2154 = vmatpush2.msra.mxu0 0.0
        %2155 = vmatprep.subr.mxu0 0.0
        %2156 = vmatpush2.msra.mxu0 0.0
        %2157 = vmatprep.subr.mxu0 0.0
        %2158 = vmatpush2.msra.mxu0 0.0
        %2159 = vmatprep.subr.mxu0 0.0
        %2160 = vmatpush2.msra.mxu0 0.0
        %2161 = vmatprep.subr.mxu0 0.0
        %2162 = vmatpush2.msra.mxu0 0.0
        %2163 = vmatprep.subr.mxu0 0.0
        %2164 = vmatpush2.msra.mxu0 %v2095
        %2165 = vmatprep.subr.mxu0 0.0
        %2166 = vmatpush2.msra.mxu0 %v2094
        %2167 = vmatprep.mubr.f32.mxu0 %v2098
        %2168 = vmatmul.mubr.f32.gmra.mxu0 %v2072
        %v2169 = vpop.f32.mrf.mxu0
        %v2170 = vadd.f32 0.0, %v2169
        %v2171 = vpop.f32.mrf.mxu0
        %2172 = vmatprep.mubr.f32.mxu0 %v2101
        %2173 = vmatmul.mubr.f32.gmra.mxu0 %v2074
        %v2174 = vpop.f32.mrf.mxu0
        %v2175 = vadd.f32 0.0, %v2174
        %v2176 = vpop.f32.mrf.mxu0
        %2177 = vdwg.mxu0
        %2179 = vset.pattern.permute.xlu0 0
        %2180 = vperm.xlu0 %2179, %v2076
        %v2181 = vpop.permute.xlu0 %2180
        %2184 = vset.pattern.permute.xlu0 0
        %2185 = vperm.xlu0 %2184, %v2077
        %v2186 = vpop.permute.xlu0 %2185
        %v2188 = vmul.f32 %v2181, %v2170
        %v2189 = vmul.f32 %v2186, %v2175
        %v2190 = vadd.f32 %v2188, 0.0
        %v2191 = vadd.f32 %v2189, 0.0
        %s2192 = scalar_lea.vmem %s7, 16
        %v2193 = vld [vmem:[%s2192] sm:$0xff]
        %v2194 = vld [vmem:[%s2192 + $0x8] sm:$0x1]
        %s2195 = scalar_lea.vmem %s6, 144
        %v2196 = vld [vmem:[%s2195] sm:$0xff]
        %v2197 = vld [vmem:[%s2195 + $0x8] sm:$0xff]
        %v2198 = vld [vmem:[%s2195 + $0x10] sm:$0xff]
        %v2199 = vld [vmem:[%s2195 + $0x18] sm:$0xff]
        %v2200 = vld [vmem:[%s2195 + $0x20] sm:$0xff]
        %v2201 = vld [vmem:[%s2195 + $0x28] sm:$0xff]
        %v2202 = vld [vmem:[%s2195 + $0x30] sm:$0xff]
        %v2203 = vld [vmem:[%s2195 + $0x38] sm:$0xff]
        %v2204 = vld [vmem:[%s2195 + $0x40] sm:$0xff]
        %v2205 = vld [vmem:[%s2195 + $0x48] sm:$0xff]
        %v2206 = vld [vmem:[%s2195 + $0x50] sm:$0xff]
        %v2207 = vld [vmem:[%s2195 + $0x58] sm:$0xff]
        %v2208 = vld [vmem:[%s2195 + $0x60] sm:$0xff]
        %v2209 = vld [vmem:[%s2195 + $0x68] sm:$0xff]
        %v2210 = vld [vmem:[%s2195 + $0x70] sm:$0xff]
        %v2211 = vld [vmem:[%s2195 + $0x78] sm:$0xff]
        %v2212 = vld [vmem:[%s2195 + $0x80] sm:$0xff]
        %v2213 = vld [vmem:[%s2195 + $0x88] sm:$0xff]
        %2214 = vmatprep.subr.mxu0 0.0
        %2215 = vmatpush1.msra.mxu0 %v2211
        %2216 = vmatprep.subr.mxu0 0.0
        %2217 = vmatpush1.msra.mxu0 %v2210
        %2218 = vmatprep.subr.mxu0 0.0
        %2219 = vmatpush1.msra.mxu0 %v2209
        %2220 = vmatprep.subr.mxu0 0.0
        %2221 = vmatpush1.msra.mxu0 %v2208
        %2222 = vmatprep.subr.mxu0 0.0
        %2223 = vmatpush1.msra.mxu0 %v2207
        %2224 = vmatprep.subr.mxu0 0.0
        %2225 = vmatpush1.msra.mxu0 %v2206
        %2226 = vmatprep.subr.mxu0 0.0
        %2227 = vmatpush1.msra.mxu0 %v2205
        %2228 = vmatprep.subr.mxu0 0.0
        %2229 = vmatpush1.msra.mxu0 %v2204
        %2230 = vmatprep.subr.mxu0 0.0
        %2231 = vmatpush1.msra.mxu0 %v2203
        %2232 = vmatprep.subr.mxu0 0.0
        %2233 = vmatpush1.msra.mxu0 %v2202
        %2234 = vmatprep.subr.mxu0 0.0
        %2235 = vmatpush1.msra.mxu0 %v2201
        %2236 = vmatprep.subr.mxu0 0.0
        %2237 = vmatpush1.msra.mxu0 %v2200
        %2238 = vmatprep.subr.mxu0 0.0
        %2239 = vmatpush1.msra.mxu0 %v2199
        %2240 = vmatprep.subr.mxu0 0.0
        %2241 = vmatpush1.msra.mxu0 %v2198
        %2242 = vmatprep.subr.mxu0 0.0
        %2243 = vmatpush1.msra.mxu0 %v2197
        %2244 = vmatprep.subr.mxu0 0.0
        %2245 = vmatpush1.msra.mxu0 %v2196
        %2246 = vmatprep.subr.mxu0 0.0
        %2247 = vmatpush2.msra.mxu0 0.0
        %2248 = vmatprep.subr.mxu0 0.0
        %2249 = vmatpush2.msra.mxu0 0.0
        %2250 = vmatprep.subr.mxu0 0.0
        %2251 = vmatpush2.msra.mxu0 0.0
        %2252 = vmatprep.subr.mxu0 0.0
        %2253 = vmatpush2.msra.mxu0 0.0
        %2254 = vmatprep.subr.mxu0 0.0
        %2255 = vmatpush2.msra.mxu0 0.0
        %2256 = vmatprep.subr.mxu0 0.0
        %2257 = vmatpush2.msra.mxu0 0.0
        %2258 = vmatprep.subr.mxu0 0.0
        %2259 = vmatpush2.msra.mxu0 0.0
        %2260 = vmatprep.subr.mxu0 0.0
        %2261 = vmatpush2.msra.mxu0 0.0
        %2262 = vmatprep.subr.mxu0 0.0
        %2263 = vmatpush2.msra.mxu0 0.0
        %2264 = vmatprep.subr.mxu0 0.0
        %2265 = vmatpush2.msra.mxu0 0.0
        %2266 = vmatprep.subr.mxu0 0.0
        %2267 = vmatpush2.msra.mxu0 0.0
        %2268 = vmatprep.subr.mxu0 0.0
        %2269 = vmatpush2.msra.mxu0 0.0
        %2270 = vmatprep.subr.mxu0 0.0
        %2271 = vmatpush2.msra.mxu0 0.0
        %2272 = vmatprep.subr.mxu0 0.0
        %2273 = vmatpush2.msra.mxu0 0.0
        %2274 = vmatprep.subr.mxu0 0.0
        %2275 = vmatpush2.msra.mxu0 %v2213
        %2276 = vmatprep.subr.mxu0 0.0
        %2277 = vmatpush2.msra.mxu0 %v2212
        %2278 = vmatprep.mubr.f32.mxu0 %v2098
        %2279 = vmatmul.mubr.f32.gmra.mxu0 %v2072
        %v2280 = vpop.f32.mrf.mxu0
        %v2281 = vadd.f32 0.0, %v2280
        %v2282 = vpop.f32.mrf.mxu0
        %2283 = vmatprep.mubr.f32.mxu0 %v2101
        %2284 = vmatmul.mubr.f32.gmra.mxu0 %v2074
        %v2285 = vpop.f32.mrf.mxu0
        %v2286 = vadd.f32 0.0, %v2285
        %v2287 = vpop.f32.mrf.mxu0
        %2288 = vdwg.mxu0
        %2290 = vset.pattern.permute.xlu0 0
        %2291 = vperm.xlu0 %2290, %v2193
        %v2292 = vpop.permute.xlu0 %2291
        %2295 = vset.pattern.permute.xlu0 0
        %2296 = vperm.xlu0 %2295, %v2194
        %v2297 = vpop.permute.xlu0 %2296
        %v2299 = vmul.f32 %v2292, %v2281
        %v2300 = vmul.f32 %v2297, %v2286
        %v2301 = vadd.f32 %v2190, %v2299
        %v2302 = vadd.f32 %v2191, %v2300
        %s2303 = scalar_lea.vmem %s7, 32
        %v2304 = vld [vmem:[%s2303] sm:$0xff]
        %v2305 = vld [vmem:[%s2303 + $0x8] sm:$0x1]
        %s2306 = scalar_lea.vmem %s6, 288
        %v2307 = vld [vmem:[%s2306] sm:$0xff]
        %v2308 = vld [vmem:[%s2306 + $0x8] sm:$0xff]
        %v2309 = vld [vmem:[%s2306 + $0x10] sm:$0xff]
        %v2310 = vld [vmem:[%s2306 + $0x18] sm:$0xff]
        %v2311 = vld [vmem:[%s2306 + $0x20] sm:$0xff]
        %v2312 = vld [vmem:[%s2306 + $0x28] sm:$0xff]
        %v2313 = vld [vmem:[%s2306 + $0x30] sm:$0xff]
        %v2314 = vld [vmem:[%s2306 + $0x38] sm:$0xff]
        %v2315 = vld [vmem:[%s2306 + $0x40] sm:$0xff]
        %v2316 = vld [vmem:[%s2306 + $0x48] sm:$0xff]
        %v2317 = vld [vmem:[%s2306 + $0x50] sm:$0xff]
        %v2318 = vld [vmem:[%s2306 + $0x58] sm:$0xff]
        %v2319 = vld [vmem:[%s2306 + $0x60] sm:$0xff]
        %v2320 = vld [vmem:[%s2306 + $0x68] sm:$0xff]
        %v2321 = vld [vmem:[%s2306 + $0x70] sm:$0xff]
        %v2322 = vld [vmem:[%s2306 + $0x78] sm:$0xff]
        %v2323 = vld [vmem:[%s2306 + $0x80] sm:$0xff]
        %v2324 = vld [vmem:[%s2306 + $0x88] sm:$0xff]
        %2325 = vmatprep.subr.mxu0 0.0
        %2326 = vmatpush1.msra.mxu0 %v2322
        %2327 = vmatprep.subr.mxu0 0.0
        %2328 = vmatpush1.msra.mxu0 %v2321
        %2329 = vmatprep.subr.mxu0 0.0
        %2330 = vmatpush1.msra.mxu0 %v2320
        %2331 = vmatprep.subr.mxu0 0.0
        %2332 = vmatpush1.msra.mxu0 %v2319
        %2333 = vmatprep.subr.mxu0 0.0
        %2334 = vmatpush1.msra.mxu0 %v2318
        %2335 = vmatprep.subr.mxu0 0.0
        %2336 = vmatpush1.msra.mxu0 %v2317
        %2337 = vmatprep.subr.mxu0 0.0
        %2338 = vmatpush1.msra.mxu0 %v2316
        %2339 = vmatprep.subr.mxu0 0.0
        %2340 = vmatpush1.msra.mxu0 %v2315
        %2341 = vmatprep.subr.mxu0 0.0
        %2342 = vmatpush1.msra.mxu0 %v2314
        %2343 = vmatprep.subr.mxu0 0.0
        %2344 = vmatpush1.msra.mxu0 %v2313
        %2345 = vmatprep.subr.mxu0 0.0
        %2346 = vmatpush1.msra.mxu0 %v2312
        %2347 = vmatprep.subr.mxu0 0.0
        %2348 = vmatpush1.msra.mxu0 %v2311
        %2349 = vmatprep.subr.mxu0 0.0
        %2350 = vmatpush1.msra.mxu0 %v2310
        %2351 = vmatprep.subr.mxu0 0.0
        %2352 = vmatpush1.msra.mxu0 %v2309
        %2353 = vmatprep.subr.mxu0 0.0
        %2354 = vmatpush1.msra.mxu0 %v2308
        %2355 = vmatprep.subr.mxu0 0.0
        %2356 = vmatpush1.msra.mxu0 %v2307
        %2357 = vmatprep.subr.mxu0 0.0
        %2358 = vmatpush2.msra.mxu0 0.0
        %2359 = vmatprep.subr.mxu0 0.0
        %2360 = vmatpush2.msra.mxu0 0.0
        %2361 = vmatprep.subr.mxu0 0.0
        %2362 = vmatpush2.msra.mxu0 0.0
        %2363 = vmatprep.subr.mxu0 0.0
        %2364 = vmatpush2.msra.mxu0 0.0
        %2365 = vmatprep.subr.mxu0 0.0
        %2366 = vmatpush2.msra.mxu0 0.0
        %2367 = vmatprep.subr.mxu0 0.0
        %2368 = vmatpush2.msra.mxu0 0.0
        %2369 = vmatprep.subr.mxu0 0.0
        %2370 = vmatpush2.msra.mxu0 0.0
        %2371 = vmatprep.subr.mxu0 0.0
        %2372 = vmatpush2.msra.mxu0 0.0
        %2373 = vmatprep.subr.mxu0 0.0
        %2374 = vmatpush2.msra.mxu0 0.0
        %2375 = vmatprep.subr.mxu0 0.0
        %2376 = vmatpush2.msra.mxu0 0.0
        %2377 = vmatprep.subr.mxu0 0.0
        %2378 = vmatpush2.msra.mxu0 0.0
        %2379 = vmatprep.subr.mxu0 0.0
        %2380 = vmatpush2.msra.mxu0 0.0
        %2381 = vmatprep.subr.mxu0 0.0
        %2382 = vmatpush2.msra.mxu0 0.0
        %2383 = vmatprep.subr.mxu0 0.0
        %2384 = vmatpush2.msra.mxu0 0.0
        %2385 = vmatprep.subr.mxu0 0.0
        %2386 = vmatpush2.msra.mxu0 %v2324
        %2387 = vmatprep.subr.mxu0 0.0
        %2388 = vmatpush2.msra.mxu0 %v2323
        %2389 = vmatprep.mubr.f32.mxu0 %v2098
        %2390 = vmatmul.mubr.f32.gmra.mxu0 %v2072
        %v2391 = vpop.f32.mrf.mxu0
        %v2392 = vadd.f32 0.0, %v2391
        %v2393 = vpop.f32.mrf.mxu0
        %2394 = vmatprep.mubr.f32.mxu0 %v2101
        %2395 = vmatmul.mubr.f32.gmra.mxu0 %v2074
        %v2396 = vpop.f32.mrf.mxu0
        %v2397 = vadd.f32 0.0, %v2396
        %v2398 = vpop.f32.mrf.mxu0
        %2399 = vdwg.mxu0
        %2401 = vset.pattern.permute.xlu0 0
        %2402 = vperm.xlu0 %2401, %v2304
        %v2403 = vpop.permute.xlu0 %2402
        %2406 = vset.pattern.permute.xlu0 0
        %2407 = vperm.xlu0 %2406, %v2305
        %v2408 = vpop.permute.xlu0 %2407
        %v2410 = vmul.f32 %v2403, %v2392
        %v2411 = vmul.f32 %v2408, %v2397
        %v2412 = vadd.f32 %v2301, %v2410
        %v2413 = vadd.f32 %v2302, %v2411
        %s2414 = scalar_lea.vmem %s7, 48
        %v2415 = vld [vmem:[%s2414] sm:$0xff]
        %v2416 = vld [vmem:[%s2414 + $0x8] sm:$0x1]
        %s2417 = scalar_lea.vmem %s6, 432
        %v2418 = vld [vmem:[%s2417] sm:$0xff]
        %v2419 = vld [vmem:[%s2417 + $0x8] sm:$0xff]
        %v2420 = vld [vmem:[%s2417 + $0x10] sm:$0xff]
        %v2421 = vld [vmem:[%s2417 + $0x18] sm:$0xff]
        %v2422 = vld [vmem:[%s2417 + $0x20] sm:$0xff]
        %v2423 = vld [vmem:[%s2417 + $0x28] sm:$0xff]
        %v2424 = vld [vmem:[%s2417 + $0x30] sm:$0xff]
        %v2425 = vld [vmem:[%s2417 + $0x38] sm:$0xff]
        %v2426 = vld [vmem:[%s2417 + $0x40] sm:$0xff]
        %v2427 = vld [vmem:[%s2417 + $0x48] sm:$0xff]
        %v2428 = vld [vmem:[%s2417 + $0x50] sm:$0xff]
        %v2429 = vld [vmem:[%s2417 + $0x58] sm:$0xff]
        %v2430 = vld [vmem:[%s2417 + $0x60] sm:$0xff]
        %v2431 = vld [vmem:[%s2417 + $0x68] sm:$0xff]
        %v2432 = vld [vmem:[%s2417 + $0x70] sm:$0xff]
        %v2433 = vld [vmem:[%s2417 + $0x78] sm:$0xff]
        %v2434 = vld [vmem:[%s2417 + $0x80] sm:$0xff]
        %v2435 = vld [vmem:[%s2417 + $0x88] sm:$0xff]
        %2436 = vmatprep.subr.mxu0 0.0
        %2437 = vmatpush1.msra.mxu0 %v2433
        %2438 = vmatprep.subr.mxu0 0.0
        %2439 = vmatpush1.msra.mxu0 %v2432
        %2440 = vmatprep.subr.mxu0 0.0
        %2441 = vmatpush1.msra.mxu0 %v2431
        %2442 = vmatprep.subr.mxu0 0.0
        %2443 = vmatpush1.msra.mxu0 %v2430
        %2444 = vmatprep.subr.mxu0 0.0
        %2445 = vmatpush1.msra.mxu0 %v2429
        %2446 = vmatprep.subr.mxu0 0.0
        %2447 = vmatpush1.msra.mxu0 %v2428
        %2448 = vmatprep.subr.mxu0 0.0
        %2449 = vmatpush1.msra.mxu0 %v2427
        %2450 = vmatprep.subr.mxu0 0.0
        %2451 = vmatpush1.msra.mxu0 %v2426
        %2452 = vmatprep.subr.mxu0 0.0
        %2453 = vmatpush1.msra.mxu0 %v2425
        %2454 = vmatprep.subr.mxu0 0.0
        %2455 = vmatpush1.msra.mxu0 %v2424
        %2456 = vmatprep.subr.mxu0 0.0
        %2457 = vmatpush1.msra.mxu0 %v2423
        %2458 = vmatprep.subr.mxu0 0.0
        %2459 = vmatpush1.msra.mxu0 %v2422
        %2460 = vmatprep.subr.mxu0 0.0
        %2461 = vmatpush1.msra.mxu0 %v2421
        %2462 = vmatprep.subr.mxu0 0.0
        %2463 = vmatpush1.msra.mxu0 %v2420
        %2464 = vmatprep.subr.mxu0 0.0
        %2465 = vmatpush1.msra.mxu0 %v2419
        %2466 = vmatprep.subr.mxu0 0.0
        %2467 = vmatpush1.msra.mxu0 %v2418
        %2468 = vmatprep.subr.mxu0 0.0
        %2469 = vmatpush2.msra.mxu0 0.0
        %2470 = vmatprep.subr.mxu0 0.0
        %2471 = vmatpush2.msra.mxu0 0.0
        %2472 = vmatprep.subr.mxu0 0.0
        %2473 = vmatpush2.msra.mxu0 0.0
        %2474 = vmatprep.subr.mxu0 0.0
        %2475 = vmatpush2.msra.mxu0 0.0
        %2476 = vmatprep.subr.mxu0 0.0
        %2477 = vmatpush2.msra.mxu0 0.0
        %2478 = vmatprep.subr.mxu0 0.0
        %2479 = vmatpush2.msra.mxu0 0.0
        %2480 = vmatprep.subr.mxu0 0.0
        %2481 = vmatpush2.msra.mxu0 0.0
        %2482 = vmatprep.subr.mxu0 0.0
        %2483 = vmatpush2.msra.mxu0 0.0
        %2484 = vmatprep.subr.mxu0 0.0
        %2485 = vmatpush2.msra.mxu0 0.0
        %2486 = vmatprep.subr.mxu0 0.0
        %2487 = vmatpush2.msra.mxu0 0.0
        %2488 = vmatprep.subr.mxu0 0.0
        %2489 = vmatpush2.msra.mxu0 0.0
        %2490 = vmatprep.subr.mxu0 0.0
        %2491 = vmatpush2.msra.mxu0 0.0
        %2492 = vmatprep.subr.mxu0 0.0
        %2493 = vmatpush2.msra.mxu0 0.0
        %2494 = vmatprep.subr.mxu0 0.0
        %2495 = vmatpush2.msra.mxu0 0.0
        %2496 = vmatprep.subr.mxu0 0.0
        %2497 = vmatpush2.msra.mxu0 %v2435
        %2498 = vmatprep.subr.mxu0 0.0
        %2499 = vmatpush2.msra.mxu0 %v2434
        %2500 = vmatprep.mubr.f32.mxu0 %v2098
        %2501 = vmatmul.mubr.f32.gmra.mxu0 %v2072
        %v2502 = vpop.f32.mrf.mxu0
        %v2503 = vadd.f32 0.0, %v2502
        %v2504 = vpop.f32.mrf.mxu0
        %2505 = vmatprep.mubr.f32.mxu0 %v2101
        %2506 = vmatmul.mubr.f32.gmra.mxu0 %v2074
        %v2507 = vpop.f32.mrf.mxu0
        %v2508 = vadd.f32 0.0, %v2507
        %v2509 = vpop.f32.mrf.mxu0
        %2510 = vdwg.mxu0
        %2512 = vset.pattern.permute.xlu0 0
        %2513 = vperm.xlu0 %2512, %v2415
        %v2514 = vpop.permute.xlu0 %2513
        %2517 = vset.pattern.permute.xlu0 0
        %2518 = vperm.xlu0 %2517, %v2416
        %v2519 = vpop.permute.xlu0 %2518
        %v2521 = vmul.f32 %v2514, %v2503
        %v2522 = vmul.f32 %v2519, %v2508
        %v2523 = vadd.f32 %v2412, %v2521
        %v2524 = vadd.f32 %v2413, %v2522
        %s2525 = scalar_lea.vmem %s7, 64
        %v2526 = vld [vmem:[%s2525] sm:$0xff]
        %v2527 = vld [vmem:[%s2525 + $0x8] sm:$0x1]
        %s2528 = scalar_lea.vmem %s6, 576
        %v2529 = vld [vmem:[%s2528] sm:$0xff]
        %v2530 = vld [vmem:[%s2528 + $0x8] sm:$0xff]
        %v2531 = vld [vmem:[%s2528 + $0x10] sm:$0xff]
        %v2532 = vld [vmem:[%s2528 + $0x18] sm:$0xff]
        %v2533 = vld [vmem:[%s2528 + $0x20] sm:$0xff]
        %v2534 = vld [vmem:[%s2528 + $0x28] sm:$0xff]
        %v2535 = vld [vmem:[%s2528 + $0x30] sm:$0xff]
        %v2536 = vld [vmem:[%s2528 + $0x38] sm:$0xff]
        %v2537 = vld [vmem:[%s2528 + $0x40] sm:$0xff]
        %v2538 = vld [vmem:[%s2528 + $0x48] sm:$0xff]
        %v2539 = vld [vmem:[%s2528 + $0x50] sm:$0xff]
        %v2540 = vld [vmem:[%s2528 + $0x58] sm:$0xff]
        %v2541 = vld [vmem:[%s2528 + $0x60] sm:$0xff]
        %v2542 = vld [vmem:[%s2528 + $0x68] sm:$0xff]
        %v2543 = vld [vmem:[%s2528 + $0x70] sm:$0xff]
        %v2544 = vld [vmem:[%s2528 + $0x78] sm:$0xff]
        %v2545 = vld [vmem:[%s2528 + $0x80] sm:$0xff]
        %v2546 = vld [vmem:[%s2528 + $0x88] sm:$0xff]
        %2547 = vmatprep.subr.mxu0 0.0
        %2548 = vmatpush1.msra.mxu0 %v2544
        %2549 = vmatprep.subr.mxu0 0.0
        %2550 = vmatpush1.msra.mxu0 %v2543
        %2551 = vmatprep.subr.mxu0 0.0
        %2552 = vmatpush1.msra.mxu0 %v2542
        %2553 = vmatprep.subr.mxu0 0.0
        %2554 = vmatpush1.msra.mxu0 %v2541
        %2555 = vmatprep.subr.mxu0 0.0
        %2556 = vmatpush1.msra.mxu0 %v2540
        %2557 = vmatprep.subr.mxu0 0.0
        %2558 = vmatpush1.msra.mxu0 %v2539
        %2559 = vmatprep.subr.mxu0 0.0
        %2560 = vmatpush1.msra.mxu0 %v2538
        %2561 = vmatprep.subr.mxu0 0.0
        %2562 = vmatpush1.msra.mxu0 %v2537
        %2563 = vmatprep.subr.mxu0 0.0
        %2564 = vmatpush1.msra.mxu0 %v2536
        %2565 = vmatprep.subr.mxu0 0.0
        %2566 = vmatpush1.msra.mxu0 %v2535
        %2567 = vmatprep.subr.mxu0 0.0
        %2568 = vmatpush1.msra.mxu0 %v2534
        %2569 = vmatprep.subr.mxu0 0.0
        %2570 = vmatpush1.msra.mxu0 %v2533
        %2571 = vmatprep.subr.mxu0 0.0
        %2572 = vmatpush1.msra.mxu0 %v2532
        %2573 = vmatprep.subr.mxu0 0.0
        %2574 = vmatpush1.msra.mxu0 %v2531
        %2575 = vmatprep.subr.mxu0 0.0
        %2576 = vmatpush1.msra.mxu0 %v2530
        %2577 = vmatprep.subr.mxu0 0.0
        %2578 = vmatpush1.msra.mxu0 %v2529
        %2579 = vmatprep.subr.mxu0 0.0
        %2580 = vmatpush2.msra.mxu0 0.0
        %2581 = vmatprep.subr.mxu0 0.0
        %2582 = vmatpush2.msra.mxu0 0.0
        %2583 = vmatprep.subr.mxu0 0.0
        %2584 = vmatpush2.msra.mxu0 0.0
        %2585 = vmatprep.subr.mxu0 0.0
        %2586 = vmatpush2.msra.mxu0 0.0
        %2587 = vmatprep.subr.mxu0 0.0
        %2588 = vmatpush2.msra.mxu0 0.0
        %2589 = vmatprep.subr.mxu0 0.0
        %2590 = vmatpush2.msra.mxu0 0.0
        %2591 = vmatprep.subr.mxu0 0.0
        %2592 = vmatpush2.msra.mxu0 0.0
        %2593 = vmatprep.subr.mxu0 0.0
        %2594 = vmatpush2.msra.mxu0 0.0
        %2595 = vmatprep.subr.mxu0 0.0
        %2596 = vmatpush2.msra.mxu0 0.0
        %2597 = vmatprep.subr.mxu0 0.0
        %2598 = vmatpush2.msra.mxu0 0.0
        %2599 = vmatprep.subr.mxu0 0.0
        %2600 = vmatpush2.msra.mxu0 0.0
        %2601 = vmatprep.subr.mxu0 0.0
        %2602 = vmatpush2.msra.mxu0 0.0
        %2603 = vmatprep.subr.mxu0 0.0
        %2604 = vmatpush2.msra.mxu0 0.0
        %2605 = vmatprep.subr.mxu0 0.0
        %2606 = vmatpush2.msra.mxu0 0.0
        %2607 = vmatprep.subr.mxu0 0.0
        %2608 = vmatpush2.msra.mxu0 %v2546
        %2609 = vmatprep.subr.mxu0 0.0
        %2610 = vmatpush2.msra.mxu0 %v2545
        %2611 = vmatprep.mubr.f32.mxu0 %v2098
        %2612 = vmatmul.mubr.f32.gmra.mxu0 %v2072
        %v2613 = vpop.f32.mrf.mxu0
        %v2614 = vadd.f32 0.0, %v2613
        %v2615 = vpop.f32.mrf.mxu0
        %2616 = vmatprep.mubr.f32.mxu0 %v2101
        %2617 = vmatmul.mubr.f32.gmra.mxu0 %v2074
        %v2618 = vpop.f32.mrf.mxu0
        %v2619 = vadd.f32 0.0, %v2618
        %v2620 = vpop.f32.mrf.mxu0
        %2621 = vdwg.mxu0
        %2623 = vset.pattern.permute.xlu0 0
        %2624 = vperm.xlu0 %2623, %v2526
        %v2625 = vpop.permute.xlu0 %2624
        %2628 = vset.pattern.permute.xlu0 0
        %2629 = vperm.xlu0 %2628, %v2527
        %v2630 = vpop.permute.xlu0 %2629
        %v2632 = vmul.f32 %v2625, %v2614
        %v2633 = vmul.f32 %v2630, %v2619
        %v2634 = vadd.f32 %v2523, %v2632
        %v2635 = vadd.f32 %v2524, %v2633
        %vm2636 = vcmask 982016
        %v2637 = vsel %vm2636, %v2634, 0.0
        %vm2638 = vcmask 974848
        %v2639 = vsel %vm2638, %v2635, 0.0
        %v2640 = vadd.f32 %v2637, %v2639
        %v2641 = vrot.slane %v2640, 4
        %v2642 = vadd.f32 %v2640, %v2641
        %v2643 = vrot.slane %v2642, 2
        %v2644 = vadd.f32 %v2642, %v2643
        %v2645 = vrot.slane %v2644, 1
        %v2646 = vadd.f32 %v2644, %v2645
        %v2647 = vld [vmem:[%s8] sm:$0x1]
        %v2648 = vadd.f32 %v2646, %v2647
        %v2649 = vmax.f32 %v2648, 0.0
        %v2650 = vld [vmem:[%s9] sm:$0xff]
        %v2651 = vld [vmem:[%s9 + $0x8] sm:$0xff]
        %v2652 = vld [vmem:[%s9 + $0x10] sm:$0xff]
        %v2653 = vld [vmem:[%s9 + $0x18] sm:$0xff]
        %v2654 = vld [vmem:[%s9 + $0x20] sm:$0xff]
        %v2655 = vld [vmem:[%s9 + $0x28] sm:$0xff]
        %v2656 = vld [vmem:[%s9 + $0x30] sm:$0xff]
        %v2657 = vld [vmem:[%s9 + $0x38] sm:$0xff]
        %v2658 = vld [vmem:[%s9 + $0x40] sm:$0xff]
        %v2659 = vld [vmem:[%s9 + $0x48] sm:$0xff]
        %v2660 = vld [vmem:[%s9 + $0x50] sm:$0xff]
        %v2661 = vld [vmem:[%s9 + $0x58] sm:$0xff]
        %v2662 = vld [vmem:[%s9 + $0x60] sm:$0xff]
        %v2663 = vld [vmem:[%s9 + $0x68] sm:$0xff]
        %v2664 = vld [vmem:[%s9 + $0x70] sm:$0xff]
        %v2665 = vld [vmem:[%s10] sm:$0x1]
        %v2667 = vsel %vm2636, %v2649, 0
        %2669 = vmatprep.subr.mxu0 0.0
        %2670 = vmatpush1.msra.mxu0 0.0
        %2671 = vmatprep.subr.mxu0 0.0
        %2672 = vmatpush1.msra.mxu0 %v2664
        %2673 = vmatprep.subr.mxu0 0.0
        %2674 = vmatpush1.msra.mxu0 %v2663
        %2675 = vmatprep.subr.mxu0 0.0
        %2676 = vmatpush1.msra.mxu0 %v2662
        %2677 = vmatprep.subr.mxu0 0.0
        %2678 = vmatpush1.msra.mxu0 %v2661
        %2679 = vmatprep.subr.mxu0 0.0
        %2680 = vmatpush1.msra.mxu0 %v2660
        %2681 = vmatprep.subr.mxu0 0.0
        %2682 = vmatpush1.msra.mxu0 %v2659
        %2683 = vmatprep.subr.mxu0 0.0
        %2684 = vmatpush1.msra.mxu0 %v2658
        %2685 = vmatprep.subr.mxu0 0.0
        %2686 = vmatpush1.msra.mxu0 %v2657
        %2687 = vmatprep.subr.mxu0 0.0
        %2688 = vmatpush1.msra.mxu0 %v2656
        %2689 = vmatprep.subr.mxu0 0.0
        %2690 = vmatpush1.msra.mxu0 %v2655
        %2691 = vmatprep.subr.mxu0 0.0
        %2692 = vmatpush1.msra.mxu0 %v2654
        %2693 = vmatprep.subr.mxu0 0.0
        %2694 = vmatpush1.msra.mxu0 %v2653
        %2695 = vmatprep.subr.mxu0 0.0
        %2696 = vmatpush1.msra.mxu0 %v2652
        %2697 = vmatprep.subr.mxu0 0.0
        %2698 = vmatpush1.msra.mxu0 %v2651
        %2699 = vmatprep.subr.mxu0 0.0
        %2700 = vmatpush1.msra.mxu0 %v2650
        %2701 = vmatprep.subr.mxu0 0.0
        %2702 = vmatpush2.msra.mxu0 0.0
        %2703 = vmatprep.subr.mxu0 0.0
        %2704 = vmatpush2.msra.mxu0 0.0
        %2705 = vmatprep.subr.mxu0 0.0
        %2706 = vmatpush2.msra.mxu0 0.0
        %2707 = vmatprep.subr.mxu0 0.0
        %2708 = vmatpush2.msra.mxu0 0.0
        %2709 = vmatprep.subr.mxu0 0.0
        %2710 = vmatpush2.msra.mxu0 0.0
        %2711 = vmatprep.subr.mxu0 0.0
        %2712 = vmatpush2.msra.mxu0 0.0
        %2713 = vmatprep.subr.mxu0 0.0
        %2714 = vmatpush2.msra.mxu0 0.0
        %2715 = vmatprep.subr.mxu0 0.0
        %2716 = vmatpush2.msra.mxu0 0.0
        %2717 = vmatprep.subr.mxu0 0.0
        %2718 = vmatpush2.msra.mxu0 0.0
        %2719 = vmatprep.subr.mxu0 0.0
        %2720 = vmatpush2.msra.mxu0 0.0
        %2721 = vmatprep.subr.mxu0 0.0
        %2722 = vmatpush2.msra.mxu0 0.0
        %2723 = vmatprep.subr.mxu0 0.0
        %2724 = vmatpush2.msra.mxu0 0.0
        %2725 = vmatprep.subr.mxu0 0.0
        %2726 = vmatpush2.msra.mxu0 0.0
        %2727 = vmatprep.subr.mxu0 0.0
        %2728 = vmatpush2.msra.mxu0 0.0
        %2729 = vmatprep.subr.mxu0 0.0
        %2730 = vmatpush2.msra.mxu0 0.0
        %2731 = vmatprep.subr.mxu0 0.0
        %2732 = vmatpush2.msra.mxu0 0.0
        %2733 = vmatprep.mubr.f32.mxu0 0.0
        %2734 = vmatmul.mubr.f32.gmra.mxu0 %v2667
        %v2735 = vpop.f32.mrf.mxu0
        %v2736 = vadd.f32 %v2665, %v2735
        %v2737 = vpop.f32.mrf.mxu0
        %2738 = vdwg.mxu0
        %v2739 = vmax.f32 %v2736, 0.0
        %v2740 = vld [vmem:[%s11] sm:$0xff]
        %v2741 = vld [vmem:[%s11 + $0x8] sm:$0xff]
        %v2742 = vld [vmem:[%s11 + $0x10] sm:$0xff]
        %v2743 = vld [vmem:[%s11 + $0x18] sm:$0xff]
        %v2744 = vld [vmem:[%s11 + $0x20] sm:$0xff]
        %v2745 = vld [vmem:[%s11 + $0x28] sm:$0xff]
        %v2746 = vld [vmem:[%s11 + $0x30] sm:$0xff]
        %v2747 = vld [vmem:[%s11 + $0x38] sm:$0xff]
        %v2748 = vld [vmem:[%s11 + $0x40] sm:$0xff]
        %v2749 = vld [vmem:[%s11 + $0x48] sm:$0xff]
        %v2750 = vld [vmem:[%s11 + $0x50] sm:$0xf]
        %v2751 = vld [vmem:[%s12] sm:$0x1]
        %vm2752 = vcmask 687104
        %v2754 = vsel %vm2752, %v2739, 0
        %v2757 = vsel %vm999, %v2750, 0
        %2759 = vmatprep.subr.mxu0 0.0
        %2760 = vmatpush1.msra.mxu0 0.0
        %2761 = vmatprep.subr.mxu0 0.0
        %2762 = vmatpush1.msra.mxu0 0.0
        %2763 = vmatprep.subr.mxu0 0.0
        %2764 = vmatpush1.msra.mxu0 0.0
        %2765 = vmatprep.subr.mxu0 0.0
        %2766 = vmatpush1.msra.mxu0 0.0
        %2767 = vmatprep.subr.mxu0 0.0
        %2768 = vmatpush1.msra.mxu0 0.0
        %2769 = vmatprep.subr.mxu0 0.0
        %2770 = vmatpush1.msra.mxu0 %v2757
        %2771 = vmatprep.subr.mxu0 0.0
        %2772 = vmatpush1.msra.mxu0 %v2749
        %2773 = vmatprep.subr.mxu0 0.0
        %2774 = vmatpush1.msra.mxu0 %v2748
        %2775 = vmatprep.subr.mxu0 0.0
        %2776 = vmatpush1.msra.mxu0 %v2747
        %2777 = vmatprep.subr.mxu0 0.0
        %2778 = vmatpush1.msra.mxu0 %v2746
        %2779 = vmatprep.subr.mxu0 0.0
        %2780 = vmatpush1.msra.mxu0 %v2745
        %2781 = vmatprep.subr.mxu0 0.0
        %2782 = vmatpush1.msra.mxu0 %v2744
        %2783 = vmatprep.subr.mxu0 0.0
        %2784 = vmatpush1.msra.mxu0 %v2743
        %2785 = vmatprep.subr.mxu0 0.0
        %2786 = vmatpush1.msra.mxu0 %v2742
        %2787 = vmatprep.subr.mxu0 0.0
        %2788 = vmatpush1.msra.mxu0 %v2741
        %2789 = vmatprep.subr.mxu0 0.0
        %2790 = vmatpush1.msra.mxu0 %v2740
        %2791 = vmatprep.subr.mxu0 0.0
        %2792 = vmatpush2.msra.mxu0 0.0
        %2793 = vmatprep.subr.mxu0 0.0
        %2794 = vmatpush2.msra.mxu0 0.0
        %2795 = vmatprep.subr.mxu0 0.0
        %2796 = vmatpush2.msra.mxu0 0.0
        %2797 = vmatprep.subr.mxu0 0.0
        %2798 = vmatpush2.msra.mxu0 0.0
        %2799 = vmatprep.subr.mxu0 0.0
        %2800 = vmatpush2.msra.mxu0 0.0
        %2801 = vmatprep.subr.mxu0 0.0
        %2802 = vmatpush2.msra.mxu0 0.0
        %2803 = vmatprep.subr.mxu0 0.0
        %2804 = vmatpush2.msra.mxu0 0.0
        %2805 = vmatprep.subr.mxu0 0.0
        %2806 = vmatpush2.msra.mxu0 0.0
        %2807 = vmatprep.subr.mxu0 0.0
        %2808 = vmatpush2.msra.mxu0 0.0
        %2809 = vmatprep.subr.mxu0 0.0
        %2810 = vmatpush2.msra.mxu0 0.0
        %2811 = vmatprep.subr.mxu0 0.0
        %2812 = vmatpush2.msra.mxu0 0.0
        %2813 = vmatprep.subr.mxu0 0.0
        %2814 = vmatpush2.msra.mxu0 0.0
        %2815 = vmatprep.subr.mxu0 0.0
        %2816 = vmatpush2.msra.mxu0 0.0
        %2817 = vmatprep.subr.mxu0 0.0
        %2818 = vmatpush2.msra.mxu0 0.0
        %2819 = vmatprep.subr.mxu0 0.0
        %2820 = vmatpush2.msra.mxu0 0.0
        %2821 = vmatprep.subr.mxu0 0.0
        %2822 = vmatpush2.msra.mxu0 0.0
        %2823 = vmatprep.mubr.f32.mxu0 0.0
        %2824 = vmatmul.mubr.f32.gmra.mxu0 %v2754
        %v2825 = vpop.f32.mrf.mxu0
        %v2826 = vadd.f32 %v2751, %v2825
        %v2827 = vpop.f32.mrf.mxu0
        %2828 = vdwg.mxu0
        %vm2829 = vcmask 73728
        %2830 = vst.msk [vmem:[%s432] sm:$0x1] %vm2829, %v2826
        %s2831 = sand.u32 %s313, 1
        %s2832 = scalar_lea.sflag [#allocation3], %s2831
        %s2833 = sand.u32 %s313, 1
        %s2834 = scalar_lea.vmem [#allocation2], %s2833
        // Predicated region
        $region73: #{lenet_forward.1} parent=71 // pred_check
          %p2835 = pneg %p323
        $region74: #{lenet_forward.1} parent=71 // pred_check_branch
          %2837 = sbr.rel (%p2835) target = $region76
        $region75: #{lenet_forward.1} parent=71 // pred_region
          %s2839 = ssub.s32 16, 16
          %2840 = vsyncadd %s2832, %s2839
          %s2841 = smul.addr %s27, 16
          %s2842 = scalar_lea.hbm %s13, %s2841
          %s2844 = sshll.u32 %s2834, 4
          %s2845 = int_to_ptr.vmem [resolvable:$true] %s2844
          %2847 = dma.vmem_to_hbm [thread:$0]  %s2845, 16, %s2842, %s2832
        $region76: #{lenet_forward.1} parent=71 // pred_fallthru
          _
      $region72: #{lenet_forward.1} parent=5 // pred_fallthru
        _
      %p2848 = scmp.le.s32.totalorder 2, %s22
      // Predicated region
      $region77: #{lenet_forward.1} parent=5 // pred_check
        %p2849 = pneg %p2848
      $region78: #{lenet_forward.1} parent=5 // pred_check_branch
        %2851 = sbr.rel (%p2849) target = $region80
      $region79: #{lenet_forward.1} parent=5 // pred_region
        %s2852 = ssub.s32 %s22, 2
        // Predicated region
        $region81: #{lenet_forward.1} parent=79 // pred_check
          %p2853 = pneg %p329
        $region82: #{lenet_forward.1} parent=79 // pred_check_branch
          %2855 = sbr.rel (%p2853) target = $region84
        $region83: #{lenet_forward.1} parent=79 // pred_region
          %s2856 = sand.u32 %s314, 1
          %s2857 = scalar_lea.sflag [#allocation3], %s2856
          %s2858 = sand.u32 %s314, 1
          %s2859 = scalar_lea.vmem [#allocation2], %s2858
          %2860 = dma.done %s2857, 16
        $region84: #{lenet_forward.1} parent=79 // pred_fallthru
          _
      $region80: #{lenet_forward.1} parent=5 // pred_fallthru
        _
    $region6: #{lenet_forward.1} parent=1 // loop_footer
      %s26 = sadd.s32 1, %s22
    $region7: #{lenet_forward.1} parent=1 // loop_footer_branch
      %21 = sbr.rel target = $region3
    $region8: #{lenet_forward.1} parent=1 // loop_exit
      _
    %2861 = vsyncpa [#allocation3], 1
    %s2862 = scalar_lea.sflag [#allocation3], 1
    %2863 = vsyncpa %s2862, 1

</llo_original>
